<compile_context>
chip_gen: v7x
topology: tpu7x:2x2x1
jax: 0.10.0
libtpu: 0.0.40
codegen_flags: <defaults>
</compile_context>

<pallas_src>
import functools

import jax
import jax.numpy as jnp
from jax.experimental import pallas as pl
from jax.experimental.pallas import tpu as pltpu

ACT_DTYPE = jnp.bfloat16  # MXU-native input dtype; accumulation stays f32.


# ----------------------------------------------------------------------------
# Pallas kernels: MXU matmul, f32 accumulation, fused bias (+ optional ReLU).
# ----------------------------------------------------------------------------
def _matmul_bias_kernel(a_ref, w_ref, b_ref, o_ref, *, relu):
    acc = jnp.dot(a_ref[...], w_ref[...], preferred_element_type=jnp.float32)
    acc = acc + b_ref[...]
    if relu:
        acc = jnp.maximum(acc, 0.0)
    o_ref[...] = acc.astype(o_ref.dtype)


def _matmul2_bias_kernel(a1_ref, a2_ref, w1_ref, w2_ref, b_ref, o_ref, *, relu):
    # Fused skip-connection: dot(a1,w1) + dot(a2,w2) accumulates in the same
    # f32 block, so concat([u, skip]) never hits HBM.
    acc = jnp.dot(a1_ref[...], w1_ref[...], preferred_element_type=jnp.float32)
    acc = acc + jnp.dot(a2_ref[...], w2_ref[...],
                        preferred_element_type=jnp.float32)
    acc = acc + b_ref[...]
    if relu:
        acc = jnp.maximum(acc, 0.0)
    o_ref[...] = acc.astype(o_ref.dtype)


def _matmul_bias_phase_kernel(a_ref, w_ref, b_ref, o_ref, *, relu):
    # One grid step per sub-pixel phase of a transposed conv (leading block dim
    # of size 1 selects the phase's patches and sub-kernel).
    acc = jnp.dot(a_ref[0], w_ref[0], preferred_element_type=jnp.float32)
    acc = acc + b_ref[...]
    if relu:
        acc = jnp.maximum(acc, 0.0)
    o_ref[0] = acc.astype(o_ref.dtype)


# ----------------------------------------------------------------------------
# Tiling helpers / pallas_call wrappers.
# ----------------------------------------------------------------------------
def _round_up(x, m):
    return ((x + m - 1) // m) * m


def _m_tiles(m):
    """(padded M, tile M, grid steps): run each layer in 1-2 big grid steps.

    Per-grid-step overhead (~0.35us) dwarfs per-tile compute at these layer
    sizes; layers with M >= 256 keep two parallel steps so v7x's two
    TensorCores both get work (no effect on single-TC v5e/v6e).
    """
    if m >= 256:
        mp = _round_up(m, 16)
        return mp, mp // 2, 2
    mp = _round_up(m, 8)
    return mp, mp, 1


def matmul_bias(a, w, b_row, relu):
    """a:(M,K) @ w:(K,N) + b:(1,N); bf16 MXU inputs, f32 accumulation."""
    m, k = a.shape
    n = w.shape[1]
    mp, tm, steps = _m_tiles(m)
    a = a.astype(ACT_DTYPE)
    if mp != m:
        a = jnp.pad(a, ((0, mp - m), (0, 0)))
    out = pl.pallas_call(
        functools.partial(_matmul_bias_kernel, relu=relu),
        out_shape=jax.ShapeDtypeStruct((mp, n), ACT_DTYPE),
        grid=(steps,),
        in_specs=[
            pl.BlockSpec((tm, k), lambda i: (i, 0)),
            pl.BlockSpec((k, n), lambda i: (0, 0)),
            pl.BlockSpec((1, n), lambda i: (0, 0)),
        ],
        out_specs=pl.BlockSpec((tm, n), lambda i: (i, 0)),
        compiler_params=pltpu.CompilerParams(
            dimension_semantics=("parallel",)),
    )(a, w, b_row)
    return out if mp == m else out[:m]


def matmul2_bias(a1, a2, w1, w2, b_row, relu):
    """Fused-skip matmul: dot(a1,w1) + dot(a2,w2) + b, without concat in HBM."""
    m, k1 = a1.shape
    k2 = a2.shape[1]
    n = w1.shape[1]
    mp, tm, steps = _m_tiles(m)
    a1 = a1.astype(ACT_DTYPE)
    a2 = a2.astype(ACT_DTYPE)
    if mp != m:
        a1 = jnp.pad(a1, ((0, mp - m), (0, 0)))
        a2 = jnp.pad(a2, ((0, mp - m), (0, 0)))
    out = pl.pallas_call(
        functools.partial(_matmul2_bias_kernel, relu=relu),
        out_shape=jax.ShapeDtypeStruct((mp, n), ACT_DTYPE),
        grid=(steps,),
        in_specs=[
            pl.BlockSpec((tm, k1), lambda i: (i, 0)),
            pl.BlockSpec((tm, k2), lambda i: (i, 0)),
            pl.BlockSpec((k1, n), lambda i: (0, 0)),
            pl.BlockSpec((k2, n), lambda i: (0, 0)),
            pl.BlockSpec((1, n), lambda i: (0, 0)),
        ],
        out_specs=pl.BlockSpec((tm, n), lambda i: (i, 0)),
        compiler_params=pltpu.CompilerParams(
            dimension_semantics=("parallel",)),
    )(a1, a2, w1, w2, b_row)
    return out if mp == m else out[:m]


def matmul_bias_phases(a, w, b_row, relu):
    """Batched (P,M,K) @ (P,K,N): one grid step per transposed-conv phase."""
    p, m, k = a.shape
    n = w.shape[-1]
    mp, tm, steps = _m_tiles(m)
    a = a.astype(ACT_DTYPE)
    if mp != m:
        a = jnp.pad(a, ((0, 0), (0, mp - m), (0, 0)))
    out = pl.pallas_call(
        functools.partial(_matmul_bias_phase_kernel, relu=relu),
        out_shape=jax.ShapeDtypeStruct((p, mp, n), ACT_DTYPE),
        grid=(p, steps),
        in_specs=[
            pl.BlockSpec((1, tm, k), lambda ph, i: (ph, i, 0)),
            pl.BlockSpec((1, k, n), lambda ph, i: (ph, 0, 0)),
            pl.BlockSpec((1, n), lambda ph, i: (0, 0)),
        ],
        out_specs=pl.BlockSpec((1, tm, n), lambda ph, i: (ph, i, 0)),
        compiler_params=pltpu.CompilerParams(
            dimension_semantics=("parallel", "parallel")),
    )(a, w, b_row)
    return out if mp == m else out[:, :m]


# ----------------------------------------------------------------------------
# Convolutions built on the Pallas matmuls (im2col is JAX glue).
# ----------------------------------------------------------------------------
def _im2col(x, kh, kw, stride, padding):
    """x: NHWC -> (N*OH*OW, kh*kw*C) patches, plus output spatial dims."""
    n, h, w, c = x.shape
    xp = jnp.pad(x, ((0, 0), (padding, padding), (padding, padding), (0, 0)))
    oh = (h + 2 * padding - kh) // stride + 1
    ow = (w + 2 * padding - kw) // stride + 1
    cols = []
    for i in range(kh):
        for j in range(kw):
            cols.append(xp[:, i:i + stride * oh:stride,
                           j:j + stride * ow:stride, :])
    patches = jnp.concatenate(cols, axis=-1)  # (N, OH, OW, kh*kw*C)
    return patches.reshape(n * oh * ow, kh * kw * c), oh, ow


def conv2d(x, w_mat, b_row, *, ksize, stride, padding, relu=True):
    """x: NHWC, w_mat: pre-flattened (ksize*ksize*Cin, Cout) bf16."""
    patches, oh, ow = _im2col(x, ksize, ksize, stride, padding)
    out = matmul_bias(patches, w_mat, b_row, relu)
    return out.reshape(x.shape[0], oh, ow, w_mat.shape[1])


def conv2d_skip(x1, x2, w1, w2, b_row, *, ksize, stride, padding, relu=True):
    """conv2d(concat([x1, x2], C)) with the concat fused into the matmul."""
    p1, oh, ow = _im2col(x1, ksize, ksize, stride, padding)
    p2, _, _ = _im2col(x2, ksize, ksize, stride, padding)
    out = matmul2_bias(p1, p2, w1, w2, b_row, relu)
    return out.reshape(x1.shape[0], oh, ow, w1.shape[1])


# Sub-pixel decomposition of a 4x4 / stride-2 / pad-1 ConvTranspose2d:
# output row 2m+a uses kernel taps _DECONV_TAPS[a] on input rows {m-1,m} (a=0)
# or {m,m+1} (a=1); same along width. Each phase is a dense stride-1 2x2 conv.
_DECONV_TAPS = ((3, 1), (2, 0))


def _prepare_deconv(w_t, b):
    """(Cin, Cout, 4, 4) ConvTranspose2d weight -> (4, 2*2*Cin, Cout) bf16."""
    cin, cout = w_t.shape[0], w_t.shape[1]
    mats = []
    for a in (0, 1):
        for c in (0, 1):
            sub = jnp.take(w_t, jnp.array(_DECONV_TAPS[a]), axis=2)
            sub = jnp.take(sub, jnp.array(_DECONV_TAPS[c]), axis=3)
            sub = jnp.transpose(sub, (2, 3, 0, 1))          # (2,2,Cin,Cout) HWIO
            mats.append(sub.reshape(4 * cin, cout))
    w_ph = jnp.stack(mats, axis=0).astype(ACT_DTYPE)
    return w_ph, b.reshape(1, cout).astype(jnp.float32)


def conv_transpose2d(x, w_ph, b_row, relu=True):
    """4x4/stride-2/pad-1 transposed conv via phase split (no zero rows).

    All 4 phases run as a single pallas_call (phase = parallel grid axis) and
    the 4 quarter-resolution outputs are interleaved (pixel-shuffle) at the end.
    TODO(synk): assumes PyTorch defaults (output_padding=0, dilation=1, groups=1).
    """
    n, h, w, _ = x.shape
    cout = w_ph.shape[-1]
    patches = []
    for a in (0, 1):
        for c in (0, 1):
            # a=0 -> pad one zero row on top, a=1 -> bottom (same for width).
            xp = jnp.pad(x, ((0, 0), (1 - a, a), (1 - c, c), (0, 0)))
            p, _, _ = _im2col(xp, 2, 2, 1, 0)               # (n*h*w, 4*Cin)
            patches.append(p)
    a_ph = jnp.stack(patches, axis=0)                       # (4, n*h*w, 4*Cin)
    out = matmul_bias_phases(a_ph, w_ph, b_row, relu)       # (4, n*h*w, Cout)
    out = out.reshape(2, 2, n, h, w, cout)
    return out.transpose(2, 3, 0, 4, 1, 5).reshape(n, 2 * h, 2 * w, cout)


# ----------------------------------------------------------------------------
# Parameters: deterministic synthetic init + one-time matmul-ready preparation.
# ----------------------------------------------------------------------------
def init_params(key):
    def conv_p(k, kh, kw, cin, cout):
        kw_, kb_ = jax.random.split(k)
        scale = 1.0 / jnp.sqrt(float(kh * kw * cin))
        w = jax.random.normal(kw_, (kh, kw, cin, cout), jnp.float32) * scale
        b = jax.random.normal(kb_, (cout,), jnp.float32) * 0.01
        return w, b

    def deconv_p(k, kh, kw, cin, cout):
        kw_, kb_ = jax.random.split(k)
        scale = 1.0 / jnp.sqrt(float(kh * kw * cin))
        w = jax.random.normal(kw_, (cin, cout, kh, kw), jnp.float32) * scale
        b = jax.random.normal(kb_, (cout,), jnp.float32) * 0.01
        return w, b

    ks = jax.random.split(key, 9)
    return {
        "conv1":   conv_p(ks[0], 7, 7, 6, 16),
        "conv2":   conv_p(ks[1], 5, 5, 16, 32),
        "conv3":   conv_p(ks[2], 3, 3, 32, 64),
        "conv3_1": conv_p(ks[3], 3, 3, 64, 64),
        "upconv2": deconv_p(ks[4], 4, 4, 64, 32),
        "iconv2":  conv_p(ks[5], 3, 3, 64, 32),
        "upconv1": deconv_p(ks[6], 4, 4, 32, 16),
        "iconv1":  conv_p(ks[7], 3, 3, 32, 16),
        "pr1":     conv_p(ks[8], 3, 3, 16, 1),
    }


def prepare_params(params):
    """One-time (outside the jitted forward) conversion to matmul-ready form:
    flatten conv weights to (K, N) bf16, K-split the skip-conv weights,
    phase-split the deconv weights, biases to (1, N) f32."""
    prep = {}

    def conv_w(name):
        w, b = params[name]
        kh, kw, cin, cout = w.shape
        return (w.reshape(kh * kw * cin, cout).astype(ACT_DTYPE),
                b.reshape(1, cout).astype(jnp.float32))

    for name in ("conv1", "conv2", "conv3", "conv3_1"):
        prep[name] = conv_w(name)
    for name in ("upconv2", "upconv1"):
        prep[name] = _prepare_deconv(*params[name])
    for name, csplit in (("iconv2", 32), ("iconv1", 16)):
        w, b = params[name]
        kh, kw, cin, cout = w.shape
        prep[name] = (
            w[:, :, :csplit, :].reshape(kh * kw * csplit, cout).astype(ACT_DTYPE),
            w[:, :, csplit:, :].reshape(kh * kw * (cin - csplit), cout).astype(ACT_DTYPE),
            b.reshape(1, cout).astype(jnp.float32))
    w, b = params["pr1"]
    prep["pr1"] = (w.reshape(-1, 1).astype(jnp.float32), b.astype(jnp.float32))
    return prep


# ----------------------------------------------------------------------------
# Forward pass (module-facing I/O is NCHW, internal layout NHWC bf16).
# ----------------------------------------------------------------------------
def wrapped_model_forward(prep, x_nchw):
    x = jnp.transpose(x_nchw, (0, 2, 3, 1)).astype(ACT_DTYPE)        # NCHW->NHWC

    # encoder
    c1 = conv2d(x,  *prep["conv1"],  ksize=7, stride=2, padding=3)   # H/2, 16
    c2 = conv2d(c1, *prep["conv2"],  ksize=5, stride=2, padding=2)   # H/4, 32
    c3 = conv2d(c2, *prep["conv3"],  ksize=3, stride=2, padding=1)   # H/8, 64
    c3_1 = conv2d(c3, *prep["conv3_1"], ksize=3, stride=1, padding=1)

    # decoder (skip concats fused into the matmul kernels)
    u2 = conv_transpose2d(c3_1, *prep["upconv2"])                    # H/4, 32
    i2 = conv2d_skip(u2, c2, *prep["iconv2"], ksize=3, stride=1, padding=1)
    u1 = conv_transpose2d(i2, *prep["upconv1"])                      # H/2, 16
    i1 = conv2d_skip(u1, c1, *prep["iconv1"], ksize=3, stride=1, padding=1)

    # pr1 head (Cout=1): kept off the MXU per perf guidance - a 3x3x16->1 head
    # would be >99% padded MXU columns plus a pallas_call launch; a tiny
    # XLA/VPU dot is cheaper. No activation on the disparity prediction.
    w_pr, b_pr = prep["pr1"]
    patches, oh, ow = _im2col(i1, 3, 3, 1, 1)
    pr = jnp.dot(patches, w_pr) + b_pr                               # f32
    pr = pr.reshape(i1.shape[0], oh, ow, 1)
    return jnp.transpose(pr, (0, 3, 1, 2))                           # NHWC->NCHW


if __name__ == "__main__":
    key = jax.random.PRNGKey(0)
    k_param, k_input = jax.random.split(key)

    params = init_params(k_param)
    prep = prepare_params(params)   # one-time weight prep, outside the jit

    # stereo pair concatenated along channels: (N=2, C=6, H=32, W=32)
    x = jax.random.normal(k_input, (2, 6, 32, 32), jnp.float32)

    fwd = jax.jit(wrapped_model_forward)
    out = fwd(prep, x)
    jax.block_until_ready(out)

    assert out.shape == (2, 1, 16, 16), out.shape
    assert out.dtype == jnp.float32, out.dtype
    assert bool(jnp.all(jnp.isfinite(out)))
    print("KERNEL_OK")
</pallas_src>

<mosaic_0001>
module attributes {stable_mosaic.version = 11 : i64} {
  func.func @_matmul_bias_kernel(%arg0: i32, %arg1: memref<256x294xbf16, #tpu.memory_space<vmem>>, %arg2: memref<294x16xbf16, #tpu.memory_space<vmem>>, %arg3: memref<1x16xf32, #tpu.memory_space<vmem>>, %arg4: memref<256x16xbf16, #tpu.memory_space<vmem>>) attributes {dimension_semantics = [#tpu.dimension_semantics<parallel>], iteration_bounds = array<i64: 2>, scalar_prefetch = 0 : i64, scratch_operands = 0 : i64, tpu.core_type = #tpu.core_type<tc>, window_params = [{transform_indices = @transform_0, window_bounds = array<i64: 256, 294>}, {pipeline_mode = #tpu.pipeline_mode<synchronous>, transform_indices = @transform_1, window_bounds = array<i64: 294, 16>}, {pipeline_mode = #tpu.pipeline_mode<synchronous>, transform_indices = @transform_2, window_bounds = array<i64: 1, 16>}, {transform_indices = @transform_3, window_bounds = array<i64: 256, 16>}]} {
    %c0 = arith.constant 0 : index
    %c0_0 = arith.constant 0 : index
    %0 = vector.load %arg1[%c0, %c0_0] : memref<256x294xbf16, #tpu.memory_space<vmem>>, vector<256x294xbf16>
    %c0_1 = arith.constant 0 : index
    %c0_2 = arith.constant 0 : index
    %1 = vector.load %arg2[%c0_1, %c0_2] : memref<294x16xbf16, #tpu.memory_space<vmem>>, vector<294x16xbf16>
    %cst = arith.constant dense<0.000000e+00> : vector<256x16xf32>
    %2 = tpu.matmul %0, %1, %cst {dimension_numbers = #tpu.dot_dimension_numbers<[1], [0], [0], [1], [0, 0, 1, 1], [], []>} : vector<256x294xbf16>, vector<294x16xbf16>, vector<256x16xf32> -> vector<256x16xf32>
    %c0_3 = arith.constant 0 : index
    %c0_4 = arith.constant 0 : index
    %3 = vector.load %arg3[%c0_3, %c0_4] : memref<1x16xf32, #tpu.memory_space<vmem>>, vector<1x16xf32>
    %4 = vector.broadcast %3 : vector<1x16xf32> to vector<256x16xf32>
    %5 = arith.addf %2, %4 : vector<256x16xf32>
    %cst_5 = arith.constant 0.000000e+00 : f32
    %6 = vector.broadcast %cst_5 : f32 to vector<256x16xf32>
    %7 = arith.maximumf %5, %6 : vector<256x16xf32>
    %8 = arith.truncf %7 : vector<256x16xf32> to vector<256x16xbf16>
    %c0_6 = arith.constant 0 : index
    %c0_7 = arith.constant 0 : index
    %9 = vector.load %arg4[%c0_6, %c0_7] : memref<256x16xbf16, #tpu.memory_space<vmem>>, vector<256x16xbf16>
    tpu.vector_store %arg4[%c0_6, %c0_7], %8 {strides = array<i32>} : memref<256x16xbf16, #tpu.memory_space<vmem>>, vector<256x16xbf16>,
    return
  }
  func.func @transform_0(%arg0: i32) -> (i32, i32) {
    %c0_i32 = arith.constant 0 : i32
    %c0_i32_0 = arith.constant 0 : i32
    return %arg0, %c0_i32 : i32, i32
  }
  func.func @transform_1(%arg0: i32) -> (i32, i32) {
    %c0_i32 = arith.constant 0 : i32
    %c0_i32_0 = arith.constant 0 : i32
    %c0_i32_1 = arith.constant 0 : i32
    return %c0_i32, %c0_i32_0 : i32, i32
  }
  func.func @transform_2(%arg0: i32) -> (i32, i32) {
    %c0_i32 = arith.constant 0 : i32
    %c0_i32_0 = arith.constant 0 : i32
    %c0_i32_1 = arith.constant 0 : i32
    return %c0_i32, %c0_i32_0 : i32, i32
  }
  func.func @transform_3(%arg0: i32) -> (i32, i32) {
    %c0_i32 = arith.constant 0 : i32
    %c0_i32_0 = arith.constant 0 : i32
    return %arg0, %c0_i32 : i32, i32
  }
}

module attributes {stable_mosaic.version = 11 : i64} {
  func.func @_matmul_bias_kernel(%arg0: i32, %arg1: memref<128x400xbf16, #tpu.memory_space<vmem>>, %arg2: memref<400x32xbf16, #tpu.memory_space<vmem>>, %arg3: memref<1x32xf32, #tpu.memory_space<vmem>>, %arg4: memref<128x32xbf16, #tpu.memory_space<vmem>>) attributes {dimension_semantics = [#tpu.dimension_semantics<parallel>], iteration_bounds = array<i64: 1>, scalar_prefetch = 0 : i64, scratch_operands = 0 : i64, tpu.core_type = #tpu.core_type<tc>, window_params = [{transform_indices = @transform_0, window_bounds = array<i64: 128, 400>}, {pipeline_mode = #tpu.pipeline_mode<synchronous>, transform_indices = @transform_1, window_bounds = array<i64: 400, 32>}, {pipeline_mode = #tpu.pipeline_mode<synchronous>, transform_indices = @transform_2, window_bounds = array<i64: 1, 32>}, {transform_indices = @transform_3, window_bounds = array<i64: 128, 32>}]} {
    %c0 = arith.constant 0 : index
    %c0_0 = arith.constant 0 : index
    %0 = vector.load %arg1[%c0, %c0_0] : memref<128x400xbf16, #tpu.memory_space<vmem>>, vector<128x400xbf16>
    %c0_1 = arith.constant 0 : index
    %c0_2 = arith.constant 0 : index
    %1 = vector.load %arg2[%c0_1, %c0_2] : memref<400x32xbf16, #tpu.memory_space<vmem>>, vector<400x32xbf16>
    %cst = arith.constant dense<0.000000e+00> : vector<128x32xf32>
    %2 = tpu.matmul %0, %1, %cst {dimension_numbers = #tpu.dot_dimension_numbers<[1], [0], [0], [1], [0, 0, 1, 1], [], []>} : vector<128x400xbf16>, vector<400x32xbf16>, vector<128x32xf32> -> vector<128x32xf32>
    %c0_3 = arith.constant 0 : index
    %c0_4 = arith.constant 0 : index
    %3 = vector.load %arg3[%c0_3, %c0_4] : memref<1x32xf32, #tpu.memory_space<vmem>>, vector<1x32xf32>
    %4 = vector.broadcast %3 : vector<1x32xf32> to vector<128x32xf32>
    %5 = arith.addf %2, %4 : vector<128x32xf32>
    %cst_5 = arith.constant 0.000000e+00 : f32
    %6 = vector.broadcast %cst_5 : f32 to vector<128x32xf32>
    %7 = arith.maximumf %5, %6 : vector<128x32xf32>
    %8 = arith.truncf %7 : vector<128x32xf32> to vector<128x32xbf16>
    %c0_6 = arith.constant 0 : index
    %c0_7 = arith.constant 0 : index
    %9 = vector.load %arg4[%c0_6, %c0_7] : memref<128x32xbf16, #tpu.memory_space<vmem>>, vector<128x32xbf16>
    tpu.vector_store %arg4[%c0_6, %c0_7], %8 {strides = array<i32>} : memref<128x32xbf16, #tpu.memory_space<vmem>>, vector<128x32xbf16>,
    return
  }
  func.func @transform_0(%arg0: i32) -> (i32, i32) {
    %c0_i32 = arith.constant 0 : i32
    %c0_i32_0 = arith.constant 0 : i32
    return %arg0, %c0_i32 : i32, i32
  }
  func.func @transform_1(%arg0: i32) -> (i32, i32) {
    %c0_i32 = arith.constant 0 : i32
    %c0_i32_0 = arith.constant 0 : i32
    %c0_i32_1 = arith.constant 0 : i32
    return %c0_i32, %c0_i32_0 : i32, i32
  }
  func.func @transform_2(%arg0: i32) -> (i32, i32) {
    %c0_i32 = arith.constant 0 : i32
    %c0_i32_0 = arith.constant 0 : i32
    %c0_i32_1 = arith.constant 0 : i32
    return %c0_i32, %c0_i32_0 : i32, i32
  }
  func.func @transform_3(%arg0: i32) -> (i32, i32) {
    %c0_i32 = arith.constant 0 : i32
    %c0_i32_0 = arith.constant 0 : i32
    return %arg0, %c0_i32 : i32, i32
  }
}

module attributes {stable_mosaic.version = 11 : i64} {
  func.func @_matmul_bias_kernel(%arg0: i32, %arg1: memref<32x288xbf16, #tpu.memory_space<vmem>>, %arg2: memref<288x64xbf16, #tpu.memory_space<vmem>>, %arg3: memref<1x64xf32, #tpu.memory_space<vmem>>, %arg4: memref<32x64xbf16, #tpu.memory_space<vmem>>) attributes {dimension_semantics = [#tpu.dimension_semantics<parallel>], iteration_bounds = array<i64: 1>, scalar_prefetch = 0 : i64, scratch_operands = 0 : i64, tpu.core_type = #tpu.core_type<tc>, window_params = [{transform_indices = @transform_0, window_bounds = array<i64: 32, 288>}, {pipeline_mode = #tpu.pipeline_mode<synchronous>, transform_indices = @transform_1, window_bounds = array<i64: 288, 64>}, {pipeline_mode = #tpu.pipeline_mode<synchronous>, transform_indices = @transform_2, window_bounds = array<i64: 1, 64>}, {transform_indices = @transform_3, window_bounds = array<i64: 32, 64>}]} {
    %c0 = arith.constant 0 : index
    %c0_0 = arith.constant 0 : index
    %0 = vector.load %arg1[%c0, %c0_0] : memref<32x288xbf16, #tpu.memory_space<vmem>>, vector<32x288xbf16>
    %c0_1 = arith.constant 0 : index
    %c0_2 = arith.constant 0 : index
    %1 = vector.load %arg2[%c0_1, %c0_2] : memref<288x64xbf16, #tpu.memory_space<vmem>>, vector<288x64xbf16>
    %cst = arith.constant dense<0.000000e+00> : vector<32x64xf32>
    %2 = tpu.matmul %0, %1, %cst {dimension_numbers = #tpu.dot_dimension_numbers<[1], [0], [0], [1], [0, 0, 1, 1], [], []>} : vector<32x288xbf16>, vector<288x64xbf16>, vector<32x64xf32> -> vector<32x64xf32>
    %c0_3 = arith.constant 0 : index
    %c0_4 = arith.constant 0 : index
    %3 = vector.load %arg3[%c0_3, %c0_4] : memref<1x64xf32, #tpu.memory_space<vmem>>, vector<1x64xf32>
    %4 = vector.broadcast %3 : vector<1x64xf32> to vector<32x64xf32>
    %5 = arith.addf %2, %4 : vector<32x64xf32>
    %cst_5 = arith.constant 0.000000e+00 : f32
    %6 = vector.broadcast %cst_5 : f32 to vector<32x64xf32>
    %7 = arith.maximumf %5, %6 : vector<32x64xf32>
    %8 = arith.truncf %7 : vector<32x64xf32> to vector<32x64xbf16>
    %c0_6 = arith.constant 0 : index
    %c0_7 = arith.constant 0 : index
    %9 = vector.load %arg4[%c0_6, %c0_7] : memref<32x64xbf16, #tpu.memory_space<vmem>>, vector<32x64xbf16>
    tpu.vector_store %arg4[%c0_6, %c0_7], %8 {strides = array<i32>} : memref<32x64xbf16, #tpu.memory_space<vmem>>, vector<32x64xbf16>,
    return
  }
  func.func @transform_0(%arg0: i32) -> (i32, i32) {
    %c0_i32 = arith.constant 0 : i32
    %c0_i32_0 = arith.constant 0 : i32
    return %arg0, %c0_i32 : i32, i32
  }
  func.func @transform_1(%arg0: i32) -> (i32, i32) {
    %c0_i32 = arith.constant 0 : i32
    %c0_i32_0 = arith.constant 0 : i32
    %c0_i32_1 = arith.constant 0 : i32
    return %c0_i32, %c0_i32_0 : i32, i32
  }
  func.func @transform_2(%arg0: i32) -> (i32, i32) {
    %c0_i32 = arith.constant 0 : i32
    %c0_i32_0 = arith.constant 0 : i32
    %c0_i32_1 = arith.constant 0 : i32
    return %c0_i32, %c0_i32_0 : i32, i32
  }
  func.func @transform_3(%arg0: i32) -> (i32, i32) {
    %c0_i32 = arith.constant 0 : i32
    %c0_i32_0 = arith.constant 0 : i32
    return %arg0, %c0_i32 : i32, i32
  }
}

module attributes {stable_mosaic.version = 11 : i64} {
  func.func @_matmul_bias_kernel(%arg0: i32, %arg1: memref<32x576xbf16, #tpu.memory_space<vmem>>, %arg2: memref<576x64xbf16, #tpu.memory_space<vmem>>, %arg3: memref<1x64xf32, #tpu.memory_space<vmem>>, %arg4: memref<32x64xbf16, #tpu.memory_space<vmem>>) attributes {dimension_semantics = [#tpu.dimension_semantics<parallel>], iteration_bounds = array<i64: 1>, scalar_prefetch = 0 : i64, scratch_operands = 0 : i64, tpu.core_type = #tpu.core_type<tc>, window_params = [{transform_indices = @transform_0, window_bounds = array<i64: 32, 576>}, {pipeline_mode = #tpu.pipeline_mode<synchronous>, transform_indices = @transform_1, window_bounds = array<i64: 576, 64>}, {pipeline_mode = #tpu.pipeline_mode<synchronous>, transform_indices = @transform_2, window_bounds = array<i64: 1, 64>}, {transform_indices = @transform_3, window_bounds = array<i64: 32, 64>}]} {
    %c0 = arith.constant 0 : index
    %c0_0 = arith.constant 0 : index
    %0 = vector.load %arg1[%c0, %c0_0] : memref<32x576xbf16, #tpu.memory_space<vmem>>, vector<32x576xbf16>
    %c0_1 = arith.constant 0 : index
    %c0_2 = arith.constant 0 : index
    %1 = vector.load %arg2[%c0_1, %c0_2] : memref<576x64xbf16, #tpu.memory_space<vmem>>, vector<576x64xbf16>
    %cst = arith.constant dense<0.000000e+00> : vector<32x64xf32>
    %2 = tpu.matmul %0, %1, %cst {dimension_numbers = #tpu.dot_dimension_numbers<[1], [0], [0], [1], [0, 0, 1, 1], [], []>} : vector<32x576xbf16>, vector<576x64xbf16>, vector<32x64xf32> -> vector<32x64xf32>
    %c0_3 = arith.constant 0 : index
    %c0_4 = arith.constant 0 : index
    %3 = vector.load %arg3[%c0_3, %c0_4] : memref<1x64xf32, #tpu.memory_space<vmem>>, vector<1x64xf32>
    %4 = vector.broadcast %3 : vector<1x64xf32> to vector<32x64xf32>
    %5 = arith.addf %2, %4 : vector<32x64xf32>
    %cst_5 = arith.constant 0.000000e+00 : f32
    %6 = vector.broadcast %cst_5 : f32 to vector<32x64xf32>
    %7 = arith.maximumf %5, %6 : vector<32x64xf32>
    %8 = arith.truncf %7 : vector<32x64xf32> to vector<32x64xbf16>
    %c0_6 = arith.constant 0 : index
    %c0_7 = arith.constant 0 : index
    %9 = vector.load %arg4[%c0_6, %c0_7] : memref<32x64xbf16, #tpu.memory_space<vmem>>, vector<32x64xbf16>
    tpu.vector_store %arg4[%c0_6, %c0_7], %8 {strides = array<i32>} : memref<32x64xbf16, #tpu.memory_space<vmem>>, vector<32x64xbf16>,
    return
  }
  func.func @transform_0(%arg0: i32) -> (i32, i32) {
    %c0_i32 = arith.constant 0 : i32
    %c0_i32_0 = arith.constant 0 : i32
    return %arg0, %c0_i32 : i32, i32
  }
  func.func @transform_1(%arg0: i32) -> (i32, i32) {
    %c0_i32 = arith.constant 0 : i32
    %c0_i32_0 = arith.constant 0 : i32
    %c0_i32_1 = arith.constant 0 : i32
    return %c0_i32, %c0_i32_0 : i32, i32
  }
  func.func @transform_2(%arg0: i32) -> (i32, i32) {
    %c0_i32 = arith.constant 0 : i32
    %c0_i32_0 = arith.constant 0 : i32
    %c0_i32_1 = arith.constant 0 : i32
    return %c0_i32, %c0_i32_0 : i32, i32
  }
  func.func @transform_3(%arg0: i32) -> (i32, i32) {
    %c0_i32 = arith.constant 0 : i32
    %c0_i32_0 = arith.constant 0 : i32
    return %arg0, %c0_i32 : i32, i32
  }
}

module attributes {stable_mosaic.version = 11 : i64} {
  func.func @_matmul_bias_phase_kernel(%arg0: i32, %arg1: i32, %arg2: memref<1x32x256xbf16, #tpu.memory_space<vmem>>, %arg3: memref<1x256x32xbf16, #tpu.memory_space<vmem>>, %arg4: memref<1x32xf32, #tpu.memory_space<vmem>>, %arg5: memref<1x32x32xbf16, #tpu.memory_space<vmem>>) attributes {dimension_semantics = [#tpu.dimension_semantics<parallel>, #tpu.dimension_semantics<parallel>], iteration_bounds = array<i64: 4, 1>, scalar_prefetch = 0 : i64, scratch_operands = 0 : i64, tpu.core_type = #tpu.core_type<tc>, window_params = [{transform_indices = @transform_0, window_bounds = array<i64: 1, 32, 256>}, {transform_indices = @transform_1, window_bounds = array<i64: 1, 256, 32>}, {pipeline_mode = #tpu.pipeline_mode<synchronous>, transform_indices = @transform_2, window_bounds = array<i64: 1, 32>}, {transform_indices = @transform_3, window_bounds = array<i64: 1, 32, 32>}]} {
    %c0 = arith.constant 0 : index
    %c0_0 = arith.constant 0 : index
    %c0_1 = arith.constant 0 : index
    %0 = vector.load %arg2[%c0, %c0_0, %c0_1] : memref<1x32x256xbf16, #tpu.memory_space<vmem>>, vector<1x32x256xbf16>
    %1 = vector.shape_cast %0 : vector<1x32x256xbf16> to vector<32x256xbf16>
    %c0_2 = arith.constant 0 : index
    %c0_3 = arith.constant 0 : index
    %c0_4 = arith.constant 0 : index
    %2 = vector.load %arg3[%c0_2, %c0_3, %c0_4] : memref<1x256x32xbf16, #tpu.memory_space<vmem>>, vector<1x256x32xbf16>
    %3 = vector.shape_cast %2 : vector<1x256x32xbf16> to vector<256x32xbf16>
    %cst = arith.constant dense<0.000000e+00> : vector<32x32xf32>
    %4 = tpu.matmul %1, %3, %cst {dimension_numbers = #tpu.dot_dimension_numbers<[1], [0], [0], [1], [0, 0, 1, 1], [], []>} : vector<32x256xbf16>, vector<256x32xbf16>, vector<32x32xf32> -> vector<32x32xf32>
    %c0_5 = arith.constant 0 : index
    %c0_6 = arith.constant 0 : index
    %5 = vector.load %arg4[%c0_5, %c0_6] : memref<1x32xf32, #tpu.memory_space<vmem>>, vector<1x32xf32>
    %6 = vector.broadcast %5 : vector<1x32xf32> to vector<32x32xf32>
    %7 = arith.addf %4, %6 : vector<32x32xf32>
    %cst_7 = arith.constant 0.000000e+00 : f32
    %8 = vector.broadcast %cst_7 : f32 to vector<32x32xf32>
    %9 = arith.maximumf %7, %8 : vector<32x32xf32>
    %10 = arith.truncf %9 : vector<32x32xf32> to vector<32x32xbf16>
    %c0_8 = arith.constant 0 : index
    %c0_9 = arith.constant 0 : index
    %c0_10 = arith.constant 0 : index
    %11 = vector.load %arg5[%c0_8, %c0_9, %c0_10] : memref<1x32x32xbf16, #tpu.memory_space<vmem>>, vector<1x32x32xbf16>
    %12 = vector.shape_cast %11 : vector<1x32x32xbf16> to vector<32x32xbf16>
    %13 = vector.shape_cast %10 : vector<32x32xbf16> to vector<1x32x32xbf16>
    tpu.vector_store %arg5[%c0_8, %c0_9, %c0_10], %13 {strides = array<i32>} : memref<1x32x32xbf16, #tpu.memory_space<vmem>>, vector<1x32x32xbf16>,
    return
  }
  func.func @transform_0(%arg0: i32, %arg1: i32) -> (i32, i32, i32) {
    %c0_i32 = arith.constant 0 : i32
    %c0_i32_0 = arith.constant 0 : i32
    return %arg0, %arg1, %c0_i32 : i32, i32, i32
  }
  func.func @transform_1(%arg0: i32, %arg1: i32) -> (i32, i32, i32) {
    %c0_i32 = arith.constant 0 : i32
    %c0_i32_0 = arith.constant 0 : i32
    %c0_i32_1 = arith.constant 0 : i32
    return %arg0, %c0_i32, %c0_i32_0 : i32, i32, i32
  }
  func.func @transform_2(%arg0: i32, %arg1: i32) -> (i32, i32) {
    %c0_i32 = arith.constant 0 : i32
    %c0_i32_0 = arith.constant 0 : i32
    %c0_i32_1 = arith.constant 0 : i32
    return %c0_i32, %c0_i32_0 : i32, i32
  }
  func.func @transform_3(%arg0: i32, %arg1: i32) -> (i32, i32, i32) {
    %c0_i32 = arith.constant 0 : i32
    %c0_i32_0 = arith.constant 0 : i32
    return %arg0, %arg1, %c0_i32 : i32, i32, i32
  }
}

module attributes {stable_mosaic.version = 11 : i64} {
  func.func @_matmul2_bias_kernel(%arg0: i32, %arg1: memref<128x288xbf16, #tpu.memory_space<vmem>>, %arg2: memref<128x288xbf16, #tpu.memory_space<vmem>>, %arg3: memref<288x32xbf16, #tpu.memory_space<vmem>>, %arg4: memref<288x32xbf16, #tpu.memory_space<vmem>>, %arg5: memref<1x32xf32, #tpu.memory_space<vmem>>, %arg6: memref<128x32xbf16, #tpu.memory_space<vmem>>) attributes {dimension_semantics = [#tpu.dimension_semantics<parallel>], iteration_bounds = array<i64: 1>, scalar_prefetch = 0 : i64, scratch_operands = 0 : i64, tpu.core_type = #tpu.core_type<tc>, window_params = [{transform_indices = @transform_0, window_bounds = array<i64: 128, 288>}, {transform_indices = @transform_1, window_bounds = array<i64: 128, 288>}, {pipeline_mode = #tpu.pipeline_mode<synchronous>, transform_indices = @transform_2, window_bounds = array<i64: 288, 32>}, {pipeline_mode = #tpu.pipeline_mode<synchronous>, transform_indices = @transform_3, window_bounds = array<i64: 288, 32>}, {pipeline_mode = #tpu.pipeline_mode<synchronous>, transform_indices = @transform_4, window_bounds = array<i64: 1, 32>}, {transform_indices = @transform_5, window_bounds = array<i64: 128, 32>}]} {
    %c0 = arith.constant 0 : index
    %c0_0 = arith.constant 0 : index
    %0 = vector.load %arg1[%c0, %c0_0] : memref<128x288xbf16, #tpu.memory_space<vmem>>, vector<128x288xbf16>
    %c0_1 = arith.constant 0 : index
    %c0_2 = arith.constant 0 : index
    %1 = vector.load %arg3[%c0_1, %c0_2] : memref<288x32xbf16, #tpu.memory_space<vmem>>, vector<288x32xbf16>
    %cst = arith.constant dense<0.000000e+00> : vector<128x32xf32>
    %2 = tpu.matmul %0, %1, %cst {dimension_numbers = #tpu.dot_dimension_numbers<[1], [0], [0], [1], [0, 0, 1, 1], [], []>} : vector<128x288xbf16>, vector<288x32xbf16>, vector<128x32xf32> -> vector<128x32xf32>
    %c0_3 = arith.constant 0 : index
    %c0_4 = arith.constant 0 : index
    %3 = vector.load %arg2[%c0_3, %c0_4] : memref<128x288xbf16, #tpu.memory_space<vmem>>, vector<128x288xbf16>
    %c0_5 = arith.constant 0 : index
    %c0_6 = arith.constant 0 : index
    %4 = vector.load %arg4[%c0_5, %c0_6] : memref<288x32xbf16, #tpu.memory_space<vmem>>, vector<288x32xbf16>
    %cst_7 = arith.constant dense<0.000000e+00> : vector<128x32xf32>
    %5 = tpu.matmul %3, %4, %cst_7 {dimension_numbers = #tpu.dot_dimension_numbers<[1], [0], [0], [1], [0, 0, 1, 1], [], []>} : vector<128x288xbf16>, vector<288x32xbf16>, vector<128x32xf32> -> vector<128x32xf32>
    %6 = arith.addf %2, %5 : vector<128x32xf32>
    %c0_8 = arith.constant 0 : index
    %c0_9 = arith.constant 0 : index
    %7 = vector.load %arg5[%c0_8, %c0_9] : memref<1x32xf32, #tpu.memory_space<vmem>>, vector<1x32xf32>
    %8 = vector.broadcast %7 : vector<1x32xf32> to vector<128x32xf32>
    %9 = arith.addf %6, %8 : vector<128x32xf32>
    %cst_10 = arith.constant 0.000000e+00 : f32
    %10 = vector.broadcast %cst_10 : f32 to vector<128x32xf32>
    %11 = arith.maximumf %9, %10 : vector<128x32xf32>
    %12 = arith.truncf %11 : vector<128x32xf32> to vector<128x32xbf16>
    %c0_11 = arith.constant 0 : index
    %c0_12 = arith.constant 0 : index
    %13 = vector.load %arg6[%c0_11, %c0_12] : memref<128x32xbf16, #tpu.memory_space<vmem>>, vector<128x32xbf16>
    tpu.vector_store %arg6[%c0_11, %c0_12], %12 {strides = array<i32>} : memref<128x32xbf16, #tpu.memory_space<vmem>>, vector<128x32xbf16>,
    return
  }
  func.func @transform_0(%arg0: i32) -> (i32, i32) {
    %c0_i32 = arith.constant 0 : i32
    %c0_i32_0 = arith.constant 0 : i32
    return %arg0, %c0_i32 : i32, i32
  }
  func.func @transform_1(%arg0: i32) -> (i32, i32) {
    %c0_i32 = arith.constant 0 : i32
    %c0_i32_0 = arith.constant 0 : i32
    return %arg0, %c0_i32 : i32, i32
  }
  func.func @transform_2(%arg0: i32) -> (i32, i32) {
    %c0_i32 = arith.constant 0 : i32
    %c0_i32_0 = arith.constant 0 : i32
    %c0_i32_1 = arith.constant 0 : i32
    return %c0_i32, %c0_i32_0 : i32, i32
  }
  func.func @transform_3(%arg0: i32) -> (i32, i32) {
    %c0_i32 = arith.constant 0 : i32
    %c0_i32_0 = arith.constant 0 : i32
    %c0_i32_1 = arith.constant 0 : i32
    return %c0_i32, %c0_i32_0 : i32, i32
  }
  func.func @transform_4(%arg0: i32) -> (i32, i32) {
    %c0_i32 = arith.constant 0 : i32
    %c0_i32_0 = arith.constant 0 : i32
    %c0_i32_1 = arith.constant 0 : i32
    return %c0_i32, %c0_i32_0 : i32, i32
  }
  func.func @transform_5(%arg0: i32) -> (i32, i32) {
    %c0_i32 = arith.constant 0 : i32
    %c0_i32_0 = arith.constant 0 : i32
    return %arg0, %c0_i32 : i32, i32
  }
}

module attributes {stable_mosaic.version = 11 : i64} {
  func.func @_matmul_bias_phase_kernel(%arg0: i32, %arg1: i32, %arg2: memref<1x128x128xbf16, #tpu.memory_space<vmem>>, %arg3: memref<1x128x16xbf16, #tpu.memory_space<vmem>>, %arg4: memref<1x16xf32, #tpu.memory_space<vmem>>, %arg5: memref<1x128x16xbf16, #tpu.memory_space<vmem>>) attributes {dimension_semantics = [#tpu.dimension_semantics<parallel>, #tpu.dimension_semantics<parallel>], iteration_bounds = array<i64: 4, 1>, scalar_prefetch = 0 : i64, scratch_operands = 0 : i64, tpu.core_type = #tpu.core_type<tc>, window_params = [{transform_indices = @transform_0, window_bounds = array<i64: 1, 128, 128>}, {transform_indices = @transform_1, window_bounds = array<i64: 1, 128, 16>}, {pipeline_mode = #tpu.pipeline_mode<synchronous>, transform_indices = @transform_2, window_bounds = array<i64: 1, 16>}, {transform_indices = @transform_3, window_bounds = array<i64: 1, 128, 16>}]} {
    %c0 = arith.constant 0 : index
    %c0_0 = arith.constant 0 : index
    %c0_1 = arith.constant 0 : index
    %0 = vector.load %arg2[%c0, %c0_0, %c0_1] : memref<1x128x128xbf16, #tpu.memory_space<vmem>>, vector<1x128x128xbf16>
    %1 = vector.shape_cast %0 : vector<1x128x128xbf16> to vector<128x128xbf16>
    %c0_2 = arith.constant 0 : index
    %c0_3 = arith.constant 0 : index
    %c0_4 = arith.constant 0 : index
    %2 = vector.load %arg3[%c0_2, %c0_3, %c0_4] : memref<1x128x16xbf16, #tpu.memory_space<vmem>>, vector<1x128x16xbf16>
    %3 = vector.shape_cast %2 : vector<1x128x16xbf16> to vector<128x16xbf16>
    %cst = arith.constant dense<0.000000e+00> : vector<128x16xf32>
    %4 = tpu.matmul %1, %3, %cst {dimension_numbers = #tpu.dot_dimension_numbers<[1], [0], [0], [1], [0, 0, 1, 1], [], []>} : vector<128x128xbf16>, vector<128x16xbf16>, vector<128x16xf32> -> vector<128x16xf32>
    %c0_5 = arith.constant 0 : index
    %c0_6 = arith.constant 0 : index
    %5 = vector.load %arg4[%c0_5, %c0_6] : memref<1x16xf32, #tpu.memory_space<vmem>>, vector<1x16xf32>
    %6 = vector.broadcast %5 : vector<1x16xf32> to vector<128x16xf32>
    %7 = arith.addf %4, %6 : vector<128x16xf32>
    %cst_7 = arith.constant 0.000000e+00 : f32
    %8 = vector.broadcast %cst_7 : f32 to vector<128x16xf32>
    %9 = arith.maximumf %7, %8 : vector<128x16xf32>
    %10 = arith.truncf %9 : vector<128x16xf32> to vector<128x16xbf16>
    %c0_8 = arith.constant 0 : index
    %c0_9 = arith.constant 0 : index
    %c0_10 = arith.constant 0 : index
    %11 = vector.load %arg5[%c0_8, %c0_9, %c0_10] : memref<1x128x16xbf16, #tpu.memory_space<vmem>>, vector<1x128x16xbf16>
    %12 = vector.shape_cast %11 : vector<1x128x16xbf16> to vector<128x16xbf16>
    %13 = vector.shape_cast %10 : vector<128x16xbf16> to vector<1x128x16xbf16>
    tpu.vector_store %arg5[%c0_8, %c0_9, %c0_10], %13 {strides = array<i32>} : memref<1x128x16xbf16, #tpu.memory_space<vmem>>, vector<1x128x16xbf16>,
    return
  }
  func.func @transform_0(%arg0: i32, %arg1: i32) -> (i32, i32, i32) {
    %c0_i32 = arith.constant 0 : i32
    %c0_i32_0 = arith.constant 0 : i32
    return %arg0, %arg1, %c0_i32 : i32, i32, i32
  }
  func.func @transform_1(%arg0: i32, %arg1: i32) -> (i32, i32, i32) {
    %c0_i32 = arith.constant 0 : i32
    %c0_i32_0 = arith.constant 0 : i32
    %c0_i32_1 = arith.constant 0 : i32
    return %arg0, %c0_i32, %c0_i32_0 : i32, i32, i32
  }
  func.func @transform_2(%arg0: i32, %arg1: i32) -> (i32, i32) {
    %c0_i32 = arith.constant 0 : i32
    %c0_i32_0 = arith.constant 0 : i32
    %c0_i32_1 = arith.constant 0 : i32
    return %c0_i32, %c0_i32_0 : i32, i32
  }
  func.func @transform_3(%arg0: i32, %arg1: i32) -> (i32, i32, i32) {
    %c0_i32 = arith.constant 0 : i32
    %c0_i32_0 = arith.constant 0 : i32
    return %arg0, %arg1, %c0_i32 : i32, i32, i32
  }
}

module attributes {stable_mosaic.version = 11 : i64} {
  func.func @_matmul2_bias_kernel(%arg0: i32, %arg1: memref<256x144xbf16, #tpu.memory_space<vmem>>, %arg2: memref<256x144xbf16, #tpu.memory_space<vmem>>, %arg3: memref<144x16xbf16, #tpu.memory_space<vmem>>, %arg4: memref<144x16xbf16, #tpu.memory_space<vmem>>, %arg5: memref<1x16xf32, #tpu.memory_space<vmem>>, %arg6: memref<256x16xbf16, #tpu.memory_space<vmem>>) attributes {dimension_semantics = [#tpu.dimension_semantics<parallel>], iteration_bounds = array<i64: 2>, scalar_prefetch = 0 : i64, scratch_operands = 0 : i64, tpu.core_type = #tpu.core_type<tc>, window_params = [{transform_indices = @transform_0, window_bounds = array<i64: 256, 144>}, {transform_indices = @transform_1, window_bounds = array<i64: 256, 144>}, {pipeline_mode = #tpu.pipeline_mode<synchronous>, transform_indices = @transform_2, window_bounds = array<i64: 144, 16>}, {pipeline_mode = #tpu.pipeline_mode<synchronous>, transform_indices = @transform_3, window_bounds = array<i64: 144, 16>}, {pipeline_mode = #tpu.pipeline_mode<synchronous>, transform_indices = @transform_4, window_bounds = array<i64: 1, 16>}, {transform_indices = @transform_5, window_bounds = array<i64: 256, 16>}]} {
    %c0 = arith.constant 0 : index
    %c0_0 = arith.constant 0 : index
    %0 = vector.load %arg1[%c0, %c0_0] : memref<256x144xbf16, #tpu.memory_space<vmem>>, vector<256x144xbf16>
    %c0_1 = arith.constant 0 : index
    %c0_2 = arith.constant 0 : index
    %1 = vector.load %arg3[%c0_1, %c0_2] : memref<144x16xbf16, #tpu.memory_space<vmem>>, vector<144x16xbf16>
    %cst = arith.constant dense<0.000000e+00> : vector<256x16xf32>
    %2 = tpu.matmul %0, %1, %cst {dimension_numbers = #tpu.dot_dimension_numbers<[1], [0], [0], [1], [0, 0, 1, 1], [], []>} : vector<256x144xbf16>, vector<144x16xbf16>, vector<256x16xf32> -> vector<256x16xf32>
    %c0_3 = arith.constant 0 : index
    %c0_4 = arith.constant 0 : index
    %3 = vector.load %arg2[%c0_3, %c0_4] : memref<256x144xbf16, #tpu.memory_space<vmem>>, vector<256x144xbf16>
    %c0_5 = arith.constant 0 : index
    %c0_6 = arith.constant 0 : index
    %4 = vector.load %arg4[%c0_5, %c0_6] : memref<144x16xbf16, #tpu.memory_space<vmem>>, vector<144x16xbf16>
    %cst_7 = arith.constant dense<0.000000e+00> : vector<256x16xf32>
    %5 = tpu.matmul %3, %4, %cst_7 {dimension_numbers = #tpu.dot_dimension_numbers<[1], [0], [0], [1], [0, 0, 1, 1], [], []>} : vector<256x144xbf16>, vector<144x16xbf16>, vector<256x16xf32> -> vector<256x16xf32>
    %6 = arith.addf %2, %5 : vector<256x16xf32>
    %c0_8 = arith.constant 0 : index
    %c0_9 = arith.constant 0 : index
    %7 = vector.load %arg5[%c0_8, %c0_9] : memref<1x16xf32, #tpu.memory_space<vmem>>, vector<1x16xf32>
    %8 = vector.broadcast %7 : vector<1x16xf32> to vector<256x16xf32>
    %9 = arith.addf %6, %8 : vector<256x16xf32>
    %cst_10 = arith.constant 0.000000e+00 : f32
    %10 = vector.broadcast %cst_10 : f32 to vector<256x16xf32>
    %11 = arith.maximumf %9, %10 : vector<256x16xf32>
    %12 = arith.truncf %11 : vector<256x16xf32> to vector<256x16xbf16>
    %c0_11 = arith.constant 0 : index
    %c0_12 = arith.constant 0 : index
    %13 = vector.load %arg6[%c0_11, %c0_12] : memref<256x16xbf16, #tpu.memory_space<vmem>>, vector<256x16xbf16>
    tpu.vector_store %arg6[%c0_11, %c0_12], %12 {strides = array<i32>} : memref<256x16xbf16, #tpu.memory_space<vmem>>, vector<256x16xbf16>,
    return
  }
  func.func @transform_0(%arg0: i32) -> (i32, i32) {
    %c0_i32 = arith.constant 0 : i32
    %c0_i32_0 = arith.constant 0 : i32
    return %arg0, %c0_i32 : i32, i32
  }
  func.func @transform_1(%arg0: i32) -> (i32, i32) {
    %c0_i32 = arith.constant 0 : i32
    %c0_i32_0 = arith.constant 0 : i32
    return %arg0, %c0_i32 : i32, i32
  }
  func.func @transform_2(%arg0: i32) -> (i32, i32) {
    %c0_i32 = arith.constant 0 : i32
    %c0_i32_0 = arith.constant 0 : i32
    %c0_i32_1 = arith.constant 0 : i32
    return %c0_i32, %c0_i32_0 : i32, i32
  }
  func.func @transform_3(%arg0: i32) -> (i32, i32) {
    %c0_i32 = arith.constant 0 : i32
    %c0_i32_0 = arith.constant 0 : i32
    %c0_i32_1 = arith.constant 0 : i32
    return %c0_i32, %c0_i32_0 : i32, i32
  }
  func.func @transform_4(%arg0: i32) -> (i32, i32) {
    %c0_i32 = arith.constant 0 : i32
    %c0_i32_0 = arith.constant 0 : i32
    %c0_i32_1 = arith.constant 0 : i32
    return %c0_i32, %c0_i32_0 : i32, i32
  }
  func.func @transform_5(%arg0: i32) -> (i32, i32) {
    %c0_i32 = arith.constant 0 : i32
    %c0_i32_0 = arith.constant 0 : i32
    return %arg0, %c0_i32 : i32, i32
  }
}

</mosaic_0001>

<llo_original>
// kernel: wrapped_model_forward.8
$region0: #{wrapped_model_forward.8}
  #allocation0 [shape = 'u32[]', space=smem, size = 0x4, offset = 0x4, fixed_abs, tag = 'smem constant byte address 0x4 - core index']
  #allocation1 [shape = 'u32[144,128]{1,0:T(1,128)}', space=vmem, size = 0x12000, scoped, tag = 'internal scratch']
  %s0 = inlined_call_operand.vmem [shape: bf16[512,294], index: 0, kind: input, shape index: {}]
  %s1 = inlined_call_operand.vmem [shape: bf16[294,16], index: 1, kind: input, shape index: {}]
  %s2 = inlined_call_operand.vmem [shape: f32[1,16], index: 2, kind: input, shape index: {}]
  %s3 = inlined_call_operand.vmem [shape: bf16[512,16], index: 3, kind: output, shape index: {}]
  %s4 = sld [smem:[#allocation0]]
  $region45: #{wrapped_model_forward.8} parent=0
    _
  %s6 = ssub.s32 1, %s4
  %s7 = scalar_select 0, %s6, %s4
  loop: start=0, step=1, limit=4
  $region2: #{wrapped_model_forward.8} parent=0 // loop_pre_header
    _
  $region3: #{wrapped_model_forward.8} parent=0 // loop_header
    %s9 = sphi 0, %s13
    %p10 = scmp.ge.s32.totalorder %s9, 4
    %s19 = sphi 0, %s21
    %s22 = sphi 0, %s19
    %s23 = sphi 0, %s22
    %s39 = sphi 0, %s23
    %s43 = sphi 0, %s43
    %s45 = sphi 0, %s43
    %s46 = sphi 0, %s45
    %s60 = sphi 0, %s46
    %s64 = sphi 0, %s64
    %s66 = sphi 0, %s64
    %s67 = sphi 0, %s66
    %s81 = sphi 0, %s67
    %s87 = sphi 0, %s89
    %s90 = sphi 0, %s87
    %s91 = sphi 0, %s90
    %s107 = sphi 0, %s91
  $region4: #{wrapped_model_forward.8} parent=0 // loop_header_branch
    %12 = sbr.rel (%p10) target = $region8
  $region5: #{wrapped_model_forward.8} parent=0 // loop_body
    %s14 = ssub.s32 %s9, 1
    %s15 = ssub.s32 %s9, 2
    %s16 = sadd.s32 %s9, 1
    %s17 = ssub.s32 %s9, %s16
    %p18 = scmp.eq.s32.totalorder %s17, 0
    %s20 = sadd.s32 %s19, 1
    %s21 = scalar_select %p18, %s19, %s20
    %p24 = pneg %p18
    %p25 = scmp.eq.s32.totalorder %s9, 1
    %p26 = por %p24, %p25
    %p27 = scmp.ne.s32.totalorder %s19, %s22
    %p28 = scmp.eq.s32.totalorder %s9, 0
    %p29 = por %p27, %p28
    %p30 = scmp.ne.s32.totalorder %s19, %s22
    %p31 = scmp.eq.s32.totalorder %s14, 1
    %p32 = por %p30, %p31
    %p33 = scmp.ne.s32.totalorder %s22, %s23
    %p34 = scmp.eq.s32.totalorder %s14, 0
    %p35 = por %p33, %p34
    %p36 = scmp.ne.s32.totalorder %s22, %s23
    %p37 = scmp.eq.s32.totalorder %s15, 1
    %p38 = por %p36, %p37
    %p40 = scmp.ne.s32.totalorder %s23, %s39
    %p41 = scmp.eq.s32.totalorder %s15, 0
    %p42 = por %p40, %p41
    %s44 = sadd.s32 %s43, 1
    %p47 = scmp.eq.s32.totalorder %s9, 1
    %p48 = scmp.ne.s32.totalorder %s43, %s45
    %p49 = scmp.eq.s32.totalorder %s9, 0
    %p50 = por %p48, %p49
    %p51 = scmp.ne.s32.totalorder %s43, %s45
    %p52 = scmp.eq.s32.totalorder %s14, 1
    %p53 = por %p51, %p52
    %p54 = scmp.ne.s32.totalorder %s45, %s46
    %p55 = scmp.eq.s32.totalorder %s14, 0
    %p56 = por %p54, %p55
    %p57 = scmp.ne.s32.totalorder %s45, %s46
    %p58 = scmp.eq.s32.totalorder %s15, 1
    %p59 = por %p57, %p58
    %p61 = scmp.ne.s32.totalorder %s46, %s60
    %p62 = scmp.eq.s32.totalorder %s15, 0
    %p63 = por %p61, %p62
    %s65 = sadd.s32 %s64, 1
    %p68 = scmp.eq.s32.totalorder %s9, 1
    %p69 = scmp.ne.s32.totalorder %s64, %s66
    %p70 = scmp.eq.s32.totalorder %s9, 0
    %p71 = por %p69, %p70
    %p72 = scmp.ne.s32.totalorder %s64, %s66
    %p73 = scmp.eq.s32.totalorder %s14, 1
    %p74 = por %p72, %p73
    %p75 = scmp.ne.s32.totalorder %s66, %s67
    %p76 = scmp.eq.s32.totalorder %s14, 0
    %p77 = por %p75, %p76
    %p78 = scmp.ne.s32.totalorder %s66, %s67
    %p79 = scmp.eq.s32.totalorder %s15, 1
    %p80 = por %p78, %p79
    %p82 = scmp.ne.s32.totalorder %s67, %s81
    %p83 = scmp.eq.s32.totalorder %s15, 0
    %p84 = por %p82, %p83
    %s85 = ssub.s32 %s9, %s16
    %p86 = scmp.eq.s32.totalorder %s85, 0
    %s88 = sadd.s32 %s87, 1
    %s89 = scalar_select %p86, %s87, %s88
    %p92 = pneg %p86
    %p93 = scmp.eq.s32.totalorder %s9, 1
    %p94 = por %p92, %p93
    %p95 = scmp.ne.s32.totalorder %s87, %s90
    %p96 = scmp.eq.s32.totalorder %s9, 0
    %p97 = por %p95, %p96
    %p98 = scmp.ne.s32.totalorder %s87, %s90
    %p99 = scmp.eq.s32.totalorder %s14, 1
    %p100 = por %p98, %p99
    %p101 = scmp.ne.s32.totalorder %s90, %s91
    %p102 = scmp.eq.s32.totalorder %s14, 0
    %p103 = por %p101, %p102
    %p104 = scmp.ne.s32.totalorder %s90, %s91
    %p105 = scmp.eq.s32.totalorder %s15, 1
    %p106 = por %p104, %p105
    %p108 = scmp.ne.s32.totalorder %s91, %s107
    %p109 = scmp.eq.s32.totalorder %s15, 0
    %p110 = por %p108, %p109
    %p111 = scmp.le.s32.totalorder 1, %s9
    %p112 = scmp.lt.s32.totalorder %s9, 3
    %p113 = pnand %p111, %p112
    %p114 = pneg %p113
    // Predicated region
    $region9: #{wrapped_model_forward.8} parent=5 // pred_check
      _
    $region10: #{wrapped_model_forward.8} parent=5 // pred_check_branch
      %116 = sbr.rel (%p113) target = $region12
    $region11: #{wrapped_model_forward.8} parent=5 // pred_region
      %s117 = ssub.s32 %s9, 1
      // Predicated region
      $region13: #{wrapped_model_forward.8} parent=11 // pred_check
        %p118 = pneg %p56
      $region14: #{wrapped_model_forward.8} parent=11 // pred_check_branch
        %120 = sbr.rel (%p118) target = $region16
      $region15: #{wrapped_model_forward.8} parent=11 // pred_region
        _
      $region16: #{wrapped_model_forward.8} parent=11 // pred_fallthru
        _
      // Predicated region
      $region17: #{wrapped_model_forward.8} parent=11 // pred_check
        %p121 = pneg %p77
      $region18: #{wrapped_model_forward.8} parent=11 // pred_check_branch
        %123 = sbr.rel (%p121) target = $region20
      $region19: #{wrapped_model_forward.8} parent=11 // pred_region
        _
      $region20: #{wrapped_model_forward.8} parent=11 // pred_fallthru
        _
    $region12: #{wrapped_model_forward.8} parent=5 // pred_fallthru
      _
    %p124 = scmp.lt.s32.totalorder %s9, 2
    // Predicated region
    $region21: #{wrapped_model_forward.8} parent=5 // pred_check
      %p125 = pneg %p124
    $region22: #{wrapped_model_forward.8} parent=5 // pred_check_branch
      %127 = sbr.rel (%p125) target = $region24
    $region23: #{wrapped_model_forward.8} parent=5 // pred_region
      // Predicated region
      $region25: #{wrapped_model_forward.8} parent=23 // pred_check
        %p128 = pneg %p29
      $region26: #{wrapped_model_forward.8} parent=23 // pred_check_branch
        %130 = sbr.rel (%p128) target = $region28
      $region27: #{wrapped_model_forward.8} parent=23 // pred_region
        %s131 = smul.u32 32, %s9
        %p132 = scmp.lt.s32.totalorder %s131, 63
        %s133 = scalar_select %p132, %s131, 63
        %s134 = smul.addr %s133, 3
        %s135 = smul.addr %s134, 4
        %s136 = scalar_lea.vmem %s0, %s135
        %s137 = smul.u32 32, %s9
      $region28: #{wrapped_model_forward.8} parent=23 // pred_fallthru
        _
    $region24: #{wrapped_model_forward.8} parent=5 // pred_fallthru
      _
    %p138 = scmp.le.s32.totalorder 1, %s9
    %p139 = scmp.lt.s32.totalorder %s9, 3
    %p140 = pnand %p138, %p139
    %p141 = pneg %p140
    // Predicated region
    $region29: #{wrapped_model_forward.8} parent=5 // pred_check
      _
    $region30: #{wrapped_model_forward.8} parent=5 // pred_check_branch
      %143 = sbr.rel (%p140) target = $region32
    $region31: #{wrapped_model_forward.8} parent=5 // pred_region
      %s144 = ssub.s32 %s9, 1
      %s145 = smul.u32 32, %s14
      %p146 = scmp.lt.s32.totalorder %s145, 63
      %s147 = scalar_select %p146, %s145, 63
      %s148 = smul.addr %s147, 3
      %s149 = smul.addr %s148, 4
      %s150 = scalar_lea.vmem %s0, %s149
      %p151 = pneg %p35
      %p152 = pneg %p32
      %p153 = pneg %p56
      %p154 = pneg %p53
      %p155 = pneg %p77
      %p156 = pneg %p74
      %p157 = pneg %p103
      %p158 = pneg %p100
      %s159 = smul.u32 32, %s14
      %p160 = scmp.lt.s32.totalorder %s159, 63
      %s161 = scalar_select %p160, %s159, 63
      %s162 = smul.addr %s161, 4
      %s163 = scalar_lea.vmem %s3, %s162
      %s164 = smul.u32 32, %s14
      %p165 = scmp.lt.s32.totalorder %s164, 63
      %s166 = scalar_select %p165, %s164, 63
      %s167 = smul.addr %s166, 3
      %s168 = smul.addr %s167, 4
      %s169 = scalar_lea.vmem %s0, %s168
      %s170 = smul.u32 32, %s14
      %s171 = smul.u32 32, %s14
      %p172 = scmp.lt.s32.totalorder %s171, 63
      %s173 = scalar_select %p172, %s171, 63
      %s174 = smul.addr %s173, 4
      %s175 = scalar_lea.vmem %s3, %s174
      %s176 = smul.u32 32, %s14
      %v178 = vld [vmem:[%s169] sm:$0xff]
      %v179 = vld [vmem:[%s169 + $0x8] sm:$0xf]
      %v180 = vld [vmem:[%s169 + $0xc] sm:$0xff]
      %v181 = vld [vmem:[%s169 + $0x14] sm:$0xf]
      %v182 = vld [vmem:[%s169 + $0x18] sm:$0xff]
      %v183 = vld [vmem:[%s169 + $0x20] sm:$0xf]
      %v184 = vld [vmem:[%s169 + $0x24] sm:$0xff]
      %v185 = vld [vmem:[%s169 + $0x2c] sm:$0xf]
      %v186 = vld [vmem:[%s169 + $0x30] sm:$0xff]
      %v187 = vld [vmem:[%s169 + $0x38] sm:$0xf]
      %v188 = vld [vmem:[%s169 + $0x3c] sm:$0xff]
      %v189 = vld [vmem:[%s169 + $0x44] sm:$0xf]
      %v190 = vld [vmem:[%s169 + $0x48] sm:$0xff]
      %v191 = vld [vmem:[%s169 + $0x50] sm:$0xf]
      %v192 = vld [vmem:[%s169 + $0x54] sm:$0xff]
      %v193 = vld [vmem:[%s169 + $0x5c] sm:$0xf]
      %v194 = vld [vmem:[%s169 + $0x60] sm:$0xff]
      %v195 = vld [vmem:[%s169 + $0x68] sm:$0xf]
      %v196 = vld [vmem:[%s169 + $0x6c] sm:$0xff]
      %v197 = vld [vmem:[%s169 + $0x74] sm:$0xf]
      %v198 = vld [vmem:[%s169 + $0x78] sm:$0xff]
      %v199 = vld [vmem:[%s169 + $0x80] sm:$0xf]
      %v200 = vld [vmem:[%s169 + $0x84] sm:$0xff]
      %v201 = vld [vmem:[%s169 + $0x8c] sm:$0xf]
      %v202 = vld [vmem:[%s169 + $0x90] sm:$0xff]
      %v203 = vld [vmem:[%s169 + $0x98] sm:$0xf]
      %v204 = vld [vmem:[%s169 + $0x9c] sm:$0xff]
      %v205 = vld [vmem:[%s169 + $0xa4] sm:$0xf]
      %v206 = vld [vmem:[%s169 + $0xa8] sm:$0xff]
      %v207 = vld [vmem:[%s169 + $0xb0] sm:$0xf]
      %v208 = vld [vmem:[%s169 + $0xb4] sm:$0xff]
      %v209 = vld [vmem:[%s169 + $0xbc] sm:$0xf]
      %v210 = vld [vmem:[%s169 + $0xc0] sm:$0xff]
      %v211 = vld [vmem:[%s169 + $0xc8] sm:$0xf]
      %v212 = vld [vmem:[%s169 + $0xcc] sm:$0xff]
      %v213 = vld [vmem:[%s169 + $0xd4] sm:$0xf]
      %v214 = vld [vmem:[%s169 + $0xd8] sm:$0xff]
      %v215 = vld [vmem:[%s169 + $0xe0] sm:$0xf]
      %v216 = vld [vmem:[%s169 + $0xe4] sm:$0xff]
      %v217 = vld [vmem:[%s169 + $0xec] sm:$0xf]
      %v218 = vld [vmem:[%s169 + $0xf0] sm:$0xff]
      %v219 = vld [vmem:[%s169 + $0xf8] sm:$0xf]
      %v220 = vld [vmem:[%s169 + $0xfc] sm:$0xff]
      %v221 = vld [vmem:[%s169 + $0x104] sm:$0xf]
      %v222 = vld [vmem:[%s169 + $0x108] sm:$0xff]
      %v223 = vld [vmem:[%s169 + $0x110] sm:$0xf]
      %v224 = vld [vmem:[%s169 + $0x114] sm:$0xff]
      %v225 = vld [vmem:[%s169 + $0x11c] sm:$0xf]
      %v226 = vld [vmem:[%s169 + $0x120] sm:$0xff]
      %v227 = vld [vmem:[%s169 + $0x128] sm:$0xf]
      %v228 = vld [vmem:[%s169 + $0x12c] sm:$0xff]
      %v229 = vld [vmem:[%s169 + $0x134] sm:$0xf]
      %v230 = vld [vmem:[%s169 + $0x138] sm:$0xff]
      %v231 = vld [vmem:[%s169 + $0x140] sm:$0xf]
      %v232 = vld [vmem:[%s169 + $0x144] sm:$0xff]
      %v233 = vld [vmem:[%s169 + $0x14c] sm:$0xf]
      %v234 = vld [vmem:[%s169 + $0x150] sm:$0xff]
      %v235 = vld [vmem:[%s169 + $0x158] sm:$0xf]
      %v236 = vld [vmem:[%s169 + $0x15c] sm:$0xff]
      %v237 = vld [vmem:[%s169 + $0x164] sm:$0xf]
      %v238 = vld [vmem:[%s169 + $0x168] sm:$0xff]
      %v239 = vld [vmem:[%s169 + $0x170] sm:$0xf]
      %v240 = vld [vmem:[%s169 + $0x174] sm:$0xff]
      %v241 = vld [vmem:[%s169 + $0x17c] sm:$0xf]
      %v242 = vld [vmem:[%s1] sm:$0xf]
      %v243 = vld [vmem:[%s1 + $0x4] sm:$0xf]
      %v244 = vld [vmem:[%s1 + $0x8] sm:$0xf]
      %v245 = vld [vmem:[%s1 + $0xc] sm:$0xf]
      %v246 = vld [vmem:[%s1 + $0x10] sm:$0xf]
      %v247 = vld [vmem:[%s1 + $0x14] sm:$0xf]
      %v248 = vld [vmem:[%s1 + $0x18] sm:$0xf]
      %v249 = vld [vmem:[%s1 + $0x1c] sm:$0xf]
      %v250 = vld [vmem:[%s1 + $0x20] sm:$0xf]
      %v251 = vld [vmem:[%s1 + $0x24] sm:$0xf]
      %v252 = vld [vmem:[%s1 + $0x28] sm:$0xf]
      %v253 = vld [vmem:[%s1 + $0x2c] sm:$0xf]
      %v254 = vld [vmem:[%s1 + $0x30] sm:$0xf]
      %v255 = vld [vmem:[%s1 + $0x34] sm:$0xf]
      %v256 = vld [vmem:[%s1 + $0x38] sm:$0xf]
      %v257 = vld [vmem:[%s1 + $0x3c] sm:$0xf]
      %v258 = vld [vmem:[%s1 + $0x40] sm:$0xf]
      %v259 = vld [vmem:[%s1 + $0x44] sm:$0xf]
      %v260 = vld [vmem:[%s1 + $0x48] sm:$0xf]
      %v261 = vld [vmem:[%s1 + $0x4c] sm:$0xf]
      %v262 = vld [vmem:[%s1 + $0x50] sm:$0xf]
      %v263 = vld [vmem:[%s1 + $0x54] sm:$0xf]
      %v264 = vld [vmem:[%s1 + $0x58] sm:$0xf]
      %v265 = vld [vmem:[%s1 + $0x5c] sm:$0xf]
      %v266 = vld [vmem:[%s1 + $0x60] sm:$0xf]
      %v267 = vld [vmem:[%s1 + $0x64] sm:$0xf]
      %v268 = vld [vmem:[%s1 + $0x68] sm:$0xf]
      %v269 = vld [vmem:[%s1 + $0x6c] sm:$0xf]
      %v270 = vld [vmem:[%s1 + $0x70] sm:$0xf]
      %v271 = vld [vmem:[%s1 + $0x74] sm:$0xf]
      %v272 = vld [vmem:[%s1 + $0x78] sm:$0xf]
      %v273 = vld [vmem:[%s1 + $0x7c] sm:$0xf]
      %v274 = vld [vmem:[%s1 + $0x80] sm:$0xf]
      %v275 = vld [vmem:[%s1 + $0x84] sm:$0xf]
      %v276 = vld [vmem:[%s1 + $0x88] sm:$0xf]
      %v277 = vld [vmem:[%s1 + $0x8c] sm:$0xf]
      %v278 = vld [vmem:[%s1 + $0x90] sm:$0x7]
      %v279 = vld [vmem:[%s2] sm:$0x1]
      %v281 = vlaneseq
      %v282 = vshrl.u32 %v281, 7
      %v283 = vsub.s32 0, %v282
      %v284 = vrot.slane %v279, %v283
      %v350 = vunpack.c.l.b16 %v178
      %v351 = vunpack.c.h.b16 %v178
      %v352 = vunpack.c.l.b16 %v179
      %v353 = vunpack.c.l.b16 %v180
      %v354 = vunpack.c.h.b16 %v180
      %v355 = vunpack.c.l.b16 %v181
      %v356 = vunpack.c.l.b16 %v182
      %v357 = vunpack.c.h.b16 %v182
      %v358 = vunpack.c.l.b16 %v183
      %v359 = vunpack.c.l.b16 %v184
      %v360 = vunpack.c.h.b16 %v184
      %v361 = vunpack.c.l.b16 %v185
      %v362 = vunpack.c.l.b16 %v186
      %v363 = vunpack.c.h.b16 %v186
      %v364 = vunpack.c.l.b16 %v187
      %v365 = vunpack.c.l.b16 %v188
      %v366 = vunpack.c.h.b16 %v188
      %v367 = vunpack.c.l.b16 %v189
      %v368 = vunpack.c.l.b16 %v190
      %v369 = vunpack.c.h.b16 %v190
      %v370 = vunpack.c.l.b16 %v191
      %v371 = vunpack.c.l.b16 %v192
      %v372 = vunpack.c.h.b16 %v192
      %v373 = vunpack.c.l.b16 %v193
      %v374 = vunpack.c.l.b16 %v194
      %v375 = vunpack.c.h.b16 %v194
      %v376 = vunpack.c.l.b16 %v195
      %v377 = vunpack.c.l.b16 %v196
      %v378 = vunpack.c.h.b16 %v196
      %v379 = vunpack.c.l.b16 %v197
      %v380 = vunpack.c.l.b16 %v198
      %v381 = vunpack.c.h.b16 %v198
      %v382 = vunpack.c.l.b16 %v199
      %v383 = vunpack.c.l.b16 %v200
      %v384 = vunpack.c.h.b16 %v200
      %v385 = vunpack.c.l.b16 %v201
      %v386 = vunpack.c.l.b16 %v202
      %v387 = vunpack.c.h.b16 %v202
      %v388 = vunpack.c.l.b16 %v203
      %v389 = vunpack.c.l.b16 %v204
      %v390 = vunpack.c.h.b16 %v204
      %v391 = vunpack.c.l.b16 %v205
      %v392 = vunpack.c.l.b16 %v206
      %v393 = vunpack.c.h.b16 %v206
      %v394 = vunpack.c.l.b16 %v207
      %v395 = vunpack.c.l.b16 %v208
      %v396 = vunpack.c.h.b16 %v208
      %v397 = vunpack.c.l.b16 %v209
      %v398 = vunpack.c.l.b16 %v210
      %v399 = vunpack.c.h.b16 %v210
      %v400 = vunpack.c.l.b16 %v211
      %v401 = vunpack.c.l.b16 %v212
      %v402 = vunpack.c.h.b16 %v212
      %v403 = vunpack.c.l.b16 %v213
      %v404 = vunpack.c.l.b16 %v214
      %v405 = vunpack.c.h.b16 %v214
      %v406 = vunpack.c.l.b16 %v215
      %v407 = vunpack.c.l.b16 %v216
      %v408 = vunpack.c.h.b16 %v216
      %v409 = vunpack.c.l.b16 %v217
      %v410 = vunpack.c.l.b16 %v218
      %v411 = vunpack.c.h.b16 %v218
      %v412 = vunpack.c.l.b16 %v219
      %v413 = vunpack.c.l.b16 %v220
      %v414 = vunpack.c.h.b16 %v220
      %v415 = vunpack.c.l.b16 %v221
      %v416 = vunpack.c.l.b16 %v222
      %v417 = vunpack.c.h.b16 %v222
      %v418 = vunpack.c.l.b16 %v223
      %v419 = vunpack.c.l.b16 %v224
      %v420 = vunpack.c.h.b16 %v224
      %v421 = vunpack.c.l.b16 %v225
      %v422 = vunpack.c.l.b16 %v226
      %v423 = vunpack.c.h.b16 %v226
      %v424 = vunpack.c.l.b16 %v227
      %v425 = vunpack.c.l.b16 %v228
      %v426 = vunpack.c.h.b16 %v228
      %v427 = vunpack.c.l.b16 %v229
      %v428 = vunpack.c.l.b16 %v230
      %v429 = vunpack.c.h.b16 %v230
      %v430 = vunpack.c.l.b16 %v231
      %v431 = vunpack.c.l.b16 %v232
      %v432 = vunpack.c.h.b16 %v232
      %v433 = vunpack.c.l.b16 %v233
      %v434 = vunpack.c.l.b16 %v234
      %v435 = vunpack.c.h.b16 %v234
      %v436 = vunpack.c.l.b16 %v235
      %v437 = vunpack.c.l.b16 %v236
      %v438 = vunpack.c.h.b16 %v236
      %v439 = vunpack.c.l.b16 %v237
      %v440 = vunpack.c.l.b16 %v238
      %v441 = vunpack.c.h.b16 %v238
      %v442 = vunpack.c.l.b16 %v239
      %v443 = vunpack.c.l.b16 %v240
      %v444 = vunpack.c.h.b16 %v240
      %v445 = vunpack.c.l.b16 %v241
      %v446 = vpack.c.b16 %v353, %v350
      %v447 = vpack.c.b16 %v354, %v351
      %v448 = vpack.c.b16 %v355, %v352
      %v449 = vpack.c.b16 %v359, %v356
      %v450 = vpack.c.b16 %v360, %v357
      %v451 = vpack.c.b16 %v361, %v358
      %v452 = vpack.c.b16 %v365, %v362
      %v453 = vpack.c.b16 %v366, %v363
      %v454 = vpack.c.b16 %v367, %v364
      %v455 = vpack.c.b16 %v371, %v368
      %v456 = vpack.c.b16 %v372, %v369
      %v457 = vpack.c.b16 %v373, %v370
      %v458 = vpack.c.b16 %v377, %v374
      %v459 = vpack.c.b16 %v378, %v375
      %v460 = vpack.c.b16 %v379, %v376
      %v461 = vpack.c.b16 %v383, %v380
      %v462 = vpack.c.b16 %v384, %v381
      %v463 = vpack.c.b16 %v385, %v382
      %v464 = vpack.c.b16 %v389, %v386
      %v465 = vpack.c.b16 %v390, %v387
      %v466 = vpack.c.b16 %v391, %v388
      %v467 = vpack.c.b16 %v395, %v392
      %v468 = vpack.c.b16 %v396, %v393
      %v469 = vpack.c.b16 %v397, %v394
      %v470 = vpack.c.b16 %v401, %v398
      %v471 = vpack.c.b16 %v402, %v399
      %v472 = vpack.c.b16 %v403, %v400
      %v473 = vpack.c.b16 %v407, %v404
      %v474 = vpack.c.b16 %v408, %v405
      %v475 = vpack.c.b16 %v409, %v406
      %v476 = vpack.c.b16 %v413, %v410
      %v477 = vpack.c.b16 %v414, %v411
      %v478 = vpack.c.b16 %v415, %v412
      %v479 = vpack.c.b16 %v419, %v416
      %v480 = vpack.c.b16 %v420, %v417
      %v481 = vpack.c.b16 %v421, %v418
      %v482 = vpack.c.b16 %v425, %v422
      %v483 = vpack.c.b16 %v426, %v423
      %v484 = vpack.c.b16 %v427, %v424
      %v485 = vpack.c.b16 %v431, %v428
      %v486 = vpack.c.b16 %v432, %v429
      %v487 = vpack.c.b16 %v433, %v430
      %v488 = vpack.c.b16 %v437, %v434
      %v489 = vpack.c.b16 %v438, %v435
      %v490 = vpack.c.b16 %v439, %v436
      %v491 = vpack.c.b16 %v443, %v440
      %v492 = vpack.c.b16 %v444, %v441
      %v493 = vpack.c.b16 %v445, %v442
      %v563 = vunpack.c.l.b16 %v242
      %v564 = vunpack.c.l.b16 %v243
      %v565 = vunpack.c.l.b16 %v244
      %v566 = vunpack.c.l.b16 %v245
      %v567 = vunpack.c.l.b16 %v246
      %v568 = vunpack.c.l.b16 %v247
      %v569 = vunpack.c.l.b16 %v248
      %v570 = vunpack.c.l.b16 %v249
      %v571 = vunpack.c.l.b16 %v250
      %v572 = vunpack.c.l.b16 %v251
      %v573 = vunpack.c.l.b16 %v252
      %v574 = vunpack.c.l.b16 %v253
      %v575 = vunpack.c.l.b16 %v254
      %v576 = vunpack.c.l.b16 %v255
      %v577 = vunpack.c.l.b16 %v256
      %v578 = vunpack.c.l.b16 %v257
      %v579 = vunpack.c.l.b16 %v258
      %v580 = vunpack.c.l.b16 %v259
      %v581 = vunpack.c.l.b16 %v260
      %v582 = vunpack.c.l.b16 %v261
      %v583 = vunpack.c.l.b16 %v262
      %v584 = vunpack.c.l.b16 %v263
      %v585 = vunpack.c.l.b16 %v264
      %v586 = vunpack.c.l.b16 %v265
      %v587 = vunpack.c.l.b16 %v266
      %v588 = vunpack.c.l.b16 %v267
      %v589 = vunpack.c.l.b16 %v268
      %v590 = vunpack.c.l.b16 %v269
      %v591 = vunpack.c.l.b16 %v270
      %v592 = vunpack.c.l.b16 %v271
      %v593 = vunpack.c.l.b16 %v272
      %v594 = vunpack.c.l.b16 %v273
      %v595 = vunpack.c.l.b16 %v274
      %v596 = vunpack.c.l.b16 %v275
      %v597 = vunpack.c.l.b16 %v276
      %v598 = vunpack.c.l.b16 %v277
      %v599 = vunpack.c.l.b16 %v278
      %v600 = vpack.c.b16 %v564, %v563
      %v601 = vpack.c.b16 %v566, %v565
      %v602 = vpack.c.b16 %v568, %v567
      %v603 = vpack.c.b16 %v570, %v569
      %v604 = vpack.c.b16 %v572, %v571
      %v605 = vpack.c.b16 %v574, %v573
      %v606 = vpack.c.b16 %v576, %v575
      %v607 = vpack.c.b16 %v578, %v577
      %v608 = vpack.c.b16 %v580, %v579
      %v609 = vpack.c.b16 %v582, %v581
      %v610 = vpack.c.b16 %v584, %v583
      %v611 = vpack.c.b16 %v586, %v585
      %v612 = vpack.c.b16 %v588, %v587
      %v613 = vpack.c.b16 %v590, %v589
      %v614 = vpack.c.b16 %v592, %v591
      %v615 = vpack.c.b16 %v594, %v593
      %v616 = vpack.c.b16 %v596, %v595
      %v617 = vpack.c.b16 %v598, %v597
      %v618 = vpack.c.b16 %v599, %v599
      %vm637 = vcmask 310272
      %v639 = vsel %vm637, %v448, 0
      %v642 = vsel %vm637, %v451, 0
      %v645 = vsel %vm637, %v454, 0
      %v648 = vsel %vm637, %v457, 0
      %v651 = vsel %vm637, %v460, 0
      %v654 = vsel %vm637, %v463, 0
      %v657 = vsel %vm637, %v466, 0
      %v660 = vsel %vm637, %v469, 0
      %v663 = vsel %vm637, %v472, 0
      %v666 = vsel %vm637, %v475, 0
      %v669 = vsel %vm637, %v478, 0
      %v672 = vsel %vm637, %v481, 0
      %v675 = vsel %vm637, %v484, 0
      %v678 = vsel %vm637, %v487, 0
      %v681 = vsel %vm637, %v490, 0
      %v684 = vsel %vm637, %v493, 0
      %vm686 = vcmask 1042432
      %v688 = vsel %vm686, %v618, 0
      %690 = vmatprep.subr.bf16.mxu0 0
      %691 = vmatpush1.bf16.msra.mxu0 %v600
      %692 = vmatprep.subr.bf16.mxu0 0
      %693 = vmatpush1.bf16.msra.mxu0 %v601
      %694 = vmatprep.subr.bf16.mxu0 0
      %695 = vmatpush1.bf16.msra.mxu0 %v602
      %696 = vmatprep.subr.bf16.mxu0 0
      %697 = vmatpush1.bf16.msra.mxu0 %v603
      %698 = vmatprep.subr.bf16.mxu0 0
      %699 = vmatpush1.bf16.msra.mxu0 %v604
      %700 = vmatprep.subr.bf16.mxu0 0
      %701 = vmatpush1.bf16.msra.mxu0 %v605
      %702 = vmatprep.subr.bf16.mxu0 0
      %703 = vmatpush1.bf16.msra.mxu0 %v606
      %704 = vmatprep.subr.bf16.mxu0 0
      %705 = vmatpush1.bf16.msra.mxu0 %v607
      %706 = vmatprep.subr.bf16.mxu0 0
      %707 = vmatpush1.bf16.msra.mxu0 %v608
      %708 = vmatprep.subr.bf16.mxu0 0
      %709 = vmatpush1.bf16.msra.mxu0 %v609
      %710 = vmatprep.subr.bf16.mxu0 0
      %711 = vmatpush1.bf16.msra.mxu0 %v610
      %712 = vmatprep.subr.bf16.mxu0 0
      %713 = vmatpush1.bf16.msra.mxu0 %v611
      %714 = vmatprep.subr.bf16.mxu0 0
      %715 = vmatpush1.bf16.msra.mxu0 %v612
      %716 = vmatprep.subr.bf16.mxu0 0
      %717 = vmatpush1.bf16.msra.mxu0 %v613
      %718 = vmatprep.subr.bf16.mxu0 0
      %719 = vmatpush1.bf16.msra.mxu0 %v614
      %720 = vmatprep.subr.bf16.mxu0 0
      %721 = vmatpush1.bf16.msra.mxu0 %v615
      %722 = vmatprep.mubr.bf16.mxu0 %v447
      %723 = vmatmul.mubr.bf16.gmra.mrb[0].mxu0 %v446
      %v724 = vpop.f32.mrb[0].mxu0
      %v725 = vadd.f32 %v284, %v724
      %v726 = vpop.f32.mrb[0].mxu0
      %v727 = vpop.f32.mrb[0].mxu0
      %v728 = vadd.f32 %v284, %v727
      %v729 = vpop.f32.mrb[0].mxu0
      %730 = vmatprep.mubr.bf16.mxu0 %v450
      %731 = vmatmul.mubr.bf16.gmra.mrb[0].mxu0 %v449
      %v732 = vpop.f32.mrb[0].mxu0
      %v733 = vadd.f32 %v284, %v732
      %v734 = vpop.f32.mrb[0].mxu0
      %v735 = vpop.f32.mrb[0].mxu0
      %v736 = vadd.f32 %v284, %v735
      %v737 = vpop.f32.mrb[0].mxu0
      %738 = vmatprep.mubr.bf16.mxu0 %v453
      %739 = vmatmul.mubr.bf16.gmra.mrb[0].mxu0 %v452
      %v740 = vpop.f32.mrb[0].mxu0
      %v741 = vadd.f32 %v284, %v740
      %v742 = vpop.f32.mrb[0].mxu0
      %v743 = vpop.f32.mrb[0].mxu0
      %v744 = vadd.f32 %v284, %v743
      %v745 = vpop.f32.mrb[0].mxu0
      %746 = vmatprep.mubr.bf16.mxu0 %v456
      %747 = vmatmul.mubr.bf16.gmra.mrb[0].mxu0 %v455
      %v748 = vpop.f32.mrb[0].mxu0
      %v749 = vadd.f32 %v284, %v748
      %v750 = vpop.f32.mrb[0].mxu0
      %v751 = vpop.f32.mrb[0].mxu0
      %v752 = vadd.f32 %v284, %v751
      %v753 = vpop.f32.mrb[0].mxu0
      %754 = vmatprep.mubr.bf16.mxu0 %v459
      %755 = vmatmul.mubr.bf16.gmra.mrb[0].mxu0 %v458
      %v756 = vpop.f32.mrb[0].mxu0
      %v757 = vadd.f32 %v284, %v756
      %v758 = vpop.f32.mrb[0].mxu0
      %v759 = vpop.f32.mrb[0].mxu0
      %v760 = vadd.f32 %v284, %v759
      %v761 = vpop.f32.mrb[0].mxu0
      %762 = vmatprep.mubr.bf16.mxu0 %v462
      %763 = vmatmul.mubr.bf16.gmra.mrb[0].mxu0 %v461
      %v764 = vpop.f32.mrb[0].mxu0
      %v765 = vadd.f32 %v284, %v764
      %v766 = vpop.f32.mrb[0].mxu0
      %v767 = vpop.f32.mrb[0].mxu0
      %v768 = vadd.f32 %v284, %v767
      %v769 = vpop.f32.mrb[0].mxu0
      %770 = vmatprep.mubr.bf16.mxu0 %v465
      %771 = vmatmul.mubr.bf16.gmra.mrb[0].mxu0 %v464
      %v772 = vpop.f32.mrb[0].mxu0
      %v773 = vadd.f32 %v284, %v772
      %v774 = vpop.f32.mrb[0].mxu0
      %v775 = vpop.f32.mrb[0].mxu0
      %v776 = vadd.f32 %v284, %v775
      %v777 = vpop.f32.mrb[0].mxu0
      %778 = vmatprep.mubr.bf16.mxu0 %v468
      %779 = vmatmul.mubr.bf16.gmra.mrb[0].mxu0 %v467
      %v780 = vpop.f32.mrb[0].mxu0
      %v781 = vadd.f32 %v284, %v780
      %v782 = vpop.f32.mrb[0].mxu0
      %v783 = vpop.f32.mrb[0].mxu0
      %v784 = vadd.f32 %v284, %v783
      %v785 = vpop.f32.mrb[0].mxu0
      %786 = vmatprep.mubr.bf16.mxu0 %v471
      %787 = vmatmul.mubr.bf16.gmra.mrb[0].mxu0 %v470
      %v788 = vpop.f32.mrb[0].mxu0
      %v789 = vadd.f32 %v284, %v788
      %v790 = vpop.f32.mrb[0].mxu0
      %v791 = vpop.f32.mrb[0].mxu0
      %v792 = vadd.f32 %v284, %v791
      %v793 = vpop.f32.mrb[0].mxu0
      %794 = vmatprep.mubr.bf16.mxu0 %v474
      %795 = vmatmul.mubr.bf16.gmra.mrb[0].mxu0 %v473
      %v796 = vpop.f32.mrb[0].mxu0
      %v797 = vadd.f32 %v284, %v796
      %v798 = vpop.f32.mrb[0].mxu0
      %v799 = vpop.f32.mrb[0].mxu0
      %v800 = vadd.f32 %v284, %v799
      %v801 = vpop.f32.mrb[0].mxu0
      %802 = vmatprep.mubr.bf16.mxu0 %v477
      %803 = vmatmul.mubr.bf16.gmra.mrb[0].mxu0 %v476
      %v804 = vpop.f32.mrb[0].mxu0
      %v805 = vadd.f32 %v284, %v804
      %v806 = vpop.f32.mrb[0].mxu0
      %v807 = vpop.f32.mrb[0].mxu0
      %v808 = vadd.f32 %v284, %v807
      %v809 = vpop.f32.mrb[0].mxu0
      %810 = vmatprep.mubr.bf16.mxu0 %v480
      %811 = vmatmul.mubr.bf16.gmra.mrb[0].mxu0 %v479
      %v812 = vpop.f32.mrb[0].mxu0
      %v813 = vadd.f32 %v284, %v812
      %v814 = vpop.f32.mrb[0].mxu0
      %v815 = vpop.f32.mrb[0].mxu0
      %v816 = vadd.f32 %v284, %v815
      %v817 = vpop.f32.mrb[0].mxu0
      %818 = vmatprep.mubr.bf16.mxu0 %v483
      %819 = vmatmul.mubr.bf16.gmra.mrb[0].mxu0 %v482
      %v820 = vpop.f32.mrb[0].mxu0
      %v821 = vadd.f32 %v284, %v820
      %v822 = vpop.f32.mrb[0].mxu0
      %v823 = vpop.f32.mrb[0].mxu0
      %v824 = vadd.f32 %v284, %v823
      %v825 = vpop.f32.mrb[0].mxu0
      %826 = vmatprep.mubr.bf16.mxu0 %v486
      %827 = vmatmul.mubr.bf16.gmra.mrb[0].mxu0 %v485
      %v828 = vpop.f32.mrb[0].mxu0
      %v829 = vadd.f32 %v284, %v828
      %v830 = vpop.f32.mrb[0].mxu0
      %v831 = vpop.f32.mrb[0].mxu0
      %v832 = vadd.f32 %v284, %v831
      %v833 = vpop.f32.mrb[0].mxu0
      %834 = vmatprep.mubr.bf16.mxu0 %v489
      %835 = vmatmul.mubr.bf16.gmra.mrb[0].mxu0 %v488
      %v836 = vpop.f32.mrb[0].mxu0
      %v837 = vadd.f32 %v284, %v836
      %v838 = vpop.f32.mrb[0].mxu0
      %v839 = vpop.f32.mrb[0].mxu0
      %v840 = vadd.f32 %v284, %v839
      %v841 = vpop.f32.mrb[0].mxu0
      %842 = vmatprep.mubr.bf16.mxu0 %v492
      %843 = vmatmul.mubr.bf16.gmra.mrb[0].mxu0 %v491
      %v844 = vpop.f32.mrb[0].mxu0
      %v845 = vadd.f32 %v284, %v844
      %v846 = vpop.f32.mrb[0].mxu0
      %v847 = vpop.f32.mrb[0].mxu0
      %v848 = vadd.f32 %v284, %v847
      %v849 = vpop.f32.mrb[0].mxu0
      %850 = vdwg.mxu0
      %851 = vmatprep.subr.bf16.mxu0 0
      %852 = vmatpush1.bf16.msra.mxu0 %v616
      %853 = vmatprep.subr.bf16.mxu0 0
      %854 = vmatpush1.bf16.msra.mxu0 %v617
      %855 = vmatprep.subr.bf16.mxu0 0
      %856 = vmatpush1.bf16.msra.mxu0 %v688
      %857 = vmatprep.subr.bf16.mxu0 0
      %858 = vmatpush1.bf16.msra.mxu0 0
      %859 = vmatprep.subr.bf16.mxu0 0
      %860 = vmatpush1.bf16.msra.mxu0 0
      %861 = vmatprep.subr.bf16.mxu0 0
      %862 = vmatpush1.bf16.msra.mxu0 0
      %863 = vmatprep.subr.bf16.mxu0 0
      %864 = vmatpush1.bf16.msra.mxu0 0
      %865 = vmatprep.subr.bf16.mxu0 0
      %866 = vmatpush1.bf16.msra.mxu0 0
      %867 = vmatprep.subr.bf16.mxu0 0
      %868 = vmatpush1.bf16.msra.mxu0 0
      %869 = vmatprep.subr.bf16.mxu0 0
      %870 = vmatpush1.bf16.msra.mxu0 0
      %871 = vmatprep.subr.bf16.mxu0 0
      %872 = vmatpush1.bf16.msra.mxu0 0
      %873 = vmatprep.subr.bf16.mxu0 0
      %874 = vmatpush1.bf16.msra.mxu0 0
      %875 = vmatprep.subr.bf16.mxu0 0
      %876 = vmatpush1.bf16.msra.mxu0 0
      %877 = vmatprep.subr.bf16.mxu0 0
      %878 = vmatpush1.bf16.msra.mxu0 0
      %879 = vmatprep.subr.bf16.mxu0 0
      %880 = vmatpush1.bf16.msra.mxu0 0
      %881 = vmatprep.subr.bf16.mxu0 0
      %882 = vmatpush1.bf16.msra.mxu0 0
      %883 = vmatprep.mubr.bf16.mxu0 0
      %884 = vmatmul.mubr.bf16.gmra.mrb[0].mxu0 %v639
      %v885 = vpop.f32.mrb[0].mxu0
      %v886 = vadd.f32 %v725, %v885
      %v887 = vpop.f32.mrb[0].mxu0
      %v888 = vpop.f32.mrb[0].mxu0
      %v889 = vadd.f32 %v728, %v888
      %v890 = vpop.f32.mrb[0].mxu0
      %891 = vmatprep.mubr.bf16.mxu0 0
      %892 = vmatmul.mubr.bf16.gmra.mrb[0].mxu0 %v642
      %v893 = vpop.f32.mrb[0].mxu0
      %v894 = vadd.f32 %v733, %v893
      %v895 = vpop.f32.mrb[0].mxu0
      %v896 = vpop.f32.mrb[0].mxu0
      %v897 = vadd.f32 %v736, %v896
      %v898 = vpop.f32.mrb[0].mxu0
      %899 = vmatprep.mubr.bf16.mxu0 0
      %900 = vmatmul.mubr.bf16.gmra.mrb[0].mxu0 %v645
      %v901 = vpop.f32.mrb[0].mxu0
      %v902 = vadd.f32 %v741, %v901
      %v903 = vpop.f32.mrb[0].mxu0
      %v904 = vpop.f32.mrb[0].mxu0
      %v905 = vadd.f32 %v744, %v904
      %v906 = vpop.f32.mrb[0].mxu0
      %907 = vmatprep.mubr.bf16.mxu0 0
      %908 = vmatmul.mubr.bf16.gmra.mrb[0].mxu0 %v648
      %v909 = vpop.f32.mrb[0].mxu0
      %v910 = vadd.f32 %v749, %v909
      %v911 = vpop.f32.mrb[0].mxu0
      %v912 = vpop.f32.mrb[0].mxu0
      %v913 = vadd.f32 %v752, %v912
      %v914 = vpop.f32.mrb[0].mxu0
      %915 = vmatprep.mubr.bf16.mxu0 0
      %916 = vmatmul.mubr.bf16.gmra.mrb[0].mxu0 %v651
      %v917 = vpop.f32.mrb[0].mxu0
      %v918 = vadd.f32 %v757, %v917
      %v919 = vpop.f32.mrb[0].mxu0
      %v920 = vpop.f32.mrb[0].mxu0
      %v921 = vadd.f32 %v760, %v920
      %v922 = vpop.f32.mrb[0].mxu0
      %923 = vmatprep.mubr.bf16.mxu0 0
      %924 = vmatmul.mubr.bf16.gmra.mrb[0].mxu0 %v654
      %v925 = vpop.f32.mrb[0].mxu0
      %v926 = vadd.f32 %v765, %v925
      %v927 = vpop.f32.mrb[0].mxu0
      %v928 = vpop.f32.mrb[0].mxu0
      %v929 = vadd.f32 %v768, %v928
      %v930 = vpop.f32.mrb[0].mxu0
      %931 = vmatprep.mubr.bf16.mxu0 0
      %932 = vmatmul.mubr.bf16.gmra.mrb[0].mxu0 %v657
      %v933 = vpop.f32.mrb[0].mxu0
      %v934 = vadd.f32 %v773, %v933
      %v935 = vpop.f32.mrb[0].mxu0
      %v936 = vpop.f32.mrb[0].mxu0
      %v937 = vadd.f32 %v776, %v936
      %v938 = vpop.f32.mrb[0].mxu0
      %939 = vmatprep.mubr.bf16.mxu0 0
      %940 = vmatmul.mubr.bf16.gmra.mrb[0].mxu0 %v660
      %v941 = vpop.f32.mrb[0].mxu0
      %v942 = vadd.f32 %v781, %v941
      %v943 = vpop.f32.mrb[0].mxu0
      %v944 = vpop.f32.mrb[0].mxu0
      %v945 = vadd.f32 %v784, %v944
      %v946 = vpop.f32.mrb[0].mxu0
      %947 = vmatprep.mubr.bf16.mxu0 0
      %948 = vmatmul.mubr.bf16.gmra.mrb[0].mxu0 %v663
      %v949 = vpop.f32.mrb[0].mxu0
      %v950 = vadd.f32 %v789, %v949
      %v951 = vpop.f32.mrb[0].mxu0
      %v952 = vpop.f32.mrb[0].mxu0
      %v953 = vadd.f32 %v792, %v952
      %v954 = vpop.f32.mrb[0].mxu0
      %955 = vmatprep.mubr.bf16.mxu0 0
      %956 = vmatmul.mubr.bf16.gmra.mrb[0].mxu0 %v666
      %v957 = vpop.f32.mrb[0].mxu0
      %v958 = vadd.f32 %v797, %v957
      %v959 = vpop.f32.mrb[0].mxu0
      %v960 = vpop.f32.mrb[0].mxu0
      %v961 = vadd.f32 %v800, %v960
      %v962 = vpop.f32.mrb[0].mxu0
      %963 = vmatprep.mubr.bf16.mxu0 0
      %964 = vmatmul.mubr.bf16.gmra.mrb[0].mxu0 %v669
      %v965 = vpop.f32.mrb[0].mxu0
      %v966 = vadd.f32 %v805, %v965
      %v967 = vpop.f32.mrb[0].mxu0
      %v968 = vpop.f32.mrb[0].mxu0
      %v969 = vadd.f32 %v808, %v968
      %v970 = vpop.f32.mrb[0].mxu0
      %971 = vmatprep.mubr.bf16.mxu0 0
      %972 = vmatmul.mubr.bf16.gmra.mrb[0].mxu0 %v672
      %v973 = vpop.f32.mrb[0].mxu0
      %v974 = vadd.f32 %v813, %v973
      %v975 = vpop.f32.mrb[0].mxu0
      %v976 = vpop.f32.mrb[0].mxu0
      %v977 = vadd.f32 %v816, %v976
      %v978 = vpop.f32.mrb[0].mxu0
      %979 = vmatprep.mubr.bf16.mxu0 0
      %980 = vmatmul.mubr.bf16.gmra.mrb[0].mxu0 %v675
      %v981 = vpop.f32.mrb[0].mxu0
      %v982 = vadd.f32 %v821, %v981
      %v983 = vpop.f32.mrb[0].mxu0
      %v984 = vpop.f32.mrb[0].mxu0
      %v985 = vadd.f32 %v824, %v984
      %v986 = vpop.f32.mrb[0].mxu0
      %987 = vmatprep.mubr.bf16.mxu0 0
      %988 = vmatmul.mubr.bf16.gmra.mrb[0].mxu0 %v678
      %v989 = vpop.f32.mrb[0].mxu0
      %v990 = vadd.f32 %v829, %v989
      %v991 = vpop.f32.mrb[0].mxu0
      %v992 = vpop.f32.mrb[0].mxu0
      %v993 = vadd.f32 %v832, %v992
      %v994 = vpop.f32.mrb[0].mxu0
      %995 = vmatprep.mubr.bf16.mxu0 0
      %996 = vmatmul.mubr.bf16.gmra.mrb[0].mxu0 %v681
      %v997 = vpop.f32.mrb[0].mxu0
      %v998 = vadd.f32 %v837, %v997
      %v999 = vpop.f32.mrb[0].mxu0
      %v1000 = vpop.f32.mrb[0].mxu0
      %v1001 = vadd.f32 %v840, %v1000
      %v1002 = vpop.f32.mrb[0].mxu0
      %1003 = vmatprep.mubr.bf16.mxu0 0
      %1004 = vmatmul.mubr.bf16.gmra.mrb[0].mxu0 %v684
      %v1005 = vpop.f32.mrb[0].mxu0
      %v1006 = vadd.f32 %v845, %v1005
      %v1007 = vpop.f32.mrb[0].mxu0
      %v1008 = vpop.f32.mrb[0].mxu0
      %v1009 = vadd.f32 %v848, %v1008
      %v1010 = vpop.f32.mrb[0].mxu0
      %1011 = vdwg.mxu0
      %v1012 = vmax.f32 %v886, 0.0
      %v1013 = vmax.f32 %v889, 0.0
      %v1014 = vmax.f32 %v894, 0.0
      %v1015 = vmax.f32 %v897, 0.0
      %v1016 = vmax.f32 %v902, 0.0
      %v1017 = vmax.f32 %v905, 0.0
      %v1018 = vmax.f32 %v910, 0.0
      %v1019 = vmax.f32 %v913, 0.0
      %v1020 = vmax.f32 %v918, 0.0
      %v1021 = vmax.f32 %v921, 0.0
      %v1022 = vmax.f32 %v926, 0.0
      %v1023 = vmax.f32 %v929, 0.0
      %v1024 = vmax.f32 %v934, 0.0
      %v1025 = vmax.f32 %v937, 0.0
      %v1026 = vmax.f32 %v942, 0.0
      %v1027 = vmax.f32 %v945, 0.0
      %v1028 = vmax.f32 %v950, 0.0
      %v1029 = vmax.f32 %v953, 0.0
      %v1030 = vmax.f32 %v958, 0.0
      %v1031 = vmax.f32 %v961, 0.0
      %v1032 = vmax.f32 %v966, 0.0
      %v1033 = vmax.f32 %v969, 0.0
      %v1034 = vmax.f32 %v974, 0.0
      %v1035 = vmax.f32 %v977, 0.0
      %v1036 = vmax.f32 %v982, 0.0
      %v1037 = vmax.f32 %v985, 0.0
      %v1038 = vmax.f32 %v990, 0.0
      %v1039 = vmax.f32 %v993, 0.0
      %v1040 = vmax.f32 %v998, 0.0
      %v1041 = vmax.f32 %v1001, 0.0
      %v1042 = vmax.f32 %v1006, 0.0
      %v1043 = vmax.f32 %v1009, 0.0
      %v1044 = vpack.c.bf16 %v1013, %v1012
      %v1045 = vpack.c.bf16 %v1015, %v1014
      %v1046 = vpack.c.bf16 %v1017, %v1016
      %v1047 = vpack.c.bf16 %v1019, %v1018
      %v1048 = vpack.c.bf16 %v1021, %v1020
      %v1049 = vpack.c.bf16 %v1023, %v1022
      %v1050 = vpack.c.bf16 %v1025, %v1024
      %v1051 = vpack.c.bf16 %v1027, %v1026
      %v1052 = vpack.c.bf16 %v1029, %v1028
      %v1053 = vpack.c.bf16 %v1031, %v1030
      %v1054 = vpack.c.bf16 %v1033, %v1032
      %v1055 = vpack.c.bf16 %v1035, %v1034
      %v1056 = vpack.c.bf16 %v1037, %v1036
      %v1057 = vpack.c.bf16 %v1039, %v1038
      %v1058 = vpack.c.bf16 %v1041, %v1040
      %v1059 = vpack.c.bf16 %v1043, %v1042
      %v1076 = vunpack.c.l.b16 %v1044
      %v1077 = vunpack.c.h.b16 %v1044
      %v1078 = vunpack.c.l.b16 %v1045
      %v1079 = vunpack.c.h.b16 %v1045
      %v1080 = vunpack.c.l.b16 %v1046
      %v1081 = vunpack.c.h.b16 %v1046
      %v1082 = vunpack.c.l.b16 %v1047
      %v1083 = vunpack.c.h.b16 %v1047
      %v1084 = vunpack.c.l.b16 %v1048
      %v1085 = vunpack.c.h.b16 %v1048
      %v1086 = vunpack.c.l.b16 %v1049
      %v1087 = vunpack.c.h.b16 %v1049
      %v1088 = vunpack.c.l.b16 %v1050
      %v1089 = vunpack.c.h.b16 %v1050
      %v1090 = vunpack.c.l.b16 %v1051
      %v1091 = vunpack.c.h.b16 %v1051
      %v1092 = vunpack.c.l.b16 %v1052
      %v1093 = vunpack.c.h.b16 %v1052
      %v1094 = vunpack.c.l.b16 %v1053
      %v1095 = vunpack.c.h.b16 %v1053
      %v1096 = vunpack.c.l.b16 %v1054
      %v1097 = vunpack.c.h.b16 %v1054
      %v1098 = vunpack.c.l.b16 %v1055
      %v1099 = vunpack.c.h.b16 %v1055
      %v1100 = vunpack.c.l.b16 %v1056
      %v1101 = vunpack.c.h.b16 %v1056
      %v1102 = vunpack.c.l.b16 %v1057
      %v1103 = vunpack.c.h.b16 %v1057
      %v1104 = vunpack.c.l.b16 %v1058
      %v1105 = vunpack.c.h.b16 %v1058
      %v1106 = vunpack.c.l.b16 %v1059
      %v1107 = vunpack.c.h.b16 %v1059
      %v1108 = vpack.c.b16 %v1076, %v1076
      %v1109 = vpack.c.b16 %v1077, %v1077
      %v1110 = vpack.c.b16 %v1078, %v1078
      %v1111 = vpack.c.b16 %v1079, %v1079
      %v1112 = vpack.c.b16 %v1080, %v1080
      %v1113 = vpack.c.b16 %v1081, %v1081
      %v1114 = vpack.c.b16 %v1082, %v1082
      %v1115 = vpack.c.b16 %v1083, %v1083
      %v1116 = vpack.c.b16 %v1084, %v1084
      %v1117 = vpack.c.b16 %v1085, %v1085
      %v1118 = vpack.c.b16 %v1086, %v1086
      %v1119 = vpack.c.b16 %v1087, %v1087
      %v1120 = vpack.c.b16 %v1088, %v1088
      %v1121 = vpack.c.b16 %v1089, %v1089
      %v1122 = vpack.c.b16 %v1090, %v1090
      %v1123 = vpack.c.b16 %v1091, %v1091
      %v1124 = vpack.c.b16 %v1092, %v1092
      %v1125 = vpack.c.b16 %v1093, %v1093
      %v1126 = vpack.c.b16 %v1094, %v1094
      %v1127 = vpack.c.b16 %v1095, %v1095
      %v1128 = vpack.c.b16 %v1096, %v1096
      %v1129 = vpack.c.b16 %v1097, %v1097
      %v1130 = vpack.c.b16 %v1098, %v1098
      %v1131 = vpack.c.b16 %v1099, %v1099
      %v1132 = vpack.c.b16 %v1100, %v1100
      %v1133 = vpack.c.b16 %v1101, %v1101
      %v1134 = vpack.c.b16 %v1102, %v1102
      %v1135 = vpack.c.b16 %v1103, %v1103
      %v1136 = vpack.c.b16 %v1104, %v1104
      %v1137 = vpack.c.b16 %v1105, %v1105
      %v1138 = vpack.c.b16 %v1106, %v1106
      %v1139 = vpack.c.b16 %v1107, %v1107
      %vm1172 = vcmask 125952
      %1173 = vst.msk [vmem:[%s175] sm:$0xf] %vm1172, %v1108
      %1174 = vst.msk [vmem:[%s175 + $0x4] sm:$0xf] %vm1172, %v1109
      %1175 = vst.msk [vmem:[%s175 + $0x8] sm:$0xf] %vm1172, %v1110
      %1176 = vst.msk [vmem:[%s175 + $0xc] sm:$0xf] %vm1172, %v1111
      %1177 = vst.msk [vmem:[%s175 + $0x10] sm:$0xf] %vm1172, %v1112
      %1178 = vst.msk [vmem:[%s175 + $0x14] sm:$0xf] %vm1172, %v1113
      %1179 = vst.msk [vmem:[%s175 + $0x18] sm:$0xf] %vm1172, %v1114
      %1180 = vst.msk [vmem:[%s175 + $0x1c] sm:$0xf] %vm1172, %v1115
      %1181 = vst.msk [vmem:[%s175 + $0x20] sm:$0xf] %vm1172, %v1116
      %1182 = vst.msk [vmem:[%s175 + $0x24] sm:$0xf] %vm1172, %v1117
      %1183 = vst.msk [vmem:[%s175 + $0x28] sm:$0xf] %vm1172, %v1118
      %1184 = vst.msk [vmem:[%s175 + $0x2c] sm:$0xf] %vm1172, %v1119
      %1185 = vst.msk [vmem:[%s175 + $0x30] sm:$0xf] %vm1172, %v1120
      %1186 = vst.msk [vmem:[%s175 + $0x34] sm:$0xf] %vm1172, %v1121
      %1187 = vst.msk [vmem:[%s175 + $0x38] sm:$0xf] %vm1172, %v1122
      %1188 = vst.msk [vmem:[%s175 + $0x3c] sm:$0xf] %vm1172, %v1123
      %1189 = vst.msk [vmem:[%s175 + $0x40] sm:$0xf] %vm1172, %v1124
      %1190 = vst.msk [vmem:[%s175 + $0x44] sm:$0xf] %vm1172, %v1125
      %1191 = vst.msk [vmem:[%s175 + $0x48] sm:$0xf] %vm1172, %v1126
      %1192 = vst.msk [vmem:[%s175 + $0x4c] sm:$0xf] %vm1172, %v1127
      %1193 = vst.msk [vmem:[%s175 + $0x50] sm:$0xf] %vm1172, %v1128
      %1194 = vst.msk [vmem:[%s175 + $0x54] sm:$0xf] %vm1172, %v1129
      %1195 = vst.msk [vmem:[%s175 + $0x58] sm:$0xf] %vm1172, %v1130
      %1196 = vst.msk [vmem:[%s175 + $0x5c] sm:$0xf] %vm1172, %v1131
      %1197 = vst.msk [vmem:[%s175 + $0x60] sm:$0xf] %vm1172, %v1132
      %1198 = vst.msk [vmem:[%s175 + $0x64] sm:$0xf] %vm1172, %v1133
      %1199 = vst.msk [vmem:[%s175 + $0x68] sm:$0xf] %vm1172, %v1134
      %1200 = vst.msk [vmem:[%s175 + $0x6c] sm:$0xf] %vm1172, %v1135
      %1201 = vst.msk [vmem:[%s175 + $0x70] sm:$0xf] %vm1172, %v1136
      %1202 = vst.msk [vmem:[%s175 + $0x74] sm:$0xf] %vm1172, %v1137
      %1203 = vst.msk [vmem:[%s175 + $0x78] sm:$0xf] %vm1172, %v1138
      %1204 = vst.msk [vmem:[%s175 + $0x7c] sm:$0xf] %vm1172, %v1139
      %s1205 = smul.u32 32, %s14
      %p1206 = scmp.lt.s32.totalorder %s1205, 63
      %s1207 = scalar_select %p1206, %s1205, 63
      %s1208 = smul.addr %s1207, 4
      %s1209 = scalar_lea.vmem %s3, %s1208
      // Predicated region
      $region33: #{wrapped_model_forward.8} parent=31 // pred_check
        %p1210 = pneg %p100
      $region34: #{wrapped_model_forward.8} parent=31 // pred_check_branch
        %1212 = sbr.rel (%p1210) target = $region36
      $region35: #{wrapped_model_forward.8} parent=31 // pred_region
        %s1213 = smul.u32 32, %s14
      $region36: #{wrapped_model_forward.8} parent=31 // pred_fallthru
        _
    $region32: #{wrapped_model_forward.8} parent=5 // pred_fallthru
      _
    %p1214 = scmp.le.s32.totalorder 2, %s9
    // Predicated region
    $region37: #{wrapped_model_forward.8} parent=5 // pred_check
      %p1215 = pneg %p1214
    $region38: #{wrapped_model_forward.8} parent=5 // pred_check_branch
      %1217 = sbr.rel (%p1215) target = $region40
    $region39: #{wrapped_model_forward.8} parent=5 // pred_region
      %s1218 = ssub.s32 %s9, 2
      // Predicated region
      $region41: #{wrapped_model_forward.8} parent=39 // pred_check
        %p1219 = pneg %p106
      $region42: #{wrapped_model_forward.8} parent=39 // pred_check_branch
        %1221 = sbr.rel (%p1219) target = $region44
      $region43: #{wrapped_model_forward.8} parent=39 // pred_region
        %s1222 = smul.u32 32, %s15
        %p1223 = scmp.lt.s32.totalorder %s1222, 63
        %s1224 = scalar_select %p1223, %s1222, 63
        %s1225 = smul.addr %s1224, 4
        %s1226 = scalar_lea.vmem %s3, %s1225
      $region44: #{wrapped_model_forward.8} parent=39 // pred_fallthru
        _
    $region40: #{wrapped_model_forward.8} parent=5 // pred_fallthru
      _
  $region6: #{wrapped_model_forward.8} parent=0 // loop_footer
    %s13 = sadd.s32 1, %s9
  $region7: #{wrapped_model_forward.8} parent=0 // loop_footer_branch
    %8 = sbr.rel target = $region3
  $region8: #{wrapped_model_forward.8} parent=0 // loop_exit
    _

// kernel: wrapped_model_forward.9
$region0: #{wrapped_model_forward.9}
  #allocation0 [shape = 'u32[]', space=smem, size = 0x4, offset = 0x4, fixed_abs, tag = 'smem constant byte address 0x4 - core index']
  #allocation1 [shape = 'u32[144,128]{1,0:T(1,128)}', space=vmem, size = 0x12000, scoped, tag = 'internal scratch']
  %s0 = inlined_call_operand.vmem [shape: bf16[128,400], index: 0, kind: input, shape index: {}]
  %s1 = inlined_call_operand.vmem [shape: bf16[400,32], index: 1, kind: input, shape index: {}]
  %s2 = inlined_call_operand.vmem [shape: f32[1,32], index: 2, kind: input, shape index: {}]
  %s3 = inlined_call_operand.vmem [shape: bf16[128,32], index: 3, kind: output, shape index: {}]
  %s4 = sld [smem:[#allocation0]]
  $region22: #{wrapped_model_forward.9} parent=0
    _
  %s6 = ssub.s32 1, %s4
  %s7 = scalar_select 0, %s6, %s4
  // Predicated region
  $region2: #{wrapped_model_forward.9} parent=0 // pred_check
    _
  $region3: #{wrapped_model_forward.9} parent=0 // pred_check_branch
    %9 = sbr.rel (0) target = $region5
  $region4: #{wrapped_model_forward.9} parent=0 // pred_region
    _
  $region5: #{wrapped_model_forward.9} parent=0 // pred_fallthru
    _
  // Predicated region
  $region6: #{wrapped_model_forward.9} parent=0 // pred_check
    _
  $region7: #{wrapped_model_forward.9} parent=0 // pred_check_branch
    %11 = sbr.rel (0) target = $region9
  $region8: #{wrapped_model_forward.9} parent=0 // pred_region
    _
  $region9: #{wrapped_model_forward.9} parent=0 // pred_fallthru
    _
  // Predicated region
  $region10: #{wrapped_model_forward.9} parent=0 // pred_check
    _
  $region11: #{wrapped_model_forward.9} parent=0 // pred_check_branch
    %13 = sbr.rel (0) target = $region13
  $region12: #{wrapped_model_forward.9} parent=0 // pred_region
    _
  $region13: #{wrapped_model_forward.9} parent=0 // pred_fallthru
    _
  %v15 = vld [vmem:[%s0] sm:$0xff]
  %v16 = vld [vmem:[%s0 + $0x8] sm:$0xff]
  %v17 = vld [vmem:[%s0 + $0x10] sm:$0xff]
  %v18 = vld [vmem:[%s0 + $0x18] sm:$0xff]
  %v19 = vld [vmem:[%s0 + $0x20] sm:$0xff]
  %v20 = vld [vmem:[%s0 + $0x28] sm:$0xff]
  %v21 = vld [vmem:[%s0 + $0x30] sm:$0xff]
  %v22 = vld [vmem:[%s0 + $0x38] sm:$0xff]
  %v23 = vld [vmem:[%s0 + $0x40] sm:$0xff]
  %v24 = vld [vmem:[%s0 + $0x48] sm:$0xff]
  %v25 = vld [vmem:[%s0 + $0x50] sm:$0xff]
  %v26 = vld [vmem:[%s0 + $0x58] sm:$0xff]
  %v27 = vld [vmem:[%s0 + $0x60] sm:$0xff]
  %v28 = vld [vmem:[%s0 + $0x68] sm:$0xff]
  %v29 = vld [vmem:[%s0 + $0x70] sm:$0xff]
  %v30 = vld [vmem:[%s0 + $0x78] sm:$0xff]
  %v31 = vld [vmem:[%s0 + $0x80] sm:$0xff]
  %v32 = vld [vmem:[%s0 + $0x88] sm:$0xff]
  %v33 = vld [vmem:[%s0 + $0x90] sm:$0xff]
  %v34 = vld [vmem:[%s0 + $0x98] sm:$0xff]
  %v35 = vld [vmem:[%s0 + $0xa0] sm:$0xff]
  %v36 = vld [vmem:[%s0 + $0xa8] sm:$0xff]
  %v37 = vld [vmem:[%s0 + $0xb0] sm:$0xff]
  %v38 = vld [vmem:[%s0 + $0xb8] sm:$0xff]
  %v39 = vld [vmem:[%s0 + $0xc0] sm:$0xff]
  %v40 = vld [vmem:[%s0 + $0xc8] sm:$0xff]
  %v41 = vld [vmem:[%s0 + $0xd0] sm:$0xff]
  %v42 = vld [vmem:[%s0 + $0xd8] sm:$0xff]
  %v43 = vld [vmem:[%s0 + $0xe0] sm:$0xff]
  %v44 = vld [vmem:[%s0 + $0xe8] sm:$0xff]
  %v45 = vld [vmem:[%s0 + $0xf0] sm:$0xff]
  %v46 = vld [vmem:[%s0 + $0xf8] sm:$0xff]
  %v47 = vld [vmem:[%s1] sm:$0xf]
  %v48 = vld [vmem:[%s1 + $0x4] sm:$0xf]
  %v49 = vld [vmem:[%s1 + $0x8] sm:$0xf]
  %v50 = vld [vmem:[%s1 + $0xc] sm:$0xf]
  %v51 = vld [vmem:[%s1 + $0x10] sm:$0xf]
  %v52 = vld [vmem:[%s1 + $0x14] sm:$0xf]
  %v53 = vld [vmem:[%s1 + $0x18] sm:$0xf]
  %v54 = vld [vmem:[%s1 + $0x1c] sm:$0xf]
  %v55 = vld [vmem:[%s1 + $0x20] sm:$0xf]
  %v56 = vld [vmem:[%s1 + $0x24] sm:$0xf]
  %v57 = vld [vmem:[%s1 + $0x28] sm:$0xf]
  %v58 = vld [vmem:[%s1 + $0x2c] sm:$0xf]
  %v59 = vld [vmem:[%s1 + $0x30] sm:$0xf]
  %v60 = vld [vmem:[%s1 + $0x34] sm:$0xf]
  %v61 = vld [vmem:[%s1 + $0x38] sm:$0xf]
  %v62 = vld [vmem:[%s1 + $0x3c] sm:$0xf]
  %v63 = vld [vmem:[%s1 + $0x40] sm:$0xf]
  %v64 = vld [vmem:[%s1 + $0x44] sm:$0xf]
  %v65 = vld [vmem:[%s1 + $0x48] sm:$0xf]
  %v66 = vld [vmem:[%s1 + $0x4c] sm:$0xf]
  %v67 = vld [vmem:[%s1 + $0x50] sm:$0xf]
  %v68 = vld [vmem:[%s1 + $0x54] sm:$0xf]
  %v69 = vld [vmem:[%s1 + $0x58] sm:$0xf]
  %v70 = vld [vmem:[%s1 + $0x5c] sm:$0xf]
  %v71 = vld [vmem:[%s1 + $0x60] sm:$0xf]
  %v72 = vld [vmem:[%s1 + $0x64] sm:$0xf]
  %v73 = vld [vmem:[%s1 + $0x68] sm:$0xf]
  %v74 = vld [vmem:[%s1 + $0x6c] sm:$0xf]
  %v75 = vld [vmem:[%s1 + $0x70] sm:$0xf]
  %v76 = vld [vmem:[%s1 + $0x74] sm:$0xf]
  %v77 = vld [vmem:[%s1 + $0x78] sm:$0xf]
  %v78 = vld [vmem:[%s1 + $0x7c] sm:$0xf]
  %v79 = vld [vmem:[%s1 + $0x80] sm:$0xf]
  %v80 = vld [vmem:[%s1 + $0x84] sm:$0xf]
  %v81 = vld [vmem:[%s1 + $0x88] sm:$0xf]
  %v82 = vld [vmem:[%s1 + $0x8c] sm:$0xf]
  %v83 = vld [vmem:[%s1 + $0x90] sm:$0xf]
  %v84 = vld [vmem:[%s1 + $0x94] sm:$0xf]
  %v85 = vld [vmem:[%s1 + $0x98] sm:$0xf]
  %v86 = vld [vmem:[%s1 + $0x9c] sm:$0xf]
  %v87 = vld [vmem:[%s1 + $0xa0] sm:$0xf]
  %v88 = vld [vmem:[%s1 + $0xa4] sm:$0xf]
  %v89 = vld [vmem:[%s1 + $0xa8] sm:$0xf]
  %v90 = vld [vmem:[%s1 + $0xac] sm:$0xf]
  %v91 = vld [vmem:[%s1 + $0xb0] sm:$0xf]
  %v92 = vld [vmem:[%s1 + $0xb4] sm:$0xf]
  %v93 = vld [vmem:[%s1 + $0xb8] sm:$0xf]
  %v94 = vld [vmem:[%s1 + $0xbc] sm:$0xf]
  %v95 = vld [vmem:[%s1 + $0xc0] sm:$0xf]
  %v96 = vld [vmem:[%s1 + $0xc4] sm:$0xf]
  %v97 = vld [vmem:[%s2] sm:$0x1]
  %v99 = vlaneseq
  %v100 = vshrl.u32 %v99, 7
  %v101 = vsub.s32 0, %v100
  %v102 = vrot.slane %v97, %v101
  %v136 = vunpack.c.l.b16 %v15
  %v137 = vunpack.c.h.b16 %v15
  %v138 = vunpack.c.l.b16 %v16
  %v139 = vunpack.c.h.b16 %v16
  %v140 = vunpack.c.l.b16 %v17
  %v141 = vunpack.c.h.b16 %v17
  %v142 = vunpack.c.l.b16 %v18
  %v143 = vunpack.c.h.b16 %v18
  %v144 = vunpack.c.l.b16 %v19
  %v145 = vunpack.c.h.b16 %v19
  %v146 = vunpack.c.l.b16 %v20
  %v147 = vunpack.c.h.b16 %v20
  %v148 = vunpack.c.l.b16 %v21
  %v149 = vunpack.c.h.b16 %v21
  %v150 = vunpack.c.l.b16 %v22
  %v151 = vunpack.c.h.b16 %v22
  %v152 = vunpack.c.l.b16 %v23
  %v153 = vunpack.c.h.b16 %v23
  %v154 = vunpack.c.l.b16 %v24
  %v155 = vunpack.c.h.b16 %v24
  %v156 = vunpack.c.l.b16 %v25
  %v157 = vunpack.c.h.b16 %v25
  %v158 = vunpack.c.l.b16 %v26
  %v159 = vunpack.c.h.b16 %v26
  %v160 = vunpack.c.l.b16 %v27
  %v161 = vunpack.c.h.b16 %v27
  %v162 = vunpack.c.l.b16 %v28
  %v163 = vunpack.c.h.b16 %v28
  %v164 = vunpack.c.l.b16 %v29
  %v165 = vunpack.c.h.b16 %v29
  %v166 = vunpack.c.l.b16 %v30
  %v167 = vunpack.c.h.b16 %v30
  %v168 = vunpack.c.l.b16 %v31
  %v169 = vunpack.c.h.b16 %v31
  %v170 = vunpack.c.l.b16 %v32
  %v171 = vunpack.c.h.b16 %v32
  %v172 = vunpack.c.l.b16 %v33
  %v173 = vunpack.c.h.b16 %v33
  %v174 = vunpack.c.l.b16 %v34
  %v175 = vunpack.c.h.b16 %v34
  %v176 = vunpack.c.l.b16 %v35
  %v177 = vunpack.c.h.b16 %v35
  %v178 = vunpack.c.l.b16 %v36
  %v179 = vunpack.c.h.b16 %v36
  %v180 = vunpack.c.l.b16 %v37
  %v181 = vunpack.c.h.b16 %v37
  %v182 = vunpack.c.l.b16 %v38
  %v183 = vunpack.c.h.b16 %v38
  %v184 = vunpack.c.l.b16 %v39
  %v185 = vunpack.c.h.b16 %v39
  %v186 = vunpack.c.l.b16 %v40
  %v187 = vunpack.c.h.b16 %v40
  %v188 = vunpack.c.l.b16 %v41
  %v189 = vunpack.c.h.b16 %v41
  %v190 = vunpack.c.l.b16 %v42
  %v191 = vunpack.c.h.b16 %v42
  %v192 = vunpack.c.l.b16 %v43
  %v193 = vunpack.c.h.b16 %v43
  %v194 = vunpack.c.l.b16 %v44
  %v195 = vunpack.c.h.b16 %v44
  %v196 = vunpack.c.l.b16 %v45
  %v197 = vunpack.c.h.b16 %v45
  %v198 = vunpack.c.l.b16 %v46
  %v199 = vunpack.c.h.b16 %v46
  %v200 = vpack.c.b16 %v140, %v136
  %v201 = vpack.c.b16 %v141, %v137
  %v202 = vpack.c.b16 %v142, %v138
  %v203 = vpack.c.b16 %v143, %v139
  %v204 = vpack.c.b16 %v148, %v144
  %v205 = vpack.c.b16 %v149, %v145
  %v206 = vpack.c.b16 %v150, %v146
  %v207 = vpack.c.b16 %v151, %v147
  %v208 = vpack.c.b16 %v156, %v152
  %v209 = vpack.c.b16 %v157, %v153
  %v210 = vpack.c.b16 %v158, %v154
  %v211 = vpack.c.b16 %v159, %v155
  %v212 = vpack.c.b16 %v164, %v160
  %v213 = vpack.c.b16 %v165, %v161
  %v214 = vpack.c.b16 %v166, %v162
  %v215 = vpack.c.b16 %v167, %v163
  %v216 = vpack.c.b16 %v172, %v168
  %v217 = vpack.c.b16 %v173, %v169
  %v218 = vpack.c.b16 %v174, %v170
  %v219 = vpack.c.b16 %v175, %v171
  %v220 = vpack.c.b16 %v180, %v176
  %v221 = vpack.c.b16 %v181, %v177
  %v222 = vpack.c.b16 %v182, %v178
  %v223 = vpack.c.b16 %v183, %v179
  %v224 = vpack.c.b16 %v188, %v184
  %v225 = vpack.c.b16 %v189, %v185
  %v226 = vpack.c.b16 %v190, %v186
  %v227 = vpack.c.b16 %v191, %v187
  %v228 = vpack.c.b16 %v196, %v192
  %v229 = vpack.c.b16 %v197, %v193
  %v230 = vpack.c.b16 %v198, %v194
  %v231 = vpack.c.b16 %v199, %v195
  %v306 = vunpack.c.l.b16 %v47
  %v307 = vunpack.c.l.b16 %v48
  %v308 = vunpack.c.l.b16 %v49
  %v309 = vunpack.c.l.b16 %v50
  %v310 = vunpack.c.l.b16 %v51
  %v311 = vunpack.c.l.b16 %v52
  %v312 = vunpack.c.l.b16 %v53
  %v313 = vunpack.c.l.b16 %v54
  %v314 = vunpack.c.l.b16 %v55
  %v315 = vunpack.c.l.b16 %v56
  %v316 = vunpack.c.l.b16 %v57
  %v317 = vunpack.c.l.b16 %v58
  %v318 = vunpack.c.l.b16 %v59
  %v319 = vunpack.c.l.b16 %v60
  %v320 = vunpack.c.l.b16 %v61
  %v321 = vunpack.c.l.b16 %v62
  %v322 = vunpack.c.l.b16 %v63
  %v323 = vunpack.c.l.b16 %v64
  %v324 = vunpack.c.l.b16 %v65
  %v325 = vunpack.c.l.b16 %v66
  %v326 = vunpack.c.l.b16 %v67
  %v327 = vunpack.c.l.b16 %v68
  %v328 = vunpack.c.l.b16 %v69
  %v329 = vunpack.c.l.b16 %v70
  %v330 = vunpack.c.l.b16 %v71
  %v331 = vunpack.c.l.b16 %v72
  %v332 = vunpack.c.l.b16 %v73
  %v333 = vunpack.c.l.b16 %v74
  %v334 = vunpack.c.l.b16 %v75
  %v335 = vunpack.c.l.b16 %v76
  %v336 = vunpack.c.l.b16 %v77
  %v337 = vunpack.c.l.b16 %v78
  %v338 = vunpack.c.l.b16 %v79
  %v339 = vunpack.c.l.b16 %v80
  %v340 = vunpack.c.l.b16 %v81
  %v341 = vunpack.c.l.b16 %v82
  %v342 = vunpack.c.l.b16 %v83
  %v343 = vunpack.c.l.b16 %v84
  %v344 = vunpack.c.l.b16 %v85
  %v345 = vunpack.c.l.b16 %v86
  %v346 = vunpack.c.l.b16 %v87
  %v347 = vunpack.c.l.b16 %v88
  %v348 = vunpack.c.l.b16 %v89
  %v349 = vunpack.c.l.b16 %v90
  %v350 = vunpack.c.l.b16 %v91
  %v351 = vunpack.c.l.b16 %v92
  %v352 = vunpack.c.l.b16 %v93
  %v353 = vunpack.c.l.b16 %v94
  %v354 = vunpack.c.l.b16 %v95
  %v355 = vunpack.c.l.b16 %v96
  %v356 = vpack.c.b16 %v307, %v306
  %v357 = vpack.c.b16 %v309, %v308
  %v358 = vpack.c.b16 %v311, %v310
  %v359 = vpack.c.b16 %v313, %v312
  %v360 = vpack.c.b16 %v315, %v314
  %v361 = vpack.c.b16 %v317, %v316
  %v362 = vpack.c.b16 %v319, %v318
  %v363 = vpack.c.b16 %v321, %v320
  %v364 = vpack.c.b16 %v323, %v322
  %v365 = vpack.c.b16 %v325, %v324
  %v366 = vpack.c.b16 %v327, %v326
  %v367 = vpack.c.b16 %v329, %v328
  %v368 = vpack.c.b16 %v331, %v330
  %v369 = vpack.c.b16 %v333, %v332
  %v370 = vpack.c.b16 %v335, %v334
  %v371 = vpack.c.b16 %v337, %v336
  %v372 = vpack.c.b16 %v339, %v338
  %v373 = vpack.c.b16 %v341, %v340
  %v374 = vpack.c.b16 %v343, %v342
  %v375 = vpack.c.b16 %v345, %v344
  %v376 = vpack.c.b16 %v347, %v346
  %v377 = vpack.c.b16 %v349, %v348
  %v378 = vpack.c.b16 %v351, %v350
  %v379 = vpack.c.b16 %v353, %v352
  %v380 = vpack.c.b16 %v355, %v354
  %vm406 = vcmask 130048
  %v408 = vsel %vm406, %v203, 0
  %v411 = vsel %vm406, %v207, 0
  %v414 = vsel %vm406, %v211, 0
  %v417 = vsel %vm406, %v215, 0
  %v420 = vsel %vm406, %v219, 0
  %v423 = vsel %vm406, %v223, 0
  %v426 = vsel %vm406, %v227, 0
  %v429 = vsel %vm406, %v231, 0
  %431 = vmatprep.subr.bf16.mxu0 0
  %432 = vmatpush1.bf16.msra.mxu0 %v356
  %433 = vmatprep.subr.bf16.mxu0 0
  %434 = vmatpush1.bf16.msra.mxu0 %v357
  %435 = vmatprep.subr.bf16.mxu0 0
  %436 = vmatpush1.bf16.msra.mxu0 %v358
  %437 = vmatprep.subr.bf16.mxu0 0
  %438 = vmatpush1.bf16.msra.mxu0 %v359
  %439 = vmatprep.subr.bf16.mxu0 0
  %440 = vmatpush1.bf16.msra.mxu0 %v360
  %441 = vmatprep.subr.bf16.mxu0 0
  %442 = vmatpush1.bf16.msra.mxu0 %v361
  %443 = vmatprep.subr.bf16.mxu0 0
  %444 = vmatpush1.bf16.msra.mxu0 %v362
  %445 = vmatprep.subr.bf16.mxu0 0
  %446 = vmatpush1.bf16.msra.mxu0 %v363
  %447 = vmatprep.subr.bf16.mxu0 0
  %448 = vmatpush1.bf16.msra.mxu0 %v364
  %449 = vmatprep.subr.bf16.mxu0 0
  %450 = vmatpush1.bf16.msra.mxu0 %v365
  %451 = vmatprep.subr.bf16.mxu0 0
  %452 = vmatpush1.bf16.msra.mxu0 %v366
  %453 = vmatprep.subr.bf16.mxu0 0
  %454 = vmatpush1.bf16.msra.mxu0 %v367
  %455 = vmatprep.subr.bf16.mxu0 0
  %456 = vmatpush1.bf16.msra.mxu0 %v368
  %457 = vmatprep.subr.bf16.mxu0 0
  %458 = vmatpush1.bf16.msra.mxu0 %v369
  %459 = vmatprep.subr.bf16.mxu0 0
  %460 = vmatpush1.bf16.msra.mxu0 %v370
  %461 = vmatprep.subr.bf16.mxu0 0
  %462 = vmatpush1.bf16.msra.mxu0 %v371
  %463 = vmatprep.mubr.bf16.mxu0 %v201
  %464 = vmatmul.mubr.bf16.gmra.mrb[0].mxu0 %v200
  %v465 = vpop.f32.mrb[0].mxu0
  %v466 = vadd.f32 %v102, %v465
  %v467 = vpop.f32.mrb[0].mxu0
  %v468 = vpop.f32.mrb[0].mxu0
  %v469 = vadd.f32 %v102, %v468
  %v470 = vpop.f32.mrb[0].mxu0
  %471 = vmatprep.mubr.bf16.mxu0 %v205
  %472 = vmatmul.mubr.bf16.gmra.mrb[0].mxu0 %v204
  %v473 = vpop.f32.mrb[0].mxu0
  %v474 = vadd.f32 %v102, %v473
  %v475 = vpop.f32.mrb[0].mxu0
  %v476 = vpop.f32.mrb[0].mxu0
  %v477 = vadd.f32 %v102, %v476
  %v478 = vpop.f32.mrb[0].mxu0
  %479 = vmatprep.mubr.bf16.mxu0 %v209
  %480 = vmatmul.mubr.bf16.gmra.mrb[0].mxu0 %v208
  %v481 = vpop.f32.mrb[0].mxu0
  %v482 = vadd.f32 %v102, %v481
  %v483 = vpop.f32.mrb[0].mxu0
  %v484 = vpop.f32.mrb[0].mxu0
  %v485 = vadd.f32 %v102, %v484
  %v486 = vpop.f32.mrb[0].mxu0
  %487 = vmatprep.mubr.bf16.mxu0 %v213
  %488 = vmatmul.mubr.bf16.gmra.mrb[0].mxu0 %v212
  %v489 = vpop.f32.mrb[0].mxu0
  %v490 = vadd.f32 %v102, %v489
  %v491 = vpop.f32.mrb[0].mxu0
  %v492 = vpop.f32.mrb[0].mxu0
  %v493 = vadd.f32 %v102, %v492
  %v494 = vpop.f32.mrb[0].mxu0
  %495 = vmatprep.mubr.bf16.mxu0 %v217
  %496 = vmatmul.mubr.bf16.gmra.mrb[0].mxu0 %v216
  %v497 = vpop.f32.mrb[0].mxu0
  %v498 = vadd.f32 %v102, %v497
  %v499 = vpop.f32.mrb[0].mxu0
  %v500 = vpop.f32.mrb[0].mxu0
  %v501 = vadd.f32 %v102, %v500
  %v502 = vpop.f32.mrb[0].mxu0
  %503 = vmatprep.mubr.bf16.mxu0 %v221
  %504 = vmatmul.mubr.bf16.gmra.mrb[0].mxu0 %v220
  %v505 = vpop.f32.mrb[0].mxu0
  %v506 = vadd.f32 %v102, %v505
  %v507 = vpop.f32.mrb[0].mxu0
  %v508 = vpop.f32.mrb[0].mxu0
  %v509 = vadd.f32 %v102, %v508
  %v510 = vpop.f32.mrb[0].mxu0
  %511 = vmatprep.mubr.bf16.mxu0 %v225
  %512 = vmatmul.mubr.bf16.gmra.mrb[0].mxu0 %v224
  %v513 = vpop.f32.mrb[0].mxu0
  %v514 = vadd.f32 %v102, %v513
  %v515 = vpop.f32.mrb[0].mxu0
  %v516 = vpop.f32.mrb[0].mxu0
  %v517 = vadd.f32 %v102, %v516
  %v518 = vpop.f32.mrb[0].mxu0
  %519 = vmatprep.mubr.bf16.mxu0 %v229
  %520 = vmatmul.mubr.bf16.gmra.mrb[0].mxu0 %v228
  %v521 = vpop.f32.mrb[0].mxu0
  %v522 = vadd.f32 %v102, %v521
  %v523 = vpop.f32.mrb[0].mxu0
  %v524 = vpop.f32.mrb[0].mxu0
  %v525 = vadd.f32 %v102, %v524
  %v526 = vpop.f32.mrb[0].mxu0
  %527 = vdwg.mxu0
  %528 = vmatprep.subr.bf16.mxu0 0
  %529 = vmatpush1.bf16.msra.mxu0 %v372
  %530 = vmatprep.subr.bf16.mxu0 0
  %531 = vmatpush1.bf16.msra.mxu0 %v373
  %532 = vmatprep.subr.bf16.mxu0 0
  %533 = vmatpush1.bf16.msra.mxu0 %v374
  %534 = vmatprep.subr.bf16.mxu0 0
  %535 = vmatpush1.bf16.msra.mxu0 %v375
  %536 = vmatprep.subr.bf16.mxu0 0
  %537 = vmatpush1.bf16.msra.mxu0 %v376
  %538 = vmatprep.subr.bf16.mxu0 0
  %539 = vmatpush1.bf16.msra.mxu0 %v377
  %540 = vmatprep.subr.bf16.mxu0 0
  %541 = vmatpush1.bf16.msra.mxu0 %v378
  %542 = vmatprep.subr.bf16.mxu0 0
  %543 = vmatpush1.bf16.msra.mxu0 %v379
  %544 = vmatprep.subr.bf16.mxu0 0
  %545 = vmatpush1.bf16.msra.mxu0 %v380
  %546 = vmatprep.subr.bf16.mxu0 0
  %547 = vmatpush1.bf16.msra.mxu0 0
  %548 = vmatprep.subr.bf16.mxu0 0
  %549 = vmatpush1.bf16.msra.mxu0 0
  %550 = vmatprep.subr.bf16.mxu0 0
  %551 = vmatpush1.bf16.msra.mxu0 0
  %552 = vmatprep.subr.bf16.mxu0 0
  %553 = vmatpush1.bf16.msra.mxu0 0
  %554 = vmatprep.subr.bf16.mxu0 0
  %555 = vmatpush1.bf16.msra.mxu0 0
  %556 = vmatprep.subr.bf16.mxu0 0
  %557 = vmatpush1.bf16.msra.mxu0 0
  %558 = vmatprep.subr.bf16.mxu0 0
  %559 = vmatpush1.bf16.msra.mxu0 0
  %560 = vmatprep.mubr.bf16.mxu0 %v408
  %561 = vmatmul.mubr.bf16.gmra.mrb[0].mxu0 %v202
  %v562 = vpop.f32.mrb[0].mxu0
  %v563 = vadd.f32 %v466, %v562
  %v564 = vpop.f32.mrb[0].mxu0
  %v565 = vpop.f32.mrb[0].mxu0
  %v566 = vadd.f32 %v469, %v565
  %v567 = vpop.f32.mrb[0].mxu0
  %568 = vmatprep.mubr.bf16.mxu0 %v411
  %569 = vmatmul.mubr.bf16.gmra.mrb[0].mxu0 %v206
  %v570 = vpop.f32.mrb[0].mxu0
  %v571 = vadd.f32 %v474, %v570
  %v572 = vpop.f32.mrb[0].mxu0
  %v573 = vpop.f32.mrb[0].mxu0
  %v574 = vadd.f32 %v477, %v573
  %v575 = vpop.f32.mrb[0].mxu0
  %576 = vmatprep.mubr.bf16.mxu0 %v414
  %577 = vmatmul.mubr.bf16.gmra.mrb[0].mxu0 %v210
  %v578 = vpop.f32.mrb[0].mxu0
  %v579 = vadd.f32 %v482, %v578
  %v580 = vpop.f32.mrb[0].mxu0
  %v581 = vpop.f32.mrb[0].mxu0
  %v582 = vadd.f32 %v485, %v581
  %v583 = vpop.f32.mrb[0].mxu0
  %584 = vmatprep.mubr.bf16.mxu0 %v417
  %585 = vmatmul.mubr.bf16.gmra.mrb[0].mxu0 %v214
  %v586 = vpop.f32.mrb[0].mxu0
  %v587 = vadd.f32 %v490, %v586
  %v588 = vpop.f32.mrb[0].mxu0
  %v589 = vpop.f32.mrb[0].mxu0
  %v590 = vadd.f32 %v493, %v589
  %v591 = vpop.f32.mrb[0].mxu0
  %592 = vmatprep.mubr.bf16.mxu0 %v420
  %593 = vmatmul.mubr.bf16.gmra.mrb[0].mxu0 %v218
  %v594 = vpop.f32.mrb[0].mxu0
  %v595 = vadd.f32 %v498, %v594
  %v596 = vpop.f32.mrb[0].mxu0
  %v597 = vpop.f32.mrb[0].mxu0
  %v598 = vadd.f32 %v501, %v597
  %v599 = vpop.f32.mrb[0].mxu0
  %600 = vmatprep.mubr.bf16.mxu0 %v423
  %601 = vmatmul.mubr.bf16.gmra.mrb[0].mxu0 %v222
  %v602 = vpop.f32.mrb[0].mxu0
  %v603 = vadd.f32 %v506, %v602
  %v604 = vpop.f32.mrb[0].mxu0
  %v605 = vpop.f32.mrb[0].mxu0
  %v606 = vadd.f32 %v509, %v605
  %v607 = vpop.f32.mrb[0].mxu0
  %608 = vmatprep.mubr.bf16.mxu0 %v426
  %609 = vmatmul.mubr.bf16.gmra.mrb[0].mxu0 %v226
  %v610 = vpop.f32.mrb[0].mxu0
  %v611 = vadd.f32 %v514, %v610
  %v612 = vpop.f32.mrb[0].mxu0
  %v613 = vpop.f32.mrb[0].mxu0
  %v614 = vadd.f32 %v517, %v613
  %v615 = vpop.f32.mrb[0].mxu0
  %616 = vmatprep.mubr.bf16.mxu0 %v429
  %617 = vmatmul.mubr.bf16.gmra.mrb[0].mxu0 %v230
  %v618 = vpop.f32.mrb[0].mxu0
  %v619 = vadd.f32 %v522, %v618
  %v620 = vpop.f32.mrb[0].mxu0
  %v621 = vpop.f32.mrb[0].mxu0
  %v622 = vadd.f32 %v525, %v621
  %v623 = vpop.f32.mrb[0].mxu0
  %624 = vdwg.mxu0
  %v625 = vmax.f32 %v563, 0.0
  %v626 = vmax.f32 %v566, 0.0
  %v627 = vmax.f32 %v571, 0.0
  %v628 = vmax.f32 %v574, 0.0
  %v629 = vmax.f32 %v579, 0.0
  %v630 = vmax.f32 %v582, 0.0
  %v631 = vmax.f32 %v587, 0.0
  %v632 = vmax.f32 %v590, 0.0
  %v633 = vmax.f32 %v595, 0.0
  %v634 = vmax.f32 %v598, 0.0
  %v635 = vmax.f32 %v603, 0.0
  %v636 = vmax.f32 %v606, 0.0
  %v637 = vmax.f32 %v611, 0.0
  %v638 = vmax.f32 %v614, 0.0
  %v639 = vmax.f32 %v619, 0.0
  %v640 = vmax.f32 %v622, 0.0
  %v641 = vpack.c.bf16 %v626, %v625
  %v642 = vpack.c.bf16 %v628, %v627
  %v643 = vpack.c.bf16 %v630, %v629
  %v644 = vpack.c.bf16 %v632, %v631
  %v645 = vpack.c.bf16 %v634, %v633
  %v646 = vpack.c.bf16 %v636, %v635
  %v647 = vpack.c.bf16 %v638, %v637
  %v648 = vpack.c.bf16 %v640, %v639
  %v657 = vunpack.c.l.b16 %v641
  %v658 = vunpack.c.h.b16 %v641
  %v659 = vunpack.c.l.b16 %v642
  %v660 = vunpack.c.h.b16 %v642
  %v661 = vunpack.c.l.b16 %v643
  %v662 = vunpack.c.h.b16 %v643
  %v663 = vunpack.c.l.b16 %v644
  %v664 = vunpack.c.h.b16 %v644
  %v665 = vunpack.c.l.b16 %v645
  %v666 = vunpack.c.h.b16 %v645
  %v667 = vunpack.c.l.b16 %v646
  %v668 = vunpack.c.h.b16 %v646
  %v669 = vunpack.c.l.b16 %v647
  %v670 = vunpack.c.h.b16 %v647
  %v671 = vunpack.c.l.b16 %v648
  %v672 = vunpack.c.h.b16 %v648
  %v673 = vpack.c.b16 %v657, %v657
  %v674 = vpack.c.b16 %v658, %v658
  %v675 = vpack.c.b16 %v659, %v659
  %v676 = vpack.c.b16 %v660, %v660
  %v677 = vpack.c.b16 %v661, %v661
  %v678 = vpack.c.b16 %v662, %v662
  %v679 = vpack.c.b16 %v663, %v663
  %v680 = vpack.c.b16 %v664, %v664
  %v681 = vpack.c.b16 %v665, %v665
  %v682 = vpack.c.b16 %v666, %v666
  %v683 = vpack.c.b16 %v667, %v667
  %v684 = vpack.c.b16 %v668, %v668
  %v685 = vpack.c.b16 %v669, %v669
  %v686 = vpack.c.b16 %v670, %v670
  %v687 = vpack.c.b16 %v671, %v671
  %v688 = vpack.c.b16 %v672, %v672
  %vm705 = vcmask 257024
  %706 = vst.msk [vmem:[%s3] sm:$0xf] %vm705, %v673
  %707 = vst.msk [vmem:[%s3 + $0x4] sm:$0xf] %vm705, %v674
  %708 = vst.msk [vmem:[%s3 + $0x8] sm:$0xf] %vm705, %v675
  %709 = vst.msk [vmem:[%s3 + $0xc] sm:$0xf] %vm705, %v676
  %710 = vst.msk [vmem:[%s3 + $0x10] sm:$0xf] %vm705, %v677
  %711 = vst.msk [vmem:[%s3 + $0x14] sm:$0xf] %vm705, %v678
  %712 = vst.msk [vmem:[%s3 + $0x18] sm:$0xf] %vm705, %v679
  %713 = vst.msk [vmem:[%s3 + $0x1c] sm:$0xf] %vm705, %v680
  %714 = vst.msk [vmem:[%s3 + $0x20] sm:$0xf] %vm705, %v681
  %715 = vst.msk [vmem:[%s3 + $0x24] sm:$0xf] %vm705, %v682
  %716 = vst.msk [vmem:[%s3 + $0x28] sm:$0xf] %vm705, %v683
  %717 = vst.msk [vmem:[%s3 + $0x2c] sm:$0xf] %vm705, %v684
  %718 = vst.msk [vmem:[%s3 + $0x30] sm:$0xf] %vm705, %v685
  %719 = vst.msk [vmem:[%s3 + $0x34] sm:$0xf] %vm705, %v686
  %720 = vst.msk [vmem:[%s3 + $0x38] sm:$0xf] %vm705, %v687
  %721 = vst.msk [vmem:[%s3 + $0x3c] sm:$0xf] %vm705, %v688
  // Predicated region
  $region14: #{wrapped_model_forward.9} parent=0 // pred_check
    _
  $region15: #{wrapped_model_forward.9} parent=0 // pred_check_branch
    %723 = sbr.rel (0) target = $region17
  $region16: #{wrapped_model_forward.9} parent=0 // pred_region
    _
  $region17: #{wrapped_model_forward.9} parent=0 // pred_fallthru
    _
  // Predicated region
  $region18: #{wrapped_model_forward.9} parent=0 // pred_check
    _
  $region19: #{wrapped_model_forward.9} parent=0 // pred_check_branch
    %725 = sbr.rel (0) target = $region21
  $region20: #{wrapped_model_forward.9} parent=0 // pred_region
    _
  $region21: #{wrapped_model_forward.9} parent=0 // pred_fallthru
    _

// kernel: wrapped_model_forward.10
$region0: #{wrapped_model_forward.10}
  #allocation0 [shape = 'u32[]', space=smem, size = 0x4, offset = 0x4, fixed_abs, tag = 'smem constant byte address 0x4 - core index']
  #allocation1 [shape = 'u32[144,128]{1,0:T(1,128)}', space=vmem, size = 0x12000, scoped, tag = 'internal scratch']
  %s0 = inlined_call_operand.vmem [shape: bf16[32,288], index: 0, kind: input, shape index: {}]
  %s1 = inlined_call_operand.vmem [shape: bf16[288,64], index: 1, kind: input, shape index: {}]
  %s2 = inlined_call_operand.vmem [shape: f32[1,64], index: 2, kind: input, shape index: {}]
  %s3 = inlined_call_operand.vmem [shape: bf16[32,64], index: 3, kind: output, shape index: {}]
  %s4 = sld [smem:[#allocation0]]
  $region22: #{wrapped_model_forward.10} parent=0
    _
  %s6 = ssub.s32 1, %s4
  %s7 = scalar_select 0, %s6, %s4
  // Predicated region
  $region2: #{wrapped_model_forward.10} parent=0 // pred_check
    _
  $region3: #{wrapped_model_forward.10} parent=0 // pred_check_branch
    %9 = sbr.rel (0) target = $region5
  $region4: #{wrapped_model_forward.10} parent=0 // pred_region
    _
  $region5: #{wrapped_model_forward.10} parent=0 // pred_fallthru
    _
  // Predicated region
  $region6: #{wrapped_model_forward.10} parent=0 // pred_check
    _
  $region7: #{wrapped_model_forward.10} parent=0 // pred_check_branch
    %11 = sbr.rel (0) target = $region9
  $region8: #{wrapped_model_forward.10} parent=0 // pred_region
    _
  $region9: #{wrapped_model_forward.10} parent=0 // pred_fallthru
    _
  // Predicated region
  $region10: #{wrapped_model_forward.10} parent=0 // pred_check
    _
  $region11: #{wrapped_model_forward.10} parent=0 // pred_check_branch
    %13 = sbr.rel (0) target = $region13
  $region12: #{wrapped_model_forward.10} parent=0 // pred_region
    _
  $region13: #{wrapped_model_forward.10} parent=0 // pred_fallthru
    _
  %v15 = vld [vmem:[%s0] sm:$0xff]
  %v16 = vld [vmem:[%s0 + $0x8] sm:$0xf]
  %v17 = vld [vmem:[%s0 + $0xc] sm:$0xff]
  %v18 = vld [vmem:[%s0 + $0x14] sm:$0xf]
  %v19 = vld [vmem:[%s0 + $0x18] sm:$0xff]
  %v20 = vld [vmem:[%s0 + $0x20] sm:$0xf]
  %v21 = vld [vmem:[%s0 + $0x24] sm:$0xff]
  %v22 = vld [vmem:[%s0 + $0x2c] sm:$0xf]
  %v23 = vld [vmem:[%s1] sm:$0xf]
  %v24 = vld [vmem:[%s1 + $0x4] sm:$0xf]
  %v25 = vld [vmem:[%s1 + $0x8] sm:$0xf]
  %v26 = vld [vmem:[%s1 + $0xc] sm:$0xf]
  %v27 = vld [vmem:[%s1 + $0x10] sm:$0xf]
  %v28 = vld [vmem:[%s1 + $0x14] sm:$0xf]
  %v29 = vld [vmem:[%s1 + $0x18] sm:$0xf]
  %v30 = vld [vmem:[%s1 + $0x1c] sm:$0xf]
  %v31 = vld [vmem:[%s1 + $0x20] sm:$0xf]
  %v32 = vld [vmem:[%s1 + $0x24] sm:$0xf]
  %v33 = vld [vmem:[%s1 + $0x28] sm:$0xf]
  %v34 = vld [vmem:[%s1 + $0x2c] sm:$0xf]
  %v35 = vld [vmem:[%s1 + $0x30] sm:$0xf]
  %v36 = vld [vmem:[%s1 + $0x34] sm:$0xf]
  %v37 = vld [vmem:[%s1 + $0x38] sm:$0xf]
  %v38 = vld [vmem:[%s1 + $0x3c] sm:$0xf]
  %v39 = vld [vmem:[%s1 + $0x40] sm:$0xf]
  %v40 = vld [vmem:[%s1 + $0x44] sm:$0xf]
  %v41 = vld [vmem:[%s1 + $0x48] sm:$0xf]
  %v42 = vld [vmem:[%s1 + $0x4c] sm:$0xf]
  %v43 = vld [vmem:[%s1 + $0x50] sm:$0xf]
  %v44 = vld [vmem:[%s1 + $0x54] sm:$0xf]
  %v45 = vld [vmem:[%s1 + $0x58] sm:$0xf]
  %v46 = vld [vmem:[%s1 + $0x5c] sm:$0xf]
  %v47 = vld [vmem:[%s1 + $0x60] sm:$0xf]
  %v48 = vld [vmem:[%s1 + $0x64] sm:$0xf]
  %v49 = vld [vmem:[%s1 + $0x68] sm:$0xf]
  %v50 = vld [vmem:[%s1 + $0x6c] sm:$0xf]
  %v51 = vld [vmem:[%s1 + $0x70] sm:$0xf]
  %v52 = vld [vmem:[%s1 + $0x74] sm:$0xf]
  %v53 = vld [vmem:[%s1 + $0x78] sm:$0xf]
  %v54 = vld [vmem:[%s1 + $0x7c] sm:$0xf]
  %v55 = vld [vmem:[%s1 + $0x80] sm:$0xf]
  %v56 = vld [vmem:[%s1 + $0x84] sm:$0xf]
  %v57 = vld [vmem:[%s1 + $0x88] sm:$0xf]
  %v58 = vld [vmem:[%s1 + $0x8c] sm:$0xf]
  %v59 = vld [vmem:[%s2] sm:$0x1]
  %v61 = vlaneseq
  %v62 = vshrl.u32 %v61, 7
  %v63 = vsub.s32 0, %v62
  %v64 = vrot.slane %v59, %v63
  %v74 = vunpack.c.l.b16 %v15
  %v75 = vunpack.c.h.b16 %v15
  %v76 = vunpack.c.l.b16 %v16
  %v77 = vunpack.c.l.b16 %v17
  %v78 = vunpack.c.h.b16 %v17
  %v79 = vunpack.c.l.b16 %v18
  %v80 = vunpack.c.l.b16 %v19
  %v81 = vunpack.c.h.b16 %v19
  %v82 = vunpack.c.l.b16 %v20
  %v83 = vunpack.c.l.b16 %v21
  %v84 = vunpack.c.h.b16 %v21
  %v85 = vunpack.c.l.b16 %v22
  %v86 = vpack.c.b16 %v77, %v74
  %v87 = vpack.c.b16 %v78, %v75
  %v88 = vpack.c.b16 %v79, %v76
  %v89 = vpack.c.b16 %v83, %v80
  %v90 = vpack.c.b16 %v84, %v81
  %v91 = vpack.c.b16 %v85, %v82
  %v132 = vunpack.c.l.b16 %v23
  %v133 = vunpack.c.l.b16 %v24
  %v134 = vunpack.c.l.b16 %v25
  %v135 = vunpack.c.l.b16 %v26
  %v136 = vunpack.c.l.b16 %v27
  %v137 = vunpack.c.l.b16 %v28
  %v138 = vunpack.c.l.b16 %v29
  %v139 = vunpack.c.l.b16 %v30
  %v140 = vunpack.c.l.b16 %v31
  %v141 = vunpack.c.l.b16 %v32
  %v142 = vunpack.c.l.b16 %v33
  %v143 = vunpack.c.l.b16 %v34
  %v144 = vunpack.c.l.b16 %v35
  %v145 = vunpack.c.l.b16 %v36
  %v146 = vunpack.c.l.b16 %v37
  %v147 = vunpack.c.l.b16 %v38
  %v148 = vunpack.c.l.b16 %v39
  %v149 = vunpack.c.l.b16 %v40
  %v150 = vunpack.c.l.b16 %v41
  %v151 = vunpack.c.l.b16 %v42
  %v152 = vunpack.c.l.b16 %v43
  %v153 = vunpack.c.l.b16 %v44
  %v154 = vunpack.c.l.b16 %v45
  %v155 = vunpack.c.l.b16 %v46
  %v156 = vunpack.c.l.b16 %v47
  %v157 = vunpack.c.l.b16 %v48
  %v158 = vunpack.c.l.b16 %v49
  %v159 = vunpack.c.l.b16 %v50
  %v160 = vunpack.c.l.b16 %v51
  %v161 = vunpack.c.l.b16 %v52
  %v162 = vunpack.c.l.b16 %v53
  %v163 = vunpack.c.l.b16 %v54
  %v164 = vunpack.c.l.b16 %v55
  %v165 = vunpack.c.l.b16 %v56
  %v166 = vunpack.c.l.b16 %v57
  %v167 = vunpack.c.l.b16 %v58
  %v168 = vpack.c.b16 %v133, %v132
  %v169 = vpack.c.b16 %v135, %v134
  %v170 = vpack.c.b16 %v137, %v136
  %v171 = vpack.c.b16 %v139, %v138
  %v172 = vpack.c.b16 %v141, %v140
  %v173 = vpack.c.b16 %v143, %v142
  %v174 = vpack.c.b16 %v145, %v144
  %v175 = vpack.c.b16 %v147, %v146
  %v176 = vpack.c.b16 %v149, %v148
  %v177 = vpack.c.b16 %v151, %v150
  %v178 = vpack.c.b16 %v153, %v152
  %v179 = vpack.c.b16 %v155, %v154
  %v180 = vpack.c.b16 %v157, %v156
  %v181 = vpack.c.b16 %v159, %v158
  %v182 = vpack.c.b16 %v161, %v160
  %v183 = vpack.c.b16 %v163, %v162
  %v184 = vpack.c.b16 %v165, %v164
  %v185 = vpack.c.b16 %v167, %v166
  %vm204 = vcmask 261120
  %v206 = vsel %vm204, %v88, 0
  %v209 = vsel %vm204, %v91, 0
  %211 = vmatprep.subr.bf16.mxu0 0
  %212 = vmatpush1.bf16.msra.mxu0 %v168
  %213 = vmatprep.subr.bf16.mxu0 0
  %214 = vmatpush1.bf16.msra.mxu0 %v169
  %215 = vmatprep.subr.bf16.mxu0 0
  %216 = vmatpush1.bf16.msra.mxu0 %v170
  %217 = vmatprep.subr.bf16.mxu0 0
  %218 = vmatpush1.bf16.msra.mxu0 %v171
  %219 = vmatprep.subr.bf16.mxu0 0
  %220 = vmatpush1.bf16.msra.mxu0 %v172
  %221 = vmatprep.subr.bf16.mxu0 0
  %222 = vmatpush1.bf16.msra.mxu0 %v173
  %223 = vmatprep.subr.bf16.mxu0 0
  %224 = vmatpush1.bf16.msra.mxu0 %v174
  %225 = vmatprep.subr.bf16.mxu0 0
  %226 = vmatpush1.bf16.msra.mxu0 %v175
  %227 = vmatprep.subr.bf16.mxu0 0
  %228 = vmatpush1.bf16.msra.mxu0 %v176
  %229 = vmatprep.subr.bf16.mxu0 0
  %230 = vmatpush1.bf16.msra.mxu0 %v177
  %231 = vmatprep.subr.bf16.mxu0 0
  %232 = vmatpush1.bf16.msra.mxu0 %v178
  %233 = vmatprep.subr.bf16.mxu0 0
  %234 = vmatpush1.bf16.msra.mxu0 %v179
  %235 = vmatprep.subr.bf16.mxu0 0
  %236 = vmatpush1.bf16.msra.mxu0 %v180
  %237 = vmatprep.subr.bf16.mxu0 0
  %238 = vmatpush1.bf16.msra.mxu0 %v181
  %239 = vmatprep.subr.bf16.mxu0 0
  %240 = vmatpush1.bf16.msra.mxu0 %v182
  %241 = vmatprep.subr.bf16.mxu0 0
  %242 = vmatpush1.bf16.msra.mxu0 %v183
  %243 = vmatprep.mubr.bf16.mxu0 %v87
  %244 = vmatmul.mubr.bf16.gmra.mrb[0].mxu0 %v86
  %v245 = vpop.f32.mrb[0].mxu0
  %v246 = vadd.f32 %v64, %v245
  %v247 = vpop.f32.mrb[0].mxu0
  %v248 = vpop.f32.mrb[0].mxu0
  %v249 = vadd.f32 %v64, %v248
  %v250 = vpop.f32.mrb[0].mxu0
  %251 = vmatprep.mubr.bf16.mxu0 %v90
  %252 = vmatmul.mubr.bf16.gmra.mrb[0].mxu0 %v89
  %v253 = vpop.f32.mrb[0].mxu0
  %v254 = vadd.f32 %v64, %v253
  %v255 = vpop.f32.mrb[0].mxu0
  %v256 = vpop.f32.mrb[0].mxu0
  %v257 = vadd.f32 %v64, %v256
  %v258 = vpop.f32.mrb[0].mxu0
  %259 = vdwg.mxu0
  %260 = vmatprep.subr.bf16.mxu0 0
  %261 = vmatpush1.bf16.msra.mxu0 %v184
  %262 = vmatprep.subr.bf16.mxu0 0
  %263 = vmatpush1.bf16.msra.mxu0 %v185
  %264 = vmatprep.subr.bf16.mxu0 0
  %265 = vmatpush1.bf16.msra.mxu0 0
  %266 = vmatprep.subr.bf16.mxu0 0
  %267 = vmatpush1.bf16.msra.mxu0 0
  %268 = vmatprep.subr.bf16.mxu0 0
  %269 = vmatpush1.bf16.msra.mxu0 0
  %270 = vmatprep.subr.bf16.mxu0 0
  %271 = vmatpush1.bf16.msra.mxu0 0
  %272 = vmatprep.subr.bf16.mxu0 0
  %273 = vmatpush1.bf16.msra.mxu0 0
  %274 = vmatprep.subr.bf16.mxu0 0
  %275 = vmatpush1.bf16.msra.mxu0 0
  %276 = vmatprep.subr.bf16.mxu0 0
  %277 = vmatpush1.bf16.msra.mxu0 0
  %278 = vmatprep.subr.bf16.mxu0 0
  %279 = vmatpush1.bf16.msra.mxu0 0
  %280 = vmatprep.subr.bf16.mxu0 0
  %281 = vmatpush1.bf16.msra.mxu0 0
  %282 = vmatprep.subr.bf16.mxu0 0
  %283 = vmatpush1.bf16.msra.mxu0 0
  %284 = vmatprep.subr.bf16.mxu0 0
  %285 = vmatpush1.bf16.msra.mxu0 0
  %286 = vmatprep.subr.bf16.mxu0 0
  %287 = vmatpush1.bf16.msra.mxu0 0
  %288 = vmatprep.subr.bf16.mxu0 0
  %289 = vmatpush1.bf16.msra.mxu0 0
  %290 = vmatprep.subr.bf16.mxu0 0
  %291 = vmatpush1.bf16.msra.mxu0 0
  %292 = vmatprep.mubr.bf16.mxu0 0
  %293 = vmatmul.mubr.bf16.gmra.mrb[0].mxu0 %v206
  %v294 = vpop.f32.mrb[0].mxu0
  %v295 = vadd.f32 %v246, %v294
  %v296 = vpop.f32.mrb[0].mxu0
  %v297 = vpop.f32.mrb[0].mxu0
  %v298 = vadd.f32 %v249, %v297
  %v299 = vpop.f32.mrb[0].mxu0
  %300 = vmatprep.mubr.bf16.mxu0 0
  %301 = vmatmul.mubr.bf16.gmra.mrb[0].mxu0 %v209
  %v302 = vpop.f32.mrb[0].mxu0
  %v303 = vadd.f32 %v254, %v302
  %v304 = vpop.f32.mrb[0].mxu0
  %v305 = vpop.f32.mrb[0].mxu0
  %v306 = vadd.f32 %v257, %v305
  %v307 = vpop.f32.mrb[0].mxu0
  %308 = vdwg.mxu0
  %v309 = vmax.f32 %v295, 0.0
  %v310 = vmax.f32 %v298, 0.0
  %v311 = vmax.f32 %v303, 0.0
  %v312 = vmax.f32 %v306, 0.0
  %v313 = vpack.c.bf16 %v310, %v309
  %v314 = vpack.c.bf16 %v312, %v311
  %v317 = vunpack.c.l.b16 %v313
  %v318 = vunpack.c.h.b16 %v313
  %v319 = vunpack.c.l.b16 %v314
  %v320 = vunpack.c.h.b16 %v314
  %v321 = vpack.c.b16 %v317, %v317
  %v322 = vpack.c.b16 %v318, %v318
  %v323 = vpack.c.b16 %v319, %v319
  %v324 = vpack.c.b16 %v320, %v320
  %vm329 = vcmask 519168
  %330 = vst.msk [vmem:[%s3] sm:$0xf] %vm329, %v321
  %331 = vst.msk [vmem:[%s3 + $0x4] sm:$0xf] %vm329, %v322
  %332 = vst.msk [vmem:[%s3 + $0x8] sm:$0xf] %vm329, %v323
  %333 = vst.msk [vmem:[%s3 + $0xc] sm:$0xf] %vm329, %v324
  // Predicated region
  $region14: #{wrapped_model_forward.10} parent=0 // pred_check
    _
  $region15: #{wrapped_model_forward.10} parent=0 // pred_check_branch
    %335 = sbr.rel (0) target = $region17
  $region16: #{wrapped_model_forward.10} parent=0 // pred_region
    _
  $region17: #{wrapped_model_forward.10} parent=0 // pred_fallthru
    _
  // Predicated region
  $region18: #{wrapped_model_forward.10} parent=0 // pred_check
    _
  $region19: #{wrapped_model_forward.10} parent=0 // pred_check_branch
    %337 = sbr.rel (0) target = $region21
  $region20: #{wrapped_model_forward.10} parent=0 // pred_region
    _
  $region21: #{wrapped_model_forward.10} parent=0 // pred_fallthru
    _

// kernel: wrapped_model_forward.11
$region0: #{wrapped_model_forward.11}
  #allocation0 [shape = 'u32[]', space=smem, size = 0x4, offset = 0x4, fixed_abs, tag = 'smem constant byte address 0x4 - core index']
  #allocation1 [shape = 'u32[144,128]{1,0:T(1,128)}', space=vmem, size = 0x12000, scoped, tag = 'internal scratch']
  %s0 = inlined_call_operand.vmem [shape: bf16[32,576], index: 0, kind: input, shape index: {}]
  %s1 = inlined_call_operand.vmem [shape: bf16[576,64], index: 1, kind: input, shape index: {}]
  %s2 = inlined_call_operand.vmem [shape: f32[1,64], index: 2, kind: input, shape index: {}]
  %s3 = inlined_call_operand.vmem [shape: bf16[32,64], index: 3, kind: output, shape index: {}]
  %s4 = sld [smem:[#allocation0]]
  $region22: #{wrapped_model_forward.11} parent=0
    _
  %s6 = ssub.s32 1, %s4
  %s7 = scalar_select 0, %s6, %s4
  // Predicated region
  $region2: #{wrapped_model_forward.11} parent=0 // pred_check
    _
  $region3: #{wrapped_model_forward.11} parent=0 // pred_check_branch
    %9 = sbr.rel (0) target = $region5
  $region4: #{wrapped_model_forward.11} parent=0 // pred_region
    _
  $region5: #{wrapped_model_forward.11} parent=0 // pred_fallthru
    _
  // Predicated region
  $region6: #{wrapped_model_forward.11} parent=0 // pred_check
    _
  $region7: #{wrapped_model_forward.11} parent=0 // pred_check_branch
    %11 = sbr.rel (0) target = $region9
  $region8: #{wrapped_model_forward.11} parent=0 // pred_region
    _
  $region9: #{wrapped_model_forward.11} parent=0 // pred_fallthru
    _
  // Predicated region
  $region10: #{wrapped_model_forward.11} parent=0 // pred_check
    _
  $region11: #{wrapped_model_forward.11} parent=0 // pred_check_branch
    %13 = sbr.rel (0) target = $region13
  $region12: #{wrapped_model_forward.11} parent=0 // pred_region
    _
  $region13: #{wrapped_model_forward.11} parent=0 // pred_fallthru
    _
  %v15 = vld [vmem:[%s0] sm:$0xff]
  %v16 = vld [vmem:[%s0 + $0x8] sm:$0xff]
  %v17 = vld [vmem:[%s0 + $0x10] sm:$0xf]
  %v18 = vld [vmem:[%s0 + $0x14] sm:$0xff]
  %v19 = vld [vmem:[%s0 + $0x1c] sm:$0xff]
  %v20 = vld [vmem:[%s0 + $0x24] sm:$0xf]
  %v21 = vld [vmem:[%s0 + $0x28] sm:$0xff]
  %v22 = vld [vmem:[%s0 + $0x30] sm:$0xff]
  %v23 = vld [vmem:[%s0 + $0x38] sm:$0xf]
  %v24 = vld [vmem:[%s0 + $0x3c] sm:$0xff]
  %v25 = vld [vmem:[%s0 + $0x44] sm:$0xff]
  %v26 = vld [vmem:[%s0 + $0x4c] sm:$0xf]
  %v27 = vld [vmem:[%s1] sm:$0xf]
  %v28 = vld [vmem:[%s1 + $0x4] sm:$0xf]
  %v29 = vld [vmem:[%s1 + $0x8] sm:$0xf]
  %v30 = vld [vmem:[%s1 + $0xc] sm:$0xf]
  %v31 = vld [vmem:[%s1 + $0x10] sm:$0xf]
  %v32 = vld [vmem:[%s1 + $0x14] sm:$0xf]
  %v33 = vld [vmem:[%s1 + $0x18] sm:$0xf]
  %v34 = vld [vmem:[%s1 + $0x1c] sm:$0xf]
  %v35 = vld [vmem:[%s1 + $0x20] sm:$0xf]
  %v36 = vld [vmem:[%s1 + $0x24] sm:$0xf]
  %v37 = vld [vmem:[%s1 + $0x28] sm:$0xf]
  %v38 = vld [vmem:[%s1 + $0x2c] sm:$0xf]
  %v39 = vld [vmem:[%s1 + $0x30] sm:$0xf]
  %v40 = vld [vmem:[%s1 + $0x34] sm:$0xf]
  %v41 = vld [vmem:[%s1 + $0x38] sm:$0xf]
  %v42 = vld [vmem:[%s1 + $0x3c] sm:$0xf]
  %v43 = vld [vmem:[%s1 + $0x40] sm:$0xf]
  %v44 = vld [vmem:[%s1 + $0x44] sm:$0xf]
  %v45 = vld [vmem:[%s1 + $0x48] sm:$0xf]
  %v46 = vld [vmem:[%s1 + $0x4c] sm:$0xf]
  %v47 = vld [vmem:[%s1 + $0x50] sm:$0xf]
  %v48 = vld [vmem:[%s1 + $0x54] sm:$0xf]
  %v49 = vld [vmem:[%s1 + $0x58] sm:$0xf]
  %v50 = vld [vmem:[%s1 + $0x5c] sm:$0xf]
  %v51 = vld [vmem:[%s1 + $0x60] sm:$0xf]
  %v52 = vld [vmem:[%s1 + $0x64] sm:$0xf]
  %v53 = vld [vmem:[%s1 + $0x68] sm:$0xf]
  %v54 = vld [vmem:[%s1 + $0x6c] sm:$0xf]
  %v55 = vld [vmem:[%s1 + $0x70] sm:$0xf]
  %v56 = vld [vmem:[%s1 + $0x74] sm:$0xf]
  %v57 = vld [vmem:[%s1 + $0x78] sm:$0xf]
  %v58 = vld [vmem:[%s1 + $0x7c] sm:$0xf]
  %v59 = vld [vmem:[%s1 + $0x80] sm:$0xf]
  %v60 = vld [vmem:[%s1 + $0x84] sm:$0xf]
  %v61 = vld [vmem:[%s1 + $0x88] sm:$0xf]
  %v62 = vld [vmem:[%s1 + $0x8c] sm:$0xf]
  %v63 = vld [vmem:[%s1 + $0x90] sm:$0xf]
  %v64 = vld [vmem:[%s1 + $0x94] sm:$0xf]
  %v65 = vld [vmem:[%s1 + $0x98] sm:$0xf]
  %v66 = vld [vmem:[%s1 + $0x9c] sm:$0xf]
  %v67 = vld [vmem:[%s1 + $0xa0] sm:$0xf]
  %v68 = vld [vmem:[%s1 + $0xa4] sm:$0xf]
  %v69 = vld [vmem:[%s1 + $0xa8] sm:$0xf]
  %v70 = vld [vmem:[%s1 + $0xac] sm:$0xf]
  %v71 = vld [vmem:[%s1 + $0xb0] sm:$0xf]
  %v72 = vld [vmem:[%s1 + $0xb4] sm:$0xf]
  %v73 = vld [vmem:[%s1 + $0xb8] sm:$0xf]
  %v74 = vld [vmem:[%s1 + $0xbc] sm:$0xf]
  %v75 = vld [vmem:[%s1 + $0xc0] sm:$0xf]
  %v76 = vld [vmem:[%s1 + $0xc4] sm:$0xf]
  %v77 = vld [vmem:[%s1 + $0xc8] sm:$0xf]
  %v78 = vld [vmem:[%s1 + $0xcc] sm:$0xf]
  %v79 = vld [vmem:[%s1 + $0xd0] sm:$0xf]
  %v80 = vld [vmem:[%s1 + $0xd4] sm:$0xf]
  %v81 = vld [vmem:[%s1 + $0xd8] sm:$0xf]
  %v82 = vld [vmem:[%s1 + $0xdc] sm:$0xf]
  %v83 = vld [vmem:[%s1 + $0xe0] sm:$0xf]
  %v84 = vld [vmem:[%s1 + $0xe4] sm:$0xf]
  %v85 = vld [vmem:[%s1 + $0xe8] sm:$0xf]
  %v86 = vld [vmem:[%s1 + $0xec] sm:$0xf]
  %v87 = vld [vmem:[%s1 + $0xf0] sm:$0xf]
  %v88 = vld [vmem:[%s1 + $0xf4] sm:$0xf]
  %v89 = vld [vmem:[%s1 + $0xf8] sm:$0xf]
  %v90 = vld [vmem:[%s1 + $0xfc] sm:$0xf]
  %v91 = vld [vmem:[%s1 + $0x100] sm:$0xf]
  %v92 = vld [vmem:[%s1 + $0x104] sm:$0xf]
  %v93 = vld [vmem:[%s1 + $0x108] sm:$0xf]
  %v94 = vld [vmem:[%s1 + $0x10c] sm:$0xf]
  %v95 = vld [vmem:[%s1 + $0x110] sm:$0xf]
  %v96 = vld [vmem:[%s1 + $0x114] sm:$0xf]
  %v97 = vld [vmem:[%s1 + $0x118] sm:$0xf]
  %v98 = vld [vmem:[%s1 + $0x11c] sm:$0xf]
  %v99 = vld [vmem:[%s2] sm:$0x1]
  %v101 = vlaneseq
  %v102 = vshrl.u32 %v101, 7
  %v103 = vsub.s32 0, %v102
  %v104 = vrot.slane %v99, %v103
  %v118 = vunpack.c.l.b16 %v15
  %v119 = vunpack.c.h.b16 %v15
  %v120 = vunpack.c.l.b16 %v16
  %v121 = vunpack.c.h.b16 %v16
  %v122 = vunpack.c.l.b16 %v17
  %v123 = vunpack.c.l.b16 %v18
  %v124 = vunpack.c.h.b16 %v18
  %v125 = vunpack.c.l.b16 %v19
  %v126 = vunpack.c.h.b16 %v19
  %v127 = vunpack.c.l.b16 %v20
  %v128 = vunpack.c.l.b16 %v21
  %v129 = vunpack.c.h.b16 %v21
  %v130 = vunpack.c.l.b16 %v22
  %v131 = vunpack.c.h.b16 %v22
  %v132 = vunpack.c.l.b16 %v23
  %v133 = vunpack.c.l.b16 %v24
  %v134 = vunpack.c.h.b16 %v24
  %v135 = vunpack.c.l.b16 %v25
  %v136 = vunpack.c.h.b16 %v25
  %v137 = vunpack.c.l.b16 %v26
  %v138 = vpack.c.b16 %v123, %v118
  %v139 = vpack.c.b16 %v124, %v119
  %v140 = vpack.c.b16 %v125, %v120
  %v141 = vpack.c.b16 %v126, %v121
  %v142 = vpack.c.b16 %v127, %v122
  %v143 = vpack.c.b16 %v133, %v128
  %v144 = vpack.c.b16 %v134, %v129
  %v145 = vpack.c.b16 %v135, %v130
  %v146 = vpack.c.b16 %v136, %v131
  %v147 = vpack.c.b16 %v137, %v132
  %v228 = vunpack.c.l.b16 %v27
  %v229 = vunpack.c.l.b16 %v28
  %v230 = vunpack.c.l.b16 %v29
  %v231 = vunpack.c.l.b16 %v30
  %v232 = vunpack.c.l.b16 %v31
  %v233 = vunpack.c.l.b16 %v32
  %v234 = vunpack.c.l.b16 %v33
  %v235 = vunpack.c.l.b16 %v34
  %v236 = vunpack.c.l.b16 %v35
  %v237 = vunpack.c.l.b16 %v36
  %v238 = vunpack.c.l.b16 %v37
  %v239 = vunpack.c.l.b16 %v38
  %v240 = vunpack.c.l.b16 %v39
  %v241 = vunpack.c.l.b16 %v40
  %v242 = vunpack.c.l.b16 %v41
  %v243 = vunpack.c.l.b16 %v42
  %v244 = vunpack.c.l.b16 %v43
  %v245 = vunpack.c.l.b16 %v44
  %v246 = vunpack.c.l.b16 %v45
  %v247 = vunpack.c.l.b16 %v46
  %v248 = vunpack.c.l.b16 %v47
  %v249 = vunpack.c.l.b16 %v48
  %v250 = vunpack.c.l.b16 %v49
  %v251 = vunpack.c.l.b16 %v50
  %v252 = vunpack.c.l.b16 %v51
  %v253 = vunpack.c.l.b16 %v52
  %v254 = vunpack.c.l.b16 %v53
  %v255 = vunpack.c.l.b16 %v54
  %v256 = vunpack.c.l.b16 %v55
  %v257 = vunpack.c.l.b16 %v56
  %v258 = vunpack.c.l.b16 %v57
  %v259 = vunpack.c.l.b16 %v58
  %v260 = vunpack.c.l.b16 %v59
  %v261 = vunpack.c.l.b16 %v60
  %v262 = vunpack.c.l.b16 %v61
  %v263 = vunpack.c.l.b16 %v62
  %v264 = vunpack.c.l.b16 %v63
  %v265 = vunpack.c.l.b16 %v64
  %v266 = vunpack.c.l.b16 %v65
  %v267 = vunpack.c.l.b16 %v66
  %v268 = vunpack.c.l.b16 %v67
  %v269 = vunpack.c.l.b16 %v68
  %v270 = vunpack.c.l.b16 %v69
  %v271 = vunpack.c.l.b16 %v70
  %v272 = vunpack.c.l.b16 %v71
  %v273 = vunpack.c.l.b16 %v72
  %v274 = vunpack.c.l.b16 %v73
  %v275 = vunpack.c.l.b16 %v74
  %v276 = vunpack.c.l.b16 %v75
  %v277 = vunpack.c.l.b16 %v76
  %v278 = vunpack.c.l.b16 %v77
  %v279 = vunpack.c.l.b16 %v78
  %v280 = vunpack.c.l.b16 %v79
  %v281 = vunpack.c.l.b16 %v80
  %v282 = vunpack.c.l.b16 %v81
  %v283 = vunpack.c.l.b16 %v82
  %v284 = vunpack.c.l.b16 %v83
  %v285 = vunpack.c.l.b16 %v84
  %v286 = vunpack.c.l.b16 %v85
  %v287 = vunpack.c.l.b16 %v86
  %v288 = vunpack.c.l.b16 %v87
  %v289 = vunpack.c.l.b16 %v88
  %v290 = vunpack.c.l.b16 %v89
  %v291 = vunpack.c.l.b16 %v90
  %v292 = vunpack.c.l.b16 %v91
  %v293 = vunpack.c.l.b16 %v92
  %v294 = vunpack.c.l.b16 %v93
  %v295 = vunpack.c.l.b16 %v94
  %v296 = vunpack.c.l.b16 %v95
  %v297 = vunpack.c.l.b16 %v96
  %v298 = vunpack.c.l.b16 %v97
  %v299 = vunpack.c.l.b16 %v98
  %v300 = vpack.c.b16 %v229, %v228
  %v301 = vpack.c.b16 %v231, %v230
  %v302 = vpack.c.b16 %v233, %v232
  %v303 = vpack.c.b16 %v235, %v234
  %v304 = vpack.c.b16 %v237, %v236
  %v305 = vpack.c.b16 %v239, %v238
  %v306 = vpack.c.b16 %v241, %v240
  %v307 = vpack.c.b16 %v243, %v242
  %v308 = vpack.c.b16 %v245, %v244
  %v309 = vpack.c.b16 %v247, %v246
  %v310 = vpack.c.b16 %v249, %v248
  %v311 = vpack.c.b16 %v251, %v250
  %v312 = vpack.c.b16 %v253, %v252
  %v313 = vpack.c.b16 %v255, %v254
  %v314 = vpack.c.b16 %v257, %v256
  %v315 = vpack.c.b16 %v259, %v258
  %v316 = vpack.c.b16 %v261, %v260
  %v317 = vpack.c.b16 %v263, %v262
  %v318 = vpack.c.b16 %v265, %v264
  %v319 = vpack.c.b16 %v267, %v266
  %v320 = vpack.c.b16 %v269, %v268
  %v321 = vpack.c.b16 %v271, %v270
  %v322 = vpack.c.b16 %v273, %v272
  %v323 = vpack.c.b16 %v275, %v274
  %v324 = vpack.c.b16 %v277, %v276
  %v325 = vpack.c.b16 %v279, %v278
  %v326 = vpack.c.b16 %v281, %v280
  %v327 = vpack.c.b16 %v283, %v282
  %v328 = vpack.c.b16 %v285, %v284
  %v329 = vpack.c.b16 %v287, %v286
  %v330 = vpack.c.b16 %v289, %v288
  %v331 = vpack.c.b16 %v291, %v290
  %v332 = vpack.c.b16 %v293, %v292
  %v333 = vpack.c.b16 %v295, %v294
  %v334 = vpack.c.b16 %v297, %v296
  %v335 = vpack.c.b16 %v299, %v298
  %vm372 = vcmask 523264
  %v374 = vsel %vm372, %v142, 0
  %v377 = vsel %vm372, %v147, 0
  %379 = vmatprep.subr.bf16.mxu0 0
  %380 = vmatpush1.bf16.msra.mxu0 %v300
  %381 = vmatprep.subr.bf16.mxu0 0
  %382 = vmatpush1.bf16.msra.mxu0 %v301
  %383 = vmatprep.subr.bf16.mxu0 0
  %384 = vmatpush1.bf16.msra.mxu0 %v302
  %385 = vmatprep.subr.bf16.mxu0 0
  %386 = vmatpush1.bf16.msra.mxu0 %v303
  %387 = vmatprep.subr.bf16.mxu0 0
  %388 = vmatpush1.bf16.msra.mxu0 %v304
  %389 = vmatprep.subr.bf16.mxu0 0
  %390 = vmatpush1.bf16.msra.mxu0 %v305
  %391 = vmatprep.subr.bf16.mxu0 0
  %392 = vmatpush1.bf16.msra.mxu0 %v306
  %393 = vmatprep.subr.bf16.mxu0 0
  %394 = vmatpush1.bf16.msra.mxu0 %v307
  %395 = vmatprep.subr.bf16.mxu0 0
  %396 = vmatpush1.bf16.msra.mxu0 %v308
  %397 = vmatprep.subr.bf16.mxu0 0
  %398 = vmatpush1.bf16.msra.mxu0 %v309
  %399 = vmatprep.subr.bf16.mxu0 0
  %400 = vmatpush1.bf16.msra.mxu0 %v310
  %401 = vmatprep.subr.bf16.mxu0 0
  %402 = vmatpush1.bf16.msra.mxu0 %v311
  %403 = vmatprep.subr.bf16.mxu0 0
  %404 = vmatpush1.bf16.msra.mxu0 %v312
  %405 = vmatprep.subr.bf16.mxu0 0
  %406 = vmatpush1.bf16.msra.mxu0 %v313
  %407 = vmatprep.subr.bf16.mxu0 0
  %408 = vmatpush1.bf16.msra.mxu0 %v314
  %409 = vmatprep.subr.bf16.mxu0 0
  %410 = vmatpush1.bf16.msra.mxu0 %v315
  %411 = vmatprep.mubr.bf16.mxu0 %v139
  %412 = vmatmul.mubr.bf16.gmra.mrb[0].mxu0 %v138
  %v413 = vpop.f32.mrb[0].mxu0
  %v414 = vadd.f32 %v104, %v413
  %v415 = vpop.f32.mrb[0].mxu0
  %v416 = vpop.f32.mrb[0].mxu0
  %v417 = vadd.f32 %v104, %v416
  %v418 = vpop.f32.mrb[0].mxu0
  %419 = vmatprep.mubr.bf16.mxu0 %v144
  %420 = vmatmul.mubr.bf16.gmra.mrb[0].mxu0 %v143
  %v421 = vpop.f32.mrb[0].mxu0
  %v422 = vadd.f32 %v104, %v421
  %v423 = vpop.f32.mrb[0].mxu0
  %v424 = vpop.f32.mrb[0].mxu0
  %v425 = vadd.f32 %v104, %v424
  %v426 = vpop.f32.mrb[0].mxu0
  %427 = vdwg.mxu0
  %428 = vmatprep.subr.bf16.mxu0 0
  %429 = vmatpush1.bf16.msra.mxu0 %v316
  %430 = vmatprep.subr.bf16.mxu0 0
  %431 = vmatpush1.bf16.msra.mxu0 %v317
  %432 = vmatprep.subr.bf16.mxu0 0
  %433 = vmatpush1.bf16.msra.mxu0 %v318
  %434 = vmatprep.subr.bf16.mxu0 0
  %435 = vmatpush1.bf16.msra.mxu0 %v319
  %436 = vmatprep.subr.bf16.mxu0 0
  %437 = vmatpush1.bf16.msra.mxu0 %v320
  %438 = vmatprep.subr.bf16.mxu0 0
  %439 = vmatpush1.bf16.msra.mxu0 %v321
  %440 = vmatprep.subr.bf16.mxu0 0
  %441 = vmatpush1.bf16.msra.mxu0 %v322
  %442 = vmatprep.subr.bf16.mxu0 0
  %443 = vmatpush1.bf16.msra.mxu0 %v323
  %444 = vmatprep.subr.bf16.mxu0 0
  %445 = vmatpush1.bf16.msra.mxu0 %v324
  %446 = vmatprep.subr.bf16.mxu0 0
  %447 = vmatpush1.bf16.msra.mxu0 %v325
  %448 = vmatprep.subr.bf16.mxu0 0
  %449 = vmatpush1.bf16.msra.mxu0 %v326
  %450 = vmatprep.subr.bf16.mxu0 0
  %451 = vmatpush1.bf16.msra.mxu0 %v327
  %452 = vmatprep.subr.bf16.mxu0 0
  %453 = vmatpush1.bf16.msra.mxu0 %v328
  %454 = vmatprep.subr.bf16.mxu0 0
  %455 = vmatpush1.bf16.msra.mxu0 %v329
  %456 = vmatprep.subr.bf16.mxu0 0
  %457 = vmatpush1.bf16.msra.mxu0 %v330
  %458 = vmatprep.subr.bf16.mxu0 0
  %459 = vmatpush1.bf16.msra.mxu0 %v331
  %460 = vmatprep.mubr.bf16.mxu0 %v141
  %461 = vmatmul.mubr.bf16.gmra.mrb[0].mxu0 %v140
  %v462 = vpop.f32.mrb[0].mxu0
  %v463 = vadd.f32 %v414, %v462
  %v464 = vpop.f32.mrb[0].mxu0
  %v465 = vpop.f32.mrb[0].mxu0
  %v466 = vadd.f32 %v417, %v465
  %v467 = vpop.f32.mrb[0].mxu0
  %468 = vmatprep.mubr.bf16.mxu0 %v146
  %469 = vmatmul.mubr.bf16.gmra.mrb[0].mxu0 %v145
  %v470 = vpop.f32.mrb[0].mxu0
  %v471 = vadd.f32 %v422, %v470
  %v472 = vpop.f32.mrb[0].mxu0
  %v473 = vpop.f32.mrb[0].mxu0
  %v474 = vadd.f32 %v425, %v473
  %v475 = vpop.f32.mrb[0].mxu0
  %476 = vdwg.mxu0
  %477 = vmatprep.subr.bf16.mxu0 0
  %478 = vmatpush1.bf16.msra.mxu0 %v332
  %479 = vmatprep.subr.bf16.mxu0 0
  %480 = vmatpush1.bf16.msra.mxu0 %v333
  %481 = vmatprep.subr.bf16.mxu0 0
  %482 = vmatpush1.bf16.msra.mxu0 %v334
  %483 = vmatprep.subr.bf16.mxu0 0
  %484 = vmatpush1.bf16.msra.mxu0 %v335
  %485 = vmatprep.subr.bf16.mxu0 0
  %486 = vmatpush1.bf16.msra.mxu0 0
  %487 = vmatprep.subr.bf16.mxu0 0
  %488 = vmatpush1.bf16.msra.mxu0 0
  %489 = vmatprep.subr.bf16.mxu0 0
  %490 = vmatpush1.bf16.msra.mxu0 0
  %491 = vmatprep.subr.bf16.mxu0 0
  %492 = vmatpush1.bf16.msra.mxu0 0
  %493 = vmatprep.subr.bf16.mxu0 0
  %494 = vmatpush1.bf16.msra.mxu0 0
  %495 = vmatprep.subr.bf16.mxu0 0
  %496 = vmatpush1.bf16.msra.mxu0 0
  %497 = vmatprep.subr.bf16.mxu0 0
  %498 = vmatpush1.bf16.msra.mxu0 0
  %499 = vmatprep.subr.bf16.mxu0 0
  %500 = vmatpush1.bf16.msra.mxu0 0
  %501 = vmatprep.subr.bf16.mxu0 0
  %502 = vmatpush1.bf16.msra.mxu0 0
  %503 = vmatprep.subr.bf16.mxu0 0
  %504 = vmatpush1.bf16.msra.mxu0 0
  %505 = vmatprep.subr.bf16.mxu0 0
  %506 = vmatpush1.bf16.msra.mxu0 0
  %507 = vmatprep.subr.bf16.mxu0 0
  %508 = vmatpush1.bf16.msra.mxu0 0
  %509 = vmatprep.mubr.bf16.mxu0 0
  %510 = vmatmul.mubr.bf16.gmra.mrb[0].mxu0 %v374
  %v511 = vpop.f32.mrb[0].mxu0
  %v512 = vadd.f32 %v463, %v511
  %v513 = vpop.f32.mrb[0].mxu0
  %v514 = vpop.f32.mrb[0].mxu0
  %v515 = vadd.f32 %v466, %v514
  %v516 = vpop.f32.mrb[0].mxu0
  %517 = vmatprep.mubr.bf16.mxu0 0
  %518 = vmatmul.mubr.bf16.gmra.mrb[0].mxu0 %v377
  %v519 = vpop.f32.mrb[0].mxu0
  %v520 = vadd.f32 %v471, %v519
  %v521 = vpop.f32.mrb[0].mxu0
  %v522 = vpop.f32.mrb[0].mxu0
  %v523 = vadd.f32 %v474, %v522
  %v524 = vpop.f32.mrb[0].mxu0
  %525 = vdwg.mxu0
  %v526 = vmax.f32 %v512, 0.0
  %v527 = vmax.f32 %v515, 0.0
  %v528 = vmax.f32 %v520, 0.0
  %v529 = vmax.f32 %v523, 0.0
  %v530 = vpack.c.bf16 %v527, %v526
  %v531 = vpack.c.bf16 %v529, %v528
  %v534 = vunpack.c.l.b16 %v530
  %v535 = vunpack.c.h.b16 %v530
  %v536 = vunpack.c.l.b16 %v531
  %v537 = vunpack.c.h.b16 %v531
  %v538 = vpack.c.b16 %v534, %v534
  %v539 = vpack.c.b16 %v535, %v535
  %v540 = vpack.c.b16 %v536, %v536
  %v541 = vpack.c.b16 %v537, %v537
  %vm546 = vcmask 519168
  %547 = vst.msk [vmem:[%s3] sm:$0xf] %vm546, %v538
  %548 = vst.msk [vmem:[%s3 + $0x4] sm:$0xf] %vm546, %v539
  %549 = vst.msk [vmem:[%s3 + $0x8] sm:$0xf] %vm546, %v540
  %550 = vst.msk [vmem:[%s3 + $0xc] sm:$0xf] %vm546, %v541
  // Predicated region
  $region14: #{wrapped_model_forward.11} parent=0 // pred_check
    _
  $region15: #{wrapped_model_forward.11} parent=0 // pred_check_branch
    %552 = sbr.rel (0) target = $region17
  $region16: #{wrapped_model_forward.11} parent=0 // pred_region
    _
  $region17: #{wrapped_model_forward.11} parent=0 // pred_fallthru
    _
  // Predicated region
  $region18: #{wrapped_model_forward.11} parent=0 // pred_check
    _
  $region19: #{wrapped_model_forward.11} parent=0 // pred_check_branch
    %554 = sbr.rel (0) target = $region21
  $region20: #{wrapped_model_forward.11} parent=0 // pred_region
    _
  $region21: #{wrapped_model_forward.11} parent=0 // pred_fallthru
    _

// kernel: wrapped_model_forward.12
$region0: #{wrapped_model_forward.12}
  #allocation0 [shape = 'u32[]', space=smem, size = 0x4, offset = 0x4, fixed_abs, tag = 'smem constant byte address 0x4 - core index']
  #allocation1 [shape = 'u32[144,128]{1,0:T(1,128)}', space=vmem, size = 0x12000, scoped, tag = 'internal scratch']
  %s0 = inlined_call_operand.vmem [shape: bf16[4,32,256], index: 0, kind: input, shape index: {}]
  %s1 = inlined_call_operand.vmem [shape: bf16[4,256,32], index: 1, kind: input, shape index: {}]
  %s2 = inlined_call_operand.vmem [shape: f32[1,32], index: 2, kind: input, shape index: {}]
  %s3 = inlined_call_operand.vmem [shape: bf16[4,32,32], index: 3, kind: output, shape index: {}]
  %s4 = sld [smem:[#allocation0]]
  $region45: #{wrapped_model_forward.12} parent=0
    _
  %s6 = ssub.s32 1, %s4
  %s7 = scalar_select 0, %s6, %s4
  loop: start=0, step=1, limit=6
  $region2: #{wrapped_model_forward.12} parent=0 // loop_pre_header
    _
  $region3: #{wrapped_model_forward.12} parent=0 // loop_header
    %s9 = sphi 0, %s13
    %p10 = scmp.ge.s32.totalorder %s9, 6
    %s16 = sphi 0, %s28
    %s17 = sphi 0, %s24
    %s18 = sphi 0, %s16
    %s19 = sphi 0, %s17
    %s20 = sphi 0, %s18
    %s21 = sphi 0, %s19
    %s33 = sphi 0, %s35
    %s36 = sphi 0, %s33
    %s37 = sphi 0, %s36
    %s53 = sphi 0, %s37
    %s59 = sphi 0, %s61
    %s62 = sphi 0, %s59
    %s63 = sphi 0, %s62
    %s79 = sphi 0, %s63
    %s83 = sphi 0, %s83
    %s85 = sphi 0, %s83
    %s86 = sphi 0, %s85
    %s100 = sphi 0, %s86
    %s108 = sphi 0, %s110
    %s111 = sphi 0, %s108
    %s112 = sphi 0, %s111
    %s128 = sphi 0, %s112
  $region4: #{wrapped_model_forward.12} parent=0 // loop_header_branch
    %12 = sbr.rel (%p10) target = $region8
  $region5: #{wrapped_model_forward.12} parent=0 // loop_body
    %s14 = ssub.s32 %s9, 1
    %s15 = ssub.s32 %s9, 2
    %s22 = sadd.s32 1, %s17
    %p23 = scmp.ge.s32.totalorder %s22, 1
    %s24 = scalar_select %p23, 0, %s22
    %s25 = sadd.s32 1, %s16
    %s26 = scalar_select %p23, %s25, %s16
    %p27 = scmp.ge.s32.totalorder %s26, 4
    %s28 = scalar_select %p27, 0, %s26
    %s29 = ssub.s32 %s16, %s28
    %s30 = ssub.s32 %s17, %s24
    %s31 = sor.u32 %s29, %s30
    %p32 = scmp.eq.s32.totalorder %s31, 0
    %s34 = sadd.s32 %s33, 1
    %s35 = scalar_select %p32, %s33, %s34
    %p38 = pneg %p32
    %p39 = scmp.eq.s32.totalorder %s9, 3
    %p40 = por %p38, %p39
    %p41 = scmp.ne.s32.totalorder %s33, %s36
    %p42 = scmp.eq.s32.totalorder %s9, 0
    %p43 = por %p41, %p42
    %p44 = scmp.ne.s32.totalorder %s33, %s36
    %p45 = scmp.eq.s32.totalorder %s14, 3
    %p46 = por %p44, %p45
    %p47 = scmp.ne.s32.totalorder %s36, %s37
    %p48 = scmp.eq.s32.totalorder %s14, 0
    %p49 = por %p47, %p48
    %p50 = scmp.ne.s32.totalorder %s36, %s37
    %p51 = scmp.eq.s32.totalorder %s15, 3
    %p52 = por %p50, %p51
    %p54 = scmp.ne.s32.totalorder %s37, %s53
    %p55 = scmp.eq.s32.totalorder %s15, 0
    %p56 = por %p54, %p55
    %s57 = ssub.s32 %s16, %s28
    %p58 = scmp.eq.s32.totalorder %s57, 0
    %s60 = sadd.s32 %s59, 1
    %s61 = scalar_select %p58, %s59, %s60
    %p64 = pneg %p58
    %p65 = scmp.eq.s32.totalorder %s9, 3
    %p66 = por %p64, %p65
    %p67 = scmp.ne.s32.totalorder %s59, %s62
    %p68 = scmp.eq.s32.totalorder %s9, 0
    %p69 = por %p67, %p68
    %p70 = scmp.ne.s32.totalorder %s59, %s62
    %p71 = scmp.eq.s32.totalorder %s14, 3
    %p72 = por %p70, %p71
    %p73 = scmp.ne.s32.totalorder %s62, %s63
    %p74 = scmp.eq.s32.totalorder %s14, 0
    %p75 = por %p73, %p74
    %p76 = scmp.ne.s32.totalorder %s62, %s63
    %p77 = scmp.eq.s32.totalorder %s15, 3
    %p78 = por %p76, %p77
    %p80 = scmp.ne.s32.totalorder %s63, %s79
    %p81 = scmp.eq.s32.totalorder %s15, 0
    %p82 = por %p80, %p81
    %s84 = sadd.s32 %s83, 1
    %p87 = scmp.eq.s32.totalorder %s9, 3
    %p88 = scmp.ne.s32.totalorder %s83, %s85
    %p89 = scmp.eq.s32.totalorder %s9, 0
    %p90 = por %p88, %p89
    %p91 = scmp.ne.s32.totalorder %s83, %s85
    %p92 = scmp.eq.s32.totalorder %s14, 3
    %p93 = por %p91, %p92
    %p94 = scmp.ne.s32.totalorder %s85, %s86
    %p95 = scmp.eq.s32.totalorder %s14, 0
    %p96 = por %p94, %p95
    %p97 = scmp.ne.s32.totalorder %s85, %s86
    %p98 = scmp.eq.s32.totalorder %s15, 3
    %p99 = por %p97, %p98
    %p101 = scmp.ne.s32.totalorder %s86, %s100
    %p102 = scmp.eq.s32.totalorder %s15, 0
    %p103 = por %p101, %p102
    %s104 = ssub.s32 %s16, %s28
    %s105 = ssub.s32 %s17, %s24
    %s106 = sor.u32 %s104, %s105
    %p107 = scmp.eq.s32.totalorder %s106, 0
    %s109 = sadd.s32 %s108, 1
    %s110 = scalar_select %p107, %s108, %s109
    %p113 = pneg %p107
    %p114 = scmp.eq.s32.totalorder %s9, 3
    %p115 = por %p113, %p114
    %p116 = scmp.ne.s32.totalorder %s108, %s111
    %p117 = scmp.eq.s32.totalorder %s9, 0
    %p118 = por %p116, %p117
    %p119 = scmp.ne.s32.totalorder %s108, %s111
    %p120 = scmp.eq.s32.totalorder %s14, 3
    %p121 = por %p119, %p120
    %p122 = scmp.ne.s32.totalorder %s111, %s112
    %p123 = scmp.eq.s32.totalorder %s14, 0
    %p124 = por %p122, %p123
    %p125 = scmp.ne.s32.totalorder %s111, %s112
    %p126 = scmp.eq.s32.totalorder %s15, 3
    %p127 = por %p125, %p126
    %p129 = scmp.ne.s32.totalorder %s112, %s128
    %p130 = scmp.eq.s32.totalorder %s15, 0
    %p131 = por %p129, %p130
    %p132 = scmp.le.s32.totalorder 1, %s9
    %p133 = scmp.lt.s32.totalorder %s9, 5
    %p134 = pnand %p132, %p133
    %p135 = pneg %p134
    // Predicated region
    $region9: #{wrapped_model_forward.12} parent=5 // pred_check
      _
    $region10: #{wrapped_model_forward.12} parent=5 // pred_check_branch
      %137 = sbr.rel (%p134) target = $region12
    $region11: #{wrapped_model_forward.12} parent=5 // pred_region
      %s138 = ssub.s32 %s9, 1
      // Predicated region
      $region13: #{wrapped_model_forward.12} parent=11 // pred_check
        %p139 = pneg %p96
      $region14: #{wrapped_model_forward.12} parent=11 // pred_check_branch
        %141 = sbr.rel (%p139) target = $region16
      $region15: #{wrapped_model_forward.12} parent=11 // pred_region
        _
      $region16: #{wrapped_model_forward.12} parent=11 // pred_fallthru
        _
    $region12: #{wrapped_model_forward.12} parent=5 // pred_fallthru
      _
    %p142 = scmp.lt.s32.totalorder %s9, 4
    // Predicated region
    $region17: #{wrapped_model_forward.12} parent=5 // pred_check
      %p143 = pneg %p142
    $region18: #{wrapped_model_forward.12} parent=5 // pred_check_branch
      %145 = sbr.rel (%p143) target = $region20
    $region19: #{wrapped_model_forward.12} parent=5 // pred_region
      // Predicated region
      $region21: #{wrapped_model_forward.12} parent=19 // pred_check
        %p146 = pneg %p43
      $region22: #{wrapped_model_forward.12} parent=19 // pred_check_branch
        %148 = sbr.rel (%p146) target = $region24
      $region23: #{wrapped_model_forward.12} parent=19 // pred_region
        %s149 = smul.u32 4, %s17
        %p150 = scmp.lt.s32.totalorder %s16, 3
        %s151 = scalar_select %p150, %s16, 3
        %p152 = scmp.lt.s32.totalorder %s149, 3
        %s153 = scalar_select %p152, %s149, 3
        %s154 = smul.addr %s153, 2
        %s155 = smul.addr %s151, 8
        %s156 = sadd.s32 %s154, %s155
        %s157 = smul.addr %s156, 4
        %s158 = scalar_lea.vmem %s0, %s157
        %s159 = smul.u32 4, %s17
      $region24: #{wrapped_model_forward.12} parent=19 // pred_fallthru
        _
      // Predicated region
      $region25: #{wrapped_model_forward.12} parent=19 // pred_check
        %p160 = pneg %p69
      $region26: #{wrapped_model_forward.12} parent=19 // pred_check_branch
        %162 = sbr.rel (%p160) target = $region28
      $region27: #{wrapped_model_forward.12} parent=19 // pred_region
        %p163 = scmp.lt.s32.totalorder %s16, 3
        %s164 = scalar_select %p163, %s16, 3
        %s165 = smul.addr %s164, 32
        %s166 = smul.addr %s165, 4
        %s167 = scalar_lea.vmem %s1, %s166
      $region28: #{wrapped_model_forward.12} parent=19 // pred_fallthru
        _
    $region20: #{wrapped_model_forward.12} parent=5 // pred_fallthru
      _
    %p168 = scmp.le.s32.totalorder 1, %s9
    %p169 = scmp.lt.s32.totalorder %s9, 5
    %p170 = pnand %p168, %p169
    %p171 = pneg %p170
    // Predicated region
    $region29: #{wrapped_model_forward.12} parent=5 // pred_check
      _
    $region30: #{wrapped_model_forward.12} parent=5 // pred_check_branch
      %173 = sbr.rel (%p170) target = $region32
    $region31: #{wrapped_model_forward.12} parent=5 // pred_region
      %s174 = ssub.s32 %s9, 1
      %s175 = smul.u32 4, %s19
      %p176 = scmp.lt.s32.totalorder %s18, 3
      %s177 = scalar_select %p176, %s18, 3
      %p178 = scmp.lt.s32.totalorder %s175, 3
      %s179 = scalar_select %p178, %s175, 3
      %s180 = smul.addr %s179, 2
      %s181 = smul.addr %s177, 8
      %s182 = sadd.s32 %s180, %s181
      %s183 = smul.addr %s182, 4
      %s184 = scalar_lea.vmem %s0, %s183
      %p185 = pneg %p49
      %p186 = pneg %p46
      %p187 = scmp.lt.s32.totalorder %s18, 3
      %s188 = scalar_select %p187, %s18, 3
      %s189 = smul.addr %s188, 32
      %s190 = smul.addr %s189, 4
      %s191 = scalar_lea.vmem %s1, %s190
      %p192 = pneg %p75
      %p193 = pneg %p72
      %p194 = pneg %p96
      %p195 = pneg %p93
      %p196 = pneg %p124
      %p197 = pneg %p121
      %s198 = smul.u32 4, %s19
      %p199 = scmp.lt.s32.totalorder %s18, 3
      %s200 = scalar_select %p199, %s18, 3
      %p201 = scmp.lt.s32.totalorder %s198, 3
      %s202 = scalar_select %p201, %s198, 3
      %s203 = smul.addr %s200, 4
      %s204 = sadd.s32 %s202, %s203
      %s205 = smul.addr %s204, 4
      %s206 = scalar_lea.vmem %s3, %s205
      %s207 = smul.u32 4, %s19
      %p208 = scmp.lt.s32.totalorder %s18, 3
      %s209 = scalar_select %p208, %s18, 3
      %p210 = scmp.lt.s32.totalorder %s207, 3
      %s211 = scalar_select %p210, %s207, 3
      %s212 = smul.addr %s211, 2
      %s213 = smul.addr %s209, 8
      %s214 = sadd.s32 %s212, %s213
      %s215 = smul.addr %s214, 4
      %s216 = scalar_lea.vmem %s0, %s215
      %s217 = smul.u32 4, %s19
      %p218 = scmp.lt.s32.totalorder %s18, 3
      %s219 = scalar_select %p218, %s18, 3
      %s220 = smul.addr %s219, 32
      %s221 = smul.addr %s220, 4
      %s222 = scalar_lea.vmem %s1, %s221
      %s223 = smul.u32 4, %s19
      %p224 = scmp.lt.s32.totalorder %s18, 3
      %s225 = scalar_select %p224, %s18, 3
      %p226 = scmp.lt.s32.totalorder %s223, 3
      %s227 = scalar_select %p226, %s223, 3
      %s228 = smul.addr %s225, 4
      %s229 = sadd.s32 %s227, %s228
      %s230 = smul.addr %s229, 4
      %s231 = scalar_lea.vmem %s3, %s230
      %s232 = smul.u32 4, %s19
      %v234 = vld [vmem:[%s216] sm:$0xff]
      %v235 = vld [vmem:[%s216 + $0x8] sm:$0xff]
      %v236 = vld [vmem:[%s216 + $0x10] sm:$0xff]
      %v237 = vld [vmem:[%s216 + $0x18] sm:$0xff]
      %v238 = vld [vmem:[%s222] sm:$0xf]
      %v239 = vld [vmem:[%s222 + $0x4] sm:$0xf]
      %v240 = vld [vmem:[%s222 + $0x8] sm:$0xf]
      %v241 = vld [vmem:[%s222 + $0xc] sm:$0xf]
      %v242 = vld [vmem:[%s222 + $0x10] sm:$0xf]
      %v243 = vld [vmem:[%s222 + $0x14] sm:$0xf]
      %v244 = vld [vmem:[%s222 + $0x18] sm:$0xf]
      %v245 = vld [vmem:[%s222 + $0x1c] sm:$0xf]
      %v246 = vld [vmem:[%s222 + $0x20] sm:$0xf]
      %v247 = vld [vmem:[%s222 + $0x24] sm:$0xf]
      %v248 = vld [vmem:[%s222 + $0x28] sm:$0xf]
      %v249 = vld [vmem:[%s222 + $0x2c] sm:$0xf]
      %v250 = vld [vmem:[%s222 + $0x30] sm:$0xf]
      %v251 = vld [vmem:[%s222 + $0x34] sm:$0xf]
      %v252 = vld [vmem:[%s222 + $0x38] sm:$0xf]
      %v253 = vld [vmem:[%s222 + $0x3c] sm:$0xf]
      %v254 = vld [vmem:[%s222 + $0x40] sm:$0xf]
      %v255 = vld [vmem:[%s222 + $0x44] sm:$0xf]
      %v256 = vld [vmem:[%s222 + $0x48] sm:$0xf]
      %v257 = vld [vmem:[%s222 + $0x4c] sm:$0xf]
      %v258 = vld [vmem:[%s222 + $0x50] sm:$0xf]
      %v259 = vld [vmem:[%s222 + $0x54] sm:$0xf]
      %v260 = vld [vmem:[%s222 + $0x58] sm:$0xf]
      %v261 = vld [vmem:[%s222 + $0x5c] sm:$0xf]
      %v262 = vld [vmem:[%s222 + $0x60] sm:$0xf]
      %v263 = vld [vmem:[%s222 + $0x64] sm:$0xf]
      %v264 = vld [vmem:[%s222 + $0x68] sm:$0xf]
      %v265 = vld [vmem:[%s222 + $0x6c] sm:$0xf]
      %v266 = vld [vmem:[%s222 + $0x70] sm:$0xf]
      %v267 = vld [vmem:[%s222 + $0x74] sm:$0xf]
      %v268 = vld [vmem:[%s222 + $0x78] sm:$0xf]
      %v269 = vld [vmem:[%s222 + $0x7c] sm:$0xf]
      %v270 = vld [vmem:[%s2] sm:$0x1]
      %v272 = vlaneseq
      %v273 = vshrl.u32 %v272, 7
      %v274 = vsub.s32 0, %v273
      %v275 = vrot.slane %v270, %v274
      %v281 = vunpack.c.l.b16 %v234
      %v282 = vunpack.c.h.b16 %v234
      %v283 = vunpack.c.l.b16 %v235
      %v284 = vunpack.c.h.b16 %v235
      %v285 = vunpack.c.l.b16 %v236
      %v286 = vunpack.c.h.b16 %v236
      %v287 = vunpack.c.l.b16 %v237
      %v288 = vunpack.c.h.b16 %v237
      %v289 = vpack.c.b16 %v283, %v281
      %v290 = vpack.c.b16 %v284, %v282
      %v291 = vpack.c.b16 %v287, %v285
      %v292 = vpack.c.b16 %v288, %v286
      %v329 = vunpack.c.l.b16 %v238
      %v330 = vunpack.c.l.b16 %v239
      %v331 = vunpack.c.l.b16 %v240
      %v332 = vunpack.c.l.b16 %v241
      %v333 = vunpack.c.l.b16 %v242
      %v334 = vunpack.c.l.b16 %v243
      %v335 = vunpack.c.l.b16 %v244
      %v336 = vunpack.c.l.b16 %v245
      %v337 = vunpack.c.l.b16 %v246
      %v338 = vunpack.c.l.b16 %v247
      %v339 = vunpack.c.l.b16 %v248
      %v340 = vunpack.c.l.b16 %v249
      %v341 = vunpack.c.l.b16 %v250
      %v342 = vunpack.c.l.b16 %v251
      %v343 = vunpack.c.l.b16 %v252
      %v344 = vunpack.c.l.b16 %v253
      %v345 = vunpack.c.l.b16 %v254
      %v346 = vunpack.c.l.b16 %v255
      %v347 = vunpack.c.l.b16 %v256
      %v348 = vunpack.c.l.b16 %v257
      %v349 = vunpack.c.l.b16 %v258
      %v350 = vunpack.c.l.b16 %v259
      %v351 = vunpack.c.l.b16 %v260
      %v352 = vunpack.c.l.b16 %v261
      %v353 = vunpack.c.l.b16 %v262
      %v354 = vunpack.c.l.b16 %v263
      %v355 = vunpack.c.l.b16 %v264
      %v356 = vunpack.c.l.b16 %v265
      %v357 = vunpack.c.l.b16 %v266
      %v358 = vunpack.c.l.b16 %v267
      %v359 = vunpack.c.l.b16 %v268
      %v360 = vunpack.c.l.b16 %v269
      %v361 = vpack.c.b16 %v330, %v329
      %v362 = vpack.c.b16 %v332, %v331
      %v363 = vpack.c.b16 %v334, %v333
      %v364 = vpack.c.b16 %v336, %v335
      %v365 = vpack.c.b16 %v338, %v337
      %v366 = vpack.c.b16 %v340, %v339
      %v367 = vpack.c.b16 %v342, %v341
      %v368 = vpack.c.b16 %v344, %v343
      %v369 = vpack.c.b16 %v346, %v345
      %v370 = vpack.c.b16 %v348, %v347
      %v371 = vpack.c.b16 %v350, %v349
      %v372 = vpack.c.b16 %v352, %v351
      %v373 = vpack.c.b16 %v354, %v353
      %v374 = vpack.c.b16 %v356, %v355
      %v375 = vpack.c.b16 %v358, %v357
      %v376 = vpack.c.b16 %v360, %v359
      %393 = vmatprep.subr.bf16.mxu0 0
      %394 = vmatpush1.bf16.msra.mxu0 %v361
      %395 = vmatprep.subr.bf16.mxu0 0
      %396 = vmatpush1.bf16.msra.mxu0 %v362
      %397 = vmatprep.subr.bf16.mxu0 0
      %398 = vmatpush1.bf16.msra.mxu0 %v363
      %399 = vmatprep.subr.bf16.mxu0 0
      %400 = vmatpush1.bf16.msra.mxu0 %v364
      %401 = vmatprep.subr.bf16.mxu0 0
      %402 = vmatpush1.bf16.msra.mxu0 %v365
      %403 = vmatprep.subr.bf16.mxu0 0
      %404 = vmatpush1.bf16.msra.mxu0 %v366
      %405 = vmatprep.subr.bf16.mxu0 0
      %406 = vmatpush1.bf16.msra.mxu0 %v367
      %407 = vmatprep.subr.bf16.mxu0 0
      %408 = vmatpush1.bf16.msra.mxu0 %v368
      %409 = vmatprep.subr.bf16.mxu0 0
      %410 = vmatpush1.bf16.msra.mxu0 %v369
      %411 = vmatprep.subr.bf16.mxu0 0
      %412 = vmatpush1.bf16.msra.mxu0 %v370
      %413 = vmatprep.subr.bf16.mxu0 0
      %414 = vmatpush1.bf16.msra.mxu0 %v371
      %415 = vmatprep.subr.bf16.mxu0 0
      %416 = vmatpush1.bf16.msra.mxu0 %v372
      %417 = vmatprep.subr.bf16.mxu0 0
      %418 = vmatpush1.bf16.msra.mxu0 %v373
      %419 = vmatprep.subr.bf16.mxu0 0
      %420 = vmatpush1.bf16.msra.mxu0 %v374
      %421 = vmatprep.subr.bf16.mxu0 0
      %422 = vmatpush1.bf16.msra.mxu0 %v375
      %423 = vmatprep.subr.bf16.mxu0 0
      %424 = vmatpush1.bf16.msra.mxu0 %v376
      %425 = vmatprep.mubr.bf16.mxu0 %v290
      %426 = vmatmul.mubr.bf16.gmra.mrb[0].mxu0 %v289
      %v427 = vpop.f32.mrb[0].mxu0
      %v428 = vadd.f32 %v275, %v427
      %v429 = vpop.f32.mrb[0].mxu0
      %v430 = vpop.f32.mrb[0].mxu0
      %v431 = vadd.f32 %v275, %v430
      %v432 = vpop.f32.mrb[0].mxu0
      %433 = vmatprep.mubr.bf16.mxu0 %v292
      %434 = vmatmul.mubr.bf16.gmra.mrb[0].mxu0 %v291
      %v435 = vpop.f32.mrb[0].mxu0
      %v436 = vadd.f32 %v275, %v435
      %v437 = vpop.f32.mrb[0].mxu0
      %v438 = vpop.f32.mrb[0].mxu0
      %v439 = vadd.f32 %v275, %v438
      %v440 = vpop.f32.mrb[0].mxu0
      %441 = vdwg.mxu0
      %v442 = vmax.f32 %v428, 0.0
      %v443 = vmax.f32 %v431, 0.0
      %v444 = vmax.f32 %v436, 0.0
      %v445 = vmax.f32 %v439, 0.0
      %v446 = vpack.c.bf16 %v443, %v442
      %v447 = vpack.c.bf16 %v445, %v444
      %v450 = vunpack.c.l.b16 %v446
      %v451 = vunpack.c.h.b16 %v446
      %v452 = vunpack.c.l.b16 %v447
      %v453 = vunpack.c.h.b16 %v447
      %v454 = vpack.c.b16 %v450, %v450
      %v455 = vpack.c.b16 %v451, %v451
      %v456 = vpack.c.b16 %v452, %v452
      %v457 = vpack.c.b16 %v453, %v453
      %vm462 = vcmask 257024
      %463 = vst.msk [vmem:[%s231] sm:$0xf] %vm462, %v454
      %464 = vst.msk [vmem:[%s231 + $0x4] sm:$0xf] %vm462, %v455
      %465 = vst.msk [vmem:[%s231 + $0x8] sm:$0xf] %vm462, %v456
      %466 = vst.msk [vmem:[%s231 + $0xc] sm:$0xf] %vm462, %v457
      %s467 = smul.u32 4, %s19
      %p468 = scmp.lt.s32.totalorder %s18, 3
      %s469 = scalar_select %p468, %s18, 3
      %p470 = scmp.lt.s32.totalorder %s467, 3
      %s471 = scalar_select %p470, %s467, 3
      %s472 = smul.addr %s469, 4
      %s473 = sadd.s32 %s471, %s472
      %s474 = smul.addr %s473, 4
      %s475 = scalar_lea.vmem %s3, %s474
      // Predicated region
      $region33: #{wrapped_model_forward.12} parent=31 // pred_check
        %p476 = pneg %p121
      $region34: #{wrapped_model_forward.12} parent=31 // pred_check_branch
        %478 = sbr.rel (%p476) target = $region36
      $region35: #{wrapped_model_forward.12} parent=31 // pred_region
        %s479 = smul.u32 4, %s19
      $region36: #{wrapped_model_forward.12} parent=31 // pred_fallthru
        _
    $region32: #{wrapped_model_forward.12} parent=5 // pred_fallthru
      _
    %p480 = scmp.le.s32.totalorder 2, %s9
    // Predicated region
    $region37: #{wrapped_model_forward.12} parent=5 // pred_check
      %p481 = pneg %p480
    $region38: #{wrapped_model_forward.12} parent=5 // pred_check_branch
      %483 = sbr.rel (%p481) target = $region40
    $region39: #{wrapped_model_forward.12} parent=5 // pred_region
      %s484 = ssub.s32 %s9, 2
      // Predicated region
      $region41: #{wrapped_model_forward.12} parent=39 // pred_check
        %p485 = pneg %p127
      $region42: #{wrapped_model_forward.12} parent=39 // pred_check_branch
        %487 = sbr.rel (%p485) target = $region44
      $region43: #{wrapped_model_forward.12} parent=39 // pred_region
        %s488 = smul.u32 4, %s21
        %p489 = scmp.lt.s32.totalorder %s20, 3
        %s490 = scalar_select %p489, %s20, 3
        %p491 = scmp.lt.s32.totalorder %s488, 3
        %s492 = scalar_select %p491, %s488, 3
        %s493 = smul.addr %s490, 4
        %s494 = sadd.s32 %s492, %s493
        %s495 = smul.addr %s494, 4
        %s496 = scalar_lea.vmem %s3, %s495
      $region44: #{wrapped_model_forward.12} parent=39 // pred_fallthru
        _
    $region40: #{wrapped_model_forward.12} parent=5 // pred_fallthru
      _
  $region6: #{wrapped_model_forward.12} parent=0 // loop_footer
    %s13 = sadd.s32 1, %s9
  $region7: #{wrapped_model_forward.12} parent=0 // loop_footer_branch
    %8 = sbr.rel target = $region3
  $region8: #{wrapped_model_forward.12} parent=0 // loop_exit
    _

// kernel: wrapped_model_forward.13
$region0: #{wrapped_model_forward.13}
  #allocation0 [shape = 'u32[]', space=smem, size = 0x4, offset = 0x4, fixed_abs, tag = 'smem constant byte address 0x4 - core index']
  #allocation1 [shape = 'u32[144,128]{1,0:T(1,128)}', space=vmem, size = 0x12000, scoped, tag = 'internal scratch']
  %s0 = inlined_call_operand.vmem [shape: bf16[128,288], index: 0, kind: input, shape index: {}]
  %s1 = inlined_call_operand.vmem [shape: bf16[128,288], index: 1, kind: input, shape index: {}]
  %s2 = inlined_call_operand.vmem [shape: bf16[288,32], index: 2, kind: input, shape index: {}]
  %s3 = inlined_call_operand.vmem [shape: bf16[288,32], index: 3, kind: input, shape index: {}]
  %s4 = inlined_call_operand.vmem [shape: f32[1,32], index: 4, kind: input, shape index: {}]
  %s5 = inlined_call_operand.vmem [shape: bf16[128,32], index: 5, kind: output, shape index: {}]
  %s6 = sld [smem:[#allocation0]]
  $region30: #{wrapped_model_forward.13} parent=0
    _
  %s8 = ssub.s32 1, %s6
  %s9 = scalar_select 0, %s8, %s6
  // Predicated region
  $region2: #{wrapped_model_forward.13} parent=0 // pred_check
    _
  $region3: #{wrapped_model_forward.13} parent=0 // pred_check_branch
    %11 = sbr.rel (0) target = $region5
  $region4: #{wrapped_model_forward.13} parent=0 // pred_region
    _
  $region5: #{wrapped_model_forward.13} parent=0 // pred_fallthru
    _
  // Predicated region
  $region6: #{wrapped_model_forward.13} parent=0 // pred_check
    _
  $region7: #{wrapped_model_forward.13} parent=0 // pred_check_branch
    %13 = sbr.rel (0) target = $region9
  $region8: #{wrapped_model_forward.13} parent=0 // pred_region
    _
  $region9: #{wrapped_model_forward.13} parent=0 // pred_fallthru
    _
  // Predicated region
  $region10: #{wrapped_model_forward.13} parent=0 // pred_check
    _
  $region11: #{wrapped_model_forward.13} parent=0 // pred_check_branch
    %15 = sbr.rel (0) target = $region13
  $region12: #{wrapped_model_forward.13} parent=0 // pred_region
    _
  $region13: #{wrapped_model_forward.13} parent=0 // pred_fallthru
    _
  // Predicated region
  $region14: #{wrapped_model_forward.13} parent=0 // pred_check
    _
  $region15: #{wrapped_model_forward.13} parent=0 // pred_check_branch
    %17 = sbr.rel (0) target = $region17
  $region16: #{wrapped_model_forward.13} parent=0 // pred_region
    _
  $region17: #{wrapped_model_forward.13} parent=0 // pred_fallthru
    _
  // Predicated region
  $region18: #{wrapped_model_forward.13} parent=0 // pred_check
    _
  $region19: #{wrapped_model_forward.13} parent=0 // pred_check_branch
    %19 = sbr.rel (0) target = $region21
  $region20: #{wrapped_model_forward.13} parent=0 // pred_region
    _
  $region21: #{wrapped_model_forward.13} parent=0 // pred_fallthru
    _
  %v21 = vld [vmem:[%s0] sm:$0xff]
  %v22 = vld [vmem:[%s0 + $0x8] sm:$0xf]
  %v23 = vld [vmem:[%s0 + $0xc] sm:$0xff]
  %v24 = vld [vmem:[%s0 + $0x14] sm:$0xf]
  %v25 = vld [vmem:[%s0 + $0x18] sm:$0xff]
  %v26 = vld [vmem:[%s0 + $0x20] sm:$0xf]
  %v27 = vld [vmem:[%s0 + $0x24] sm:$0xff]
  %v28 = vld [vmem:[%s0 + $0x2c] sm:$0xf]
  %v29 = vld [vmem:[%s0 + $0x30] sm:$0xff]
  %v30 = vld [vmem:[%s0 + $0x38] sm:$0xf]
  %v31 = vld [vmem:[%s0 + $0x3c] sm:$0xff]
  %v32 = vld [vmem:[%s0 + $0x44] sm:$0xf]
  %v33 = vld [vmem:[%s0 + $0x48] sm:$0xff]
  %v34 = vld [vmem:[%s0 + $0x50] sm:$0xf]
  %v35 = vld [vmem:[%s0 + $0x54] sm:$0xff]
  %v36 = vld [vmem:[%s0 + $0x5c] sm:$0xf]
  %v37 = vld [vmem:[%s0 + $0x60] sm:$0xff]
  %v38 = vld [vmem:[%s0 + $0x68] sm:$0xf]
  %v39 = vld [vmem:[%s0 + $0x6c] sm:$0xff]
  %v40 = vld [vmem:[%s0 + $0x74] sm:$0xf]
  %v41 = vld [vmem:[%s0 + $0x78] sm:$0xff]
  %v42 = vld [vmem:[%s0 + $0x80] sm:$0xf]
  %v43 = vld [vmem:[%s0 + $0x84] sm:$0xff]
  %v44 = vld [vmem:[%s0 + $0x8c] sm:$0xf]
  %v45 = vld [vmem:[%s0 + $0x90] sm:$0xff]
  %v46 = vld [vmem:[%s0 + $0x98] sm:$0xf]
  %v47 = vld [vmem:[%s0 + $0x9c] sm:$0xff]
  %v48 = vld [vmem:[%s0 + $0xa4] sm:$0xf]
  %v49 = vld [vmem:[%s0 + $0xa8] sm:$0xff]
  %v50 = vld [vmem:[%s0 + $0xb0] sm:$0xf]
  %v51 = vld [vmem:[%s0 + $0xb4] sm:$0xff]
  %v52 = vld [vmem:[%s0 + $0xbc] sm:$0xf]
  %v53 = vld [vmem:[%s2] sm:$0xf]
  %v54 = vld [vmem:[%s2 + $0x4] sm:$0xf]
  %v55 = vld [vmem:[%s2 + $0x8] sm:$0xf]
  %v56 = vld [vmem:[%s2 + $0xc] sm:$0xf]
  %v57 = vld [vmem:[%s2 + $0x10] sm:$0xf]
  %v58 = vld [vmem:[%s2 + $0x14] sm:$0xf]
  %v59 = vld [vmem:[%s2 + $0x18] sm:$0xf]
  %v60 = vld [vmem:[%s2 + $0x1c] sm:$0xf]
  %v61 = vld [vmem:[%s2 + $0x20] sm:$0xf]
  %v62 = vld [vmem:[%s2 + $0x24] sm:$0xf]
  %v63 = vld [vmem:[%s2 + $0x28] sm:$0xf]
  %v64 = vld [vmem:[%s2 + $0x2c] sm:$0xf]
  %v65 = vld [vmem:[%s2 + $0x30] sm:$0xf]
  %v66 = vld [vmem:[%s2 + $0x34] sm:$0xf]
  %v67 = vld [vmem:[%s2 + $0x38] sm:$0xf]
  %v68 = vld [vmem:[%s2 + $0x3c] sm:$0xf]
  %v69 = vld [vmem:[%s2 + $0x40] sm:$0xf]
  %v70 = vld [vmem:[%s2 + $0x44] sm:$0xf]
  %v71 = vld [vmem:[%s2 + $0x48] sm:$0xf]
  %v72 = vld [vmem:[%s2 + $0x4c] sm:$0xf]
  %v73 = vld [vmem:[%s2 + $0x50] sm:$0xf]
  %v74 = vld [vmem:[%s2 + $0x54] sm:$0xf]
  %v75 = vld [vmem:[%s2 + $0x58] sm:$0xf]
  %v76 = vld [vmem:[%s2 + $0x5c] sm:$0xf]
  %v77 = vld [vmem:[%s2 + $0x60] sm:$0xf]
  %v78 = vld [vmem:[%s2 + $0x64] sm:$0xf]
  %v79 = vld [vmem:[%s2 + $0x68] sm:$0xf]
  %v80 = vld [vmem:[%s2 + $0x6c] sm:$0xf]
  %v81 = vld [vmem:[%s2 + $0x70] sm:$0xf]
  %v82 = vld [vmem:[%s2 + $0x74] sm:$0xf]
  %v83 = vld [vmem:[%s2 + $0x78] sm:$0xf]
  %v84 = vld [vmem:[%s2 + $0x7c] sm:$0xf]
  %v85 = vld [vmem:[%s2 + $0x80] sm:$0xf]
  %v86 = vld [vmem:[%s2 + $0x84] sm:$0xf]
  %v87 = vld [vmem:[%s2 + $0x88] sm:$0xf]
  %v88 = vld [vmem:[%s2 + $0x8c] sm:$0xf]
  %v89 = vld [vmem:[%s1] sm:$0xff]
  %v90 = vld [vmem:[%s1 + $0x8] sm:$0xf]
  %v91 = vld [vmem:[%s1 + $0xc] sm:$0xff]
  %v92 = vld [vmem:[%s1 + $0x14] sm:$0xf]
  %v93 = vld [vmem:[%s1 + $0x18] sm:$0xff]
  %v94 = vld [vmem:[%s1 + $0x20] sm:$0xf]
  %v95 = vld [vmem:[%s1 + $0x24] sm:$0xff]
  %v96 = vld [vmem:[%s1 + $0x2c] sm:$0xf]
  %v97 = vld [vmem:[%s1 + $0x30] sm:$0xff]
  %v98 = vld [vmem:[%s1 + $0x38] sm:$0xf]
  %v99 = vld [vmem:[%s1 + $0x3c] sm:$0xff]
  %v100 = vld [vmem:[%s1 + $0x44] sm:$0xf]
  %v101 = vld [vmem:[%s1 + $0x48] sm:$0xff]
  %v102 = vld [vmem:[%s1 + $0x50] sm:$0xf]
  %v103 = vld [vmem:[%s1 + $0x54] sm:$0xff]
  %v104 = vld [vmem:[%s1 + $0x5c] sm:$0xf]
  %v105 = vld [vmem:[%s1 + $0x60] sm:$0xff]
  %v106 = vld [vmem:[%s1 + $0x68] sm:$0xf]
  %v107 = vld [vmem:[%s1 + $0x6c] sm:$0xff]
  %v108 = vld [vmem:[%s1 + $0x74] sm:$0xf]
  %v109 = vld [vmem:[%s1 + $0x78] sm:$0xff]
  %v110 = vld [vmem:[%s1 + $0x80] sm:$0xf]
  %v111 = vld [vmem:[%s1 + $0x84] sm:$0xff]
  %v112 = vld [vmem:[%s1 + $0x8c] sm:$0xf]
  %v113 = vld [vmem:[%s1 + $0x90] sm:$0xff]
  %v114 = vld [vmem:[%s1 + $0x98] sm:$0xf]
  %v115 = vld [vmem:[%s1 + $0x9c] sm:$0xff]
  %v116 = vld [vmem:[%s1 + $0xa4] sm:$0xf]
  %v117 = vld [vmem:[%s1 + $0xa8] sm:$0xff]
  %v118 = vld [vmem:[%s1 + $0xb0] sm:$0xf]
  %v119 = vld [vmem:[%s1 + $0xb4] sm:$0xff]
  %v120 = vld [vmem:[%s1 + $0xbc] sm:$0xf]
  %v121 = vld [vmem:[%s3] sm:$0xf]
  %v122 = vld [vmem:[%s3 + $0x4] sm:$0xf]
  %v123 = vld [vmem:[%s3 + $0x8] sm:$0xf]
  %v124 = vld [vmem:[%s3 + $0xc] sm:$0xf]
  %v125 = vld [vmem:[%s3 + $0x10] sm:$0xf]
  %v126 = vld [vmem:[%s3 + $0x14] sm:$0xf]
  %v127 = vld [vmem:[%s3 + $0x18] sm:$0xf]
  %v128 = vld [vmem:[%s3 + $0x1c] sm:$0xf]
  %v129 = vld [vmem:[%s3 + $0x20] sm:$0xf]
  %v130 = vld [vmem:[%s3 + $0x24] sm:$0xf]
  %v131 = vld [vmem:[%s3 + $0x28] sm:$0xf]
  %v132 = vld [vmem:[%s3 + $0x2c] sm:$0xf]
  %v133 = vld [vmem:[%s3 + $0x30] sm:$0xf]
  %v134 = vld [vmem:[%s3 + $0x34] sm:$0xf]
  %v135 = vld [vmem:[%s3 + $0x38] sm:$0xf]
  %v136 = vld [vmem:[%s3 + $0x3c] sm:$0xf]
  %v137 = vld [vmem:[%s3 + $0x40] sm:$0xf]
  %v138 = vld [vmem:[%s3 + $0x44] sm:$0xf]
  %v139 = vld [vmem:[%s3 + $0x48] sm:$0xf]
  %v140 = vld [vmem:[%s3 + $0x4c] sm:$0xf]
  %v141 = vld [vmem:[%s3 + $0x50] sm:$0xf]
  %v142 = vld [vmem:[%s3 + $0x54] sm:$0xf]
  %v143 = vld [vmem:[%s3 + $0x58] sm:$0xf]
  %v144 = vld [vmem:[%s3 + $0x5c] sm:$0xf]
  %v145 = vld [vmem:[%s3 + $0x60] sm:$0xf]
  %v146 = vld [vmem:[%s3 + $0x64] sm:$0xf]
  %v147 = vld [vmem:[%s3 + $0x68] sm:$0xf]
  %v148 = vld [vmem:[%s3 + $0x6c] sm:$0xf]
  %v149 = vld [vmem:[%s3 + $0x70] sm:$0xf]
  %v150 = vld [vmem:[%s3 + $0x74] sm:$0xf]
  %v151 = vld [vmem:[%s3 + $0x78] sm:$0xf]
  %v152 = vld [vmem:[%s3 + $0x7c] sm:$0xf]
  %v153 = vld [vmem:[%s3 + $0x80] sm:$0xf]
  %v154 = vld [vmem:[%s3 + $0x84] sm:$0xf]
  %v155 = vld [vmem:[%s3 + $0x88] sm:$0xf]
  %v156 = vld [vmem:[%s3 + $0x8c] sm:$0xf]
  %v189 = vunpack.c.l.b16 %v89
  %v190 = vunpack.c.h.b16 %v89
  %v191 = vunpack.c.l.b16 %v90
  %v192 = vunpack.c.l.b16 %v91
  %v193 = vunpack.c.h.b16 %v91
  %v194 = vunpack.c.l.b16 %v92
  %v195 = vunpack.c.l.b16 %v93
  %v196 = vunpack.c.h.b16 %v93
  %v197 = vunpack.c.l.b16 %v94
  %v198 = vunpack.c.l.b16 %v95
  %v199 = vunpack.c.h.b16 %v95
  %v200 = vunpack.c.l.b16 %v96
  %v201 = vunpack.c.l.b16 %v97
  %v202 = vunpack.c.h.b16 %v97
  %v203 = vunpack.c.l.b16 %v98
  %v204 = vunpack.c.l.b16 %v99
  %v205 = vunpack.c.h.b16 %v99
  %v206 = vunpack.c.l.b16 %v100
  %v207 = vunpack.c.l.b16 %v101
  %v208 = vunpack.c.h.b16 %v101
  %v209 = vunpack.c.l.b16 %v102
  %v210 = vunpack.c.l.b16 %v103
  %v211 = vunpack.c.h.b16 %v103
  %v212 = vunpack.c.l.b16 %v104
  %v213 = vunpack.c.l.b16 %v105
  %v214 = vunpack.c.h.b16 %v105
  %v215 = vunpack.c.l.b16 %v106
  %v216 = vunpack.c.l.b16 %v107
  %v217 = vunpack.c.h.b16 %v107
  %v218 = vunpack.c.l.b16 %v108
  %v219 = vunpack.c.l.b16 %v109
  %v220 = vunpack.c.h.b16 %v109
  %v221 = vunpack.c.l.b16 %v110
  %v222 = vunpack.c.l.b16 %v111
  %v223 = vunpack.c.h.b16 %v111
  %v224 = vunpack.c.l.b16 %v112
  %v225 = vunpack.c.l.b16 %v113
  %v226 = vunpack.c.h.b16 %v113
  %v227 = vunpack.c.l.b16 %v114
  %v228 = vunpack.c.l.b16 %v115
  %v229 = vunpack.c.h.b16 %v115
  %v230 = vunpack.c.l.b16 %v116
  %v231 = vunpack.c.l.b16 %v117
  %v232 = vunpack.c.h.b16 %v117
  %v233 = vunpack.c.l.b16 %v118
  %v234 = vunpack.c.l.b16 %v119
  %v235 = vunpack.c.h.b16 %v119
  %v236 = vunpack.c.l.b16 %v120
  %v237 = vpack.c.b16 %v192, %v189
  %v238 = vpack.c.b16 %v193, %v190
  %v239 = vpack.c.b16 %v194, %v191
  %v240 = vpack.c.b16 %v198, %v195
  %v241 = vpack.c.b16 %v199, %v196
  %v242 = vpack.c.b16 %v200, %v197
  %v243 = vpack.c.b16 %v204, %v201
  %v244 = vpack.c.b16 %v205, %v202
  %v245 = vpack.c.b16 %v206, %v203
  %v246 = vpack.c.b16 %v210, %v207
  %v247 = vpack.c.b16 %v211, %v208
  %v248 = vpack.c.b16 %v212, %v209
  %v249 = vpack.c.b16 %v216, %v213
  %v250 = vpack.c.b16 %v217, %v214
  %v251 = vpack.c.b16 %v218, %v215
  %v252 = vpack.c.b16 %v222, %v219
  %v253 = vpack.c.b16 %v223, %v220
  %v254 = vpack.c.b16 %v224, %v221
  %v255 = vpack.c.b16 %v228, %v225
  %v256 = vpack.c.b16 %v229, %v226
  %v257 = vpack.c.b16 %v230, %v227
  %v258 = vpack.c.b16 %v234, %v231
  %v259 = vpack.c.b16 %v235, %v232
  %v260 = vpack.c.b16 %v236, %v233
  %v313 = vunpack.c.l.b16 %v121
  %v314 = vunpack.c.l.b16 %v122
  %v315 = vunpack.c.l.b16 %v123
  %v316 = vunpack.c.l.b16 %v124
  %v317 = vunpack.c.l.b16 %v125
  %v318 = vunpack.c.l.b16 %v126
  %v319 = vunpack.c.l.b16 %v127
  %v320 = vunpack.c.l.b16 %v128
  %v321 = vunpack.c.l.b16 %v129
  %v322 = vunpack.c.l.b16 %v130
  %v323 = vunpack.c.l.b16 %v131
  %v324 = vunpack.c.l.b16 %v132
  %v325 = vunpack.c.l.b16 %v133
  %v326 = vunpack.c.l.b16 %v134
  %v327 = vunpack.c.l.b16 %v135
  %v328 = vunpack.c.l.b16 %v136
  %v329 = vunpack.c.l.b16 %v137
  %v330 = vunpack.c.l.b16 %v138
  %v331 = vunpack.c.l.b16 %v139
  %v332 = vunpack.c.l.b16 %v140
  %v333 = vunpack.c.l.b16 %v141
  %v334 = vunpack.c.l.b16 %v142
  %v335 = vunpack.c.l.b16 %v143
  %v336 = vunpack.c.l.b16 %v144
  %v337 = vunpack.c.l.b16 %v145
  %v338 = vunpack.c.l.b16 %v146
  %v339 = vunpack.c.l.b16 %v147
  %v340 = vunpack.c.l.b16 %v148
  %v341 = vunpack.c.l.b16 %v149
  %v342 = vunpack.c.l.b16 %v150
  %v343 = vunpack.c.l.b16 %v151
  %v344 = vunpack.c.l.b16 %v152
  %v345 = vunpack.c.l.b16 %v153
  %v346 = vunpack.c.l.b16 %v154
  %v347 = vunpack.c.l.b16 %v155
  %v348 = vunpack.c.l.b16 %v156
  %v349 = vpack.c.b16 %v314, %v313
  %v350 = vpack.c.b16 %v316, %v315
  %v351 = vpack.c.b16 %v318, %v317
  %v352 = vpack.c.b16 %v320, %v319
  %v353 = vpack.c.b16 %v322, %v321
  %v354 = vpack.c.b16 %v324, %v323
  %v355 = vpack.c.b16 %v326, %v325
  %v356 = vpack.c.b16 %v328, %v327
  %v357 = vpack.c.b16 %v330, %v329
  %v358 = vpack.c.b16 %v332, %v331
  %v359 = vpack.c.b16 %v334, %v333
  %v360 = vpack.c.b16 %v336, %v335
  %v361 = vpack.c.b16 %v338, %v337
  %v362 = vpack.c.b16 %v340, %v339
  %v363 = vpack.c.b16 %v342, %v341
  %v364 = vpack.c.b16 %v344, %v343
  %v365 = vpack.c.b16 %v346, %v345
  %v366 = vpack.c.b16 %v348, %v347
  %vm385 = vcmask 261120
  %v387 = vsel %vm385, %v239, 0
  %v390 = vsel %vm385, %v242, 0
  %v393 = vsel %vm385, %v245, 0
  %v396 = vsel %vm385, %v248, 0
  %v399 = vsel %vm385, %v251, 0
  %v402 = vsel %vm385, %v254, 0
  %v405 = vsel %vm385, %v257, 0
  %v408 = vsel %vm385, %v260, 0
  %410 = vmatprep.subr.bf16.mxu0 0
  %411 = vmatpush1.bf16.msra.mxu0 %v349
  %412 = vmatprep.subr.bf16.mxu0 0
  %413 = vmatpush1.bf16.msra.mxu0 %v350
  %414 = vmatprep.subr.bf16.mxu0 0
  %415 = vmatpush1.bf16.msra.mxu0 %v351
  %416 = vmatprep.subr.bf16.mxu0 0
  %417 = vmatpush1.bf16.msra.mxu0 %v352
  %418 = vmatprep.subr.bf16.mxu0 0
  %419 = vmatpush1.bf16.msra.mxu0 %v353
  %420 = vmatprep.subr.bf16.mxu0 0
  %421 = vmatpush1.bf16.msra.mxu0 %v354
  %422 = vmatprep.subr.bf16.mxu0 0
  %423 = vmatpush1.bf16.msra.mxu0 %v355
  %424 = vmatprep.subr.bf16.mxu0 0
  %425 = vmatpush1.bf16.msra.mxu0 %v356
  %426 = vmatprep.subr.bf16.mxu0 0
  %427 = vmatpush1.bf16.msra.mxu0 %v357
  %428 = vmatprep.subr.bf16.mxu0 0
  %429 = vmatpush1.bf16.msra.mxu0 %v358
  %430 = vmatprep.subr.bf16.mxu0 0
  %431 = vmatpush1.bf16.msra.mxu0 %v359
  %432 = vmatprep.subr.bf16.mxu0 0
  %433 = vmatpush1.bf16.msra.mxu0 %v360
  %434 = vmatprep.subr.bf16.mxu0 0
  %435 = vmatpush1.bf16.msra.mxu0 %v361
  %436 = vmatprep.subr.bf16.mxu0 0
  %437 = vmatpush1.bf16.msra.mxu0 %v362
  %438 = vmatprep.subr.bf16.mxu0 0
  %439 = vmatpush1.bf16.msra.mxu0 %v363
  %440 = vmatprep.subr.bf16.mxu0 0
  %441 = vmatpush1.bf16.msra.mxu0 %v364
  %442 = vmatprep.mubr.bf16.mxu0 %v238
  %443 = vmatmul.mubr.bf16.gmra.mrb[0].mxu0 %v237
  %v444 = vpop.f32.mrb[0].mxu0
  %v445 = vadd.f32 0.0, %v444
  %v446 = vpop.f32.mrb[0].mxu0
  %v447 = vpop.f32.mrb[0].mxu0
  %v448 = vadd.f32 0.0, %v447
  %v449 = vpop.f32.mrb[0].mxu0
  %450 = vmatprep.mubr.bf16.mxu0 %v241
  %451 = vmatmul.mubr.bf16.gmra.mrb[0].mxu0 %v240
  %v452 = vpop.f32.mrb[0].mxu0
  %v453 = vadd.f32 0.0, %v452
  %v454 = vpop.f32.mrb[0].mxu0
  %v455 = vpop.f32.mrb[0].mxu0
  %v456 = vadd.f32 0.0, %v455
  %v457 = vpop.f32.mrb[0].mxu0
  %458 = vmatprep.mubr.bf16.mxu0 %v244
  %459 = vmatmul.mubr.bf16.gmra.mrb[0].mxu0 %v243
  %v460 = vpop.f32.mrb[0].mxu0
  %v461 = vadd.f32 0.0, %v460
  %v462 = vpop.f32.mrb[0].mxu0
  %v463 = vpop.f32.mrb[0].mxu0
  %v464 = vadd.f32 0.0, %v463
  %v465 = vpop.f32.mrb[0].mxu0
  %466 = vmatprep.mubr.bf16.mxu0 %v247
  %467 = vmatmul.mubr.bf16.gmra.mrb[0].mxu0 %v246
  %v468 = vpop.f32.mrb[0].mxu0
  %v469 = vadd.f32 0.0, %v468
  %v470 = vpop.f32.mrb[0].mxu0
  %v471 = vpop.f32.mrb[0].mxu0
  %v472 = vadd.f32 0.0, %v471
  %v473 = vpop.f32.mrb[0].mxu0
  %474 = vmatprep.mubr.bf16.mxu0 %v250
  %475 = vmatmul.mubr.bf16.gmra.mrb[0].mxu0 %v249
  %v476 = vpop.f32.mrb[0].mxu0
  %v477 = vadd.f32 0.0, %v476
  %v478 = vpop.f32.mrb[0].mxu0
  %v479 = vpop.f32.mrb[0].mxu0
  %v480 = vadd.f32 0.0, %v479
  %v481 = vpop.f32.mrb[0].mxu0
  %482 = vmatprep.mubr.bf16.mxu0 %v253
  %483 = vmatmul.mubr.bf16.gmra.mrb[0].mxu0 %v252
  %v484 = vpop.f32.mrb[0].mxu0
  %v485 = vadd.f32 0.0, %v484
  %v486 = vpop.f32.mrb[0].mxu0
  %v487 = vpop.f32.mrb[0].mxu0
  %v488 = vadd.f32 0.0, %v487
  %v489 = vpop.f32.mrb[0].mxu0
  %490 = vmatprep.mubr.bf16.mxu0 %v256
  %491 = vmatmul.mubr.bf16.gmra.mrb[0].mxu0 %v255
  %v492 = vpop.f32.mrb[0].mxu0
  %v493 = vadd.f32 0.0, %v492
  %v494 = vpop.f32.mrb[0].mxu0
  %v495 = vpop.f32.mrb[0].mxu0
  %v496 = vadd.f32 0.0, %v495
  %v497 = vpop.f32.mrb[0].mxu0
  %498 = vmatprep.mubr.bf16.mxu0 %v259
  %499 = vmatmul.mubr.bf16.gmra.mrb[0].mxu0 %v258
  %v500 = vpop.f32.mrb[0].mxu0
  %v501 = vadd.f32 0.0, %v500
  %v502 = vpop.f32.mrb[0].mxu0
  %v503 = vpop.f32.mrb[0].mxu0
  %v504 = vadd.f32 0.0, %v503
  %v505 = vpop.f32.mrb[0].mxu0
  %506 = vdwg.mxu0
  %507 = vmatprep.subr.bf16.mxu0 0
  %508 = vmatpush1.bf16.msra.mxu0 %v365
  %509 = vmatprep.subr.bf16.mxu0 0
  %510 = vmatpush1.bf16.msra.mxu0 %v366
  %511 = vmatprep.subr.bf16.mxu0 0
  %512 = vmatpush1.bf16.msra.mxu0 0
  %513 = vmatprep.subr.bf16.mxu0 0
  %514 = vmatpush1.bf16.msra.mxu0 0
  %515 = vmatprep.subr.bf16.mxu0 0
  %516 = vmatpush1.bf16.msra.mxu0 0
  %517 = vmatprep.subr.bf16.mxu0 0
  %518 = vmatpush1.bf16.msra.mxu0 0
  %519 = vmatprep.subr.bf16.mxu0 0
  %520 = vmatpush1.bf16.msra.mxu0 0
  %521 = vmatprep.subr.bf16.mxu0 0
  %522 = vmatpush1.bf16.msra.mxu0 0
  %523 = vmatprep.subr.bf16.mxu0 0
  %524 = vmatpush1.bf16.msra.mxu0 0
  %525 = vmatprep.subr.bf16.mxu0 0
  %526 = vmatpush1.bf16.msra.mxu0 0
  %527 = vmatprep.subr.bf16.mxu0 0
  %528 = vmatpush1.bf16.msra.mxu0 0
  %529 = vmatprep.subr.bf16.mxu0 0
  %530 = vmatpush1.bf16.msra.mxu0 0
  %531 = vmatprep.subr.bf16.mxu0 0
  %532 = vmatpush1.bf16.msra.mxu0 0
  %533 = vmatprep.subr.bf16.mxu0 0
  %534 = vmatpush1.bf16.msra.mxu0 0
  %535 = vmatprep.subr.bf16.mxu0 0
  %536 = vmatpush1.bf16.msra.mxu0 0
  %537 = vmatprep.subr.bf16.mxu0 0
  %538 = vmatpush1.bf16.msra.mxu0 0
  %539 = vmatprep.mubr.bf16.mxu0 0
  %540 = vmatmul.mubr.bf16.gmra.mrb[0].mxu0 %v387
  %v541 = vpop.f32.mrb[0].mxu0
  %v542 = vadd.f32 %v445, %v541
  %v543 = vpop.f32.mrb[0].mxu0
  %v544 = vpop.f32.mrb[0].mxu0
  %v545 = vadd.f32 %v448, %v544
  %v546 = vpop.f32.mrb[0].mxu0
  %547 = vmatprep.mubr.bf16.mxu0 0
  %548 = vmatmul.mubr.bf16.gmra.mrb[0].mxu0 %v390
  %v549 = vpop.f32.mrb[0].mxu0
  %v550 = vadd.f32 %v453, %v549
  %v551 = vpop.f32.mrb[0].mxu0
  %v552 = vpop.f32.mrb[0].mxu0
  %v553 = vadd.f32 %v456, %v552
  %v554 = vpop.f32.mrb[0].mxu0
  %555 = vmatprep.mubr.bf16.mxu0 0
  %556 = vmatmul.mubr.bf16.gmra.mrb[0].mxu0 %v393
  %v557 = vpop.f32.mrb[0].mxu0
  %v558 = vadd.f32 %v461, %v557
  %v559 = vpop.f32.mrb[0].mxu0
  %v560 = vpop.f32.mrb[0].mxu0
  %v561 = vadd.f32 %v464, %v560
  %v562 = vpop.f32.mrb[0].mxu0
  %563 = vmatprep.mubr.bf16.mxu0 0
  %564 = vmatmul.mubr.bf16.gmra.mrb[0].mxu0 %v396
  %v565 = vpop.f32.mrb[0].mxu0
  %v566 = vadd.f32 %v469, %v565
  %v567 = vpop.f32.mrb[0].mxu0
  %v568 = vpop.f32.mrb[0].mxu0
  %v569 = vadd.f32 %v472, %v568
  %v570 = vpop.f32.mrb[0].mxu0
  %571 = vmatprep.mubr.bf16.mxu0 0
  %572 = vmatmul.mubr.bf16.gmra.mrb[0].mxu0 %v399
  %v573 = vpop.f32.mrb[0].mxu0
  %v574 = vadd.f32 %v477, %v573
  %v575 = vpop.f32.mrb[0].mxu0
  %v576 = vpop.f32.mrb[0].mxu0
  %v577 = vadd.f32 %v480, %v576
  %v578 = vpop.f32.mrb[0].mxu0
  %579 = vmatprep.mubr.bf16.mxu0 0
  %580 = vmatmul.mubr.bf16.gmra.mrb[0].mxu0 %v402
  %v581 = vpop.f32.mrb[0].mxu0
  %v582 = vadd.f32 %v485, %v581
  %v583 = vpop.f32.mrb[0].mxu0
  %v584 = vpop.f32.mrb[0].mxu0
  %v585 = vadd.f32 %v488, %v584
  %v586 = vpop.f32.mrb[0].mxu0
  %587 = vmatprep.mubr.bf16.mxu0 0
  %588 = vmatmul.mubr.bf16.gmra.mrb[0].mxu0 %v405
  %v589 = vpop.f32.mrb[0].mxu0
  %v590 = vadd.f32 %v493, %v589
  %v591 = vpop.f32.mrb[0].mxu0
  %v592 = vpop.f32.mrb[0].mxu0
  %v593 = vadd.f32 %v496, %v592
  %v594 = vpop.f32.mrb[0].mxu0
  %595 = vmatprep.mubr.bf16.mxu0 0
  %596 = vmatmul.mubr.bf16.gmra.mrb[0].mxu0 %v408
  %v597 = vpop.f32.mrb[0].mxu0
  %v598 = vadd.f32 %v501, %v597
  %v599 = vpop.f32.mrb[0].mxu0
  %v600 = vpop.f32.mrb[0].mxu0
  %v601 = vadd.f32 %v504, %v600
  %v602 = vpop.f32.mrb[0].mxu0
  %603 = vdwg.mxu0
  %v636 = vunpack.c.l.b16 %v21
  %v637 = vunpack.c.h.b16 %v21
  %v638 = vunpack.c.l.b16 %v22
  %v639 = vunpack.c.l.b16 %v23
  %v640 = vunpack.c.h.b16 %v23
  %v641 = vunpack.c.l.b16 %v24
  %v642 = vunpack.c.l.b16 %v25
  %v643 = vunpack.c.h.b16 %v25
  %v644 = vunpack.c.l.b16 %v26
  %v645 = vunpack.c.l.b16 %v27
  %v646 = vunpack.c.h.b16 %v27
  %v647 = vunpack.c.l.b16 %v28
  %v648 = vunpack.c.l.b16 %v29
  %v649 = vunpack.c.h.b16 %v29
  %v650 = vunpack.c.l.b16 %v30
  %v651 = vunpack.c.l.b16 %v31
  %v652 = vunpack.c.h.b16 %v31
  %v653 = vunpack.c.l.b16 %v32
  %v654 = vunpack.c.l.b16 %v33
  %v655 = vunpack.c.h.b16 %v33
  %v656 = vunpack.c.l.b16 %v34
  %v657 = vunpack.c.l.b16 %v35
  %v658 = vunpack.c.h.b16 %v35
  %v659 = vunpack.c.l.b16 %v36
  %v660 = vunpack.c.l.b16 %v37
  %v661 = vunpack.c.h.b16 %v37
  %v662 = vunpack.c.l.b16 %v38
  %v663 = vunpack.c.l.b16 %v39
  %v664 = vunpack.c.h.b16 %v39
  %v665 = vunpack.c.l.b16 %v40
  %v666 = vunpack.c.l.b16 %v41
  %v667 = vunpack.c.h.b16 %v41
  %v668 = vunpack.c.l.b16 %v42
  %v669 = vunpack.c.l.b16 %v43
  %v670 = vunpack.c.h.b16 %v43
  %v671 = vunpack.c.l.b16 %v44
  %v672 = vunpack.c.l.b16 %v45
  %v673 = vunpack.c.h.b16 %v45
  %v674 = vunpack.c.l.b16 %v46
  %v675 = vunpack.c.l.b16 %v47
  %v676 = vunpack.c.h.b16 %v47
  %v677 = vunpack.c.l.b16 %v48
  %v678 = vunpack.c.l.b16 %v49
  %v679 = vunpack.c.h.b16 %v49
  %v680 = vunpack.c.l.b16 %v50
  %v681 = vunpack.c.l.b16 %v51
  %v682 = vunpack.c.h.b16 %v51
  %v683 = vunpack.c.l.b16 %v52
  %v684 = vpack.c.b16 %v639, %v636
  %v685 = vpack.c.b16 %v640, %v637
  %v686 = vpack.c.b16 %v641, %v638
  %v687 = vpack.c.b16 %v645, %v642
  %v688 = vpack.c.b16 %v646, %v643
  %v689 = vpack.c.b16 %v647, %v644
  %v690 = vpack.c.b16 %v651, %v648
  %v691 = vpack.c.b16 %v652, %v649
  %v692 = vpack.c.b16 %v653, %v650
  %v693 = vpack.c.b16 %v657, %v654
  %v694 = vpack.c.b16 %v658, %v655
  %v695 = vpack.c.b16 %v659, %v656
  %v696 = vpack.c.b16 %v663, %v660
  %v697 = vpack.c.b16 %v664, %v661
  %v698 = vpack.c.b16 %v665, %v662
  %v699 = vpack.c.b16 %v669, %v666
  %v700 = vpack.c.b16 %v670, %v667
  %v701 = vpack.c.b16 %v671, %v668
  %v702 = vpack.c.b16 %v675, %v672
  %v703 = vpack.c.b16 %v676, %v673
  %v704 = vpack.c.b16 %v677, %v674
  %v705 = vpack.c.b16 %v681, %v678
  %v706 = vpack.c.b16 %v682, %v679
  %v707 = vpack.c.b16 %v683, %v680
  %v760 = vunpack.c.l.b16 %v53
  %v761 = vunpack.c.l.b16 %v54
  %v762 = vunpack.c.l.b16 %v55
  %v763 = vunpack.c.l.b16 %v56
  %v764 = vunpack.c.l.b16 %v57
  %v765 = vunpack.c.l.b16 %v58
  %v766 = vunpack.c.l.b16 %v59
  %v767 = vunpack.c.l.b16 %v60
  %v768 = vunpack.c.l.b16 %v61
  %v769 = vunpack.c.l.b16 %v62
  %v770 = vunpack.c.l.b16 %v63
  %v771 = vunpack.c.l.b16 %v64
  %v772 = vunpack.c.l.b16 %v65
  %v773 = vunpack.c.l.b16 %v66
  %v774 = vunpack.c.l.b16 %v67
  %v775 = vunpack.c.l.b16 %v68
  %v776 = vunpack.c.l.b16 %v69
  %v777 = vunpack.c.l.b16 %v70
  %v778 = vunpack.c.l.b16 %v71
  %v779 = vunpack.c.l.b16 %v72
  %v780 = vunpack.c.l.b16 %v73
  %v781 = vunpack.c.l.b16 %v74
  %v782 = vunpack.c.l.b16 %v75
  %v783 = vunpack.c.l.b16 %v76
  %v784 = vunpack.c.l.b16 %v77
  %v785 = vunpack.c.l.b16 %v78
  %v786 = vunpack.c.l.b16 %v79
  %v787 = vunpack.c.l.b16 %v80
  %v788 = vunpack.c.l.b16 %v81
  %v789 = vunpack.c.l.b16 %v82
  %v790 = vunpack.c.l.b16 %v83
  %v791 = vunpack.c.l.b16 %v84
  %v792 = vunpack.c.l.b16 %v85
  %v793 = vunpack.c.l.b16 %v86
  %v794 = vunpack.c.l.b16 %v87
  %v795 = vunpack.c.l.b16 %v88
  %v796 = vpack.c.b16 %v761, %v760
  %v797 = vpack.c.b16 %v763, %v762
  %v798 = vpack.c.b16 %v765, %v764
  %v799 = vpack.c.b16 %v767, %v766
  %v800 = vpack.c.b16 %v769, %v768
  %v801 = vpack.c.b16 %v771, %v770
  %v802 = vpack.c.b16 %v773, %v772
  %v803 = vpack.c.b16 %v775, %v774
  %v804 = vpack.c.b16 %v777, %v776
  %v805 = vpack.c.b16 %v779, %v778
  %v806 = vpack.c.b16 %v781, %v780
  %v807 = vpack.c.b16 %v783, %v782
  %v808 = vpack.c.b16 %v785, %v784
  %v809 = vpack.c.b16 %v787, %v786
  %v810 = vpack.c.b16 %v789, %v788
  %v811 = vpack.c.b16 %v791, %v790
  %v812 = vpack.c.b16 %v793, %v792
  %v813 = vpack.c.b16 %v795, %v794
  %v833 = vsel %vm385, %v686, 0
  %v836 = vsel %vm385, %v689, 0
  %v839 = vsel %vm385, %v692, 0
  %v842 = vsel %vm385, %v695, 0
  %v845 = vsel %vm385, %v698, 0
  %v848 = vsel %vm385, %v701, 0
  %v851 = vsel %vm385, %v704, 0
  %v854 = vsel %vm385, %v707, 0
  %856 = vmatprep.subr.bf16.mxu0 0
  %857 = vmatpush1.bf16.msra.mxu0 %v796
  %858 = vmatprep.subr.bf16.mxu0 0
  %859 = vmatpush1.bf16.msra.mxu0 %v797
  %860 = vmatprep.subr.bf16.mxu0 0
  %861 = vmatpush1.bf16.msra.mxu0 %v798
  %862 = vmatprep.subr.bf16.mxu0 0
  %863 = vmatpush1.bf16.msra.mxu0 %v799
  %864 = vmatprep.subr.bf16.mxu0 0
  %865 = vmatpush1.bf16.msra.mxu0 %v800
  %866 = vmatprep.subr.bf16.mxu0 0
  %867 = vmatpush1.bf16.msra.mxu0 %v801
  %868 = vmatprep.subr.bf16.mxu0 0
  %869 = vmatpush1.bf16.msra.mxu0 %v802
  %870 = vmatprep.subr.bf16.mxu0 0
  %871 = vmatpush1.bf16.msra.mxu0 %v803
  %872 = vmatprep.subr.bf16.mxu0 0
  %873 = vmatpush1.bf16.msra.mxu0 %v804
  %874 = vmatprep.subr.bf16.mxu0 0
  %875 = vmatpush1.bf16.msra.mxu0 %v805
  %876 = vmatprep.subr.bf16.mxu0 0
  %877 = vmatpush1.bf16.msra.mxu0 %v806
  %878 = vmatprep.subr.bf16.mxu0 0
  %879 = vmatpush1.bf16.msra.mxu0 %v807
  %880 = vmatprep.subr.bf16.mxu0 0
  %881 = vmatpush1.bf16.msra.mxu0 %v808
  %882 = vmatprep.subr.bf16.mxu0 0
  %883 = vmatpush1.bf16.msra.mxu0 %v809
  %884 = vmatprep.subr.bf16.mxu0 0
  %885 = vmatpush1.bf16.msra.mxu0 %v810
  %886 = vmatprep.subr.bf16.mxu0 0
  %887 = vmatpush1.bf16.msra.mxu0 %v811
  %888 = vmatprep.mubr.bf16.mxu0 %v685
  %889 = vmatmul.mubr.bf16.gmra.mrb[0].mxu0 %v684
  %v890 = vpop.f32.mrb[0].mxu0
  %v891 = vadd.f32 %v542, %v890
  %v892 = vpop.f32.mrb[0].mxu0
  %v893 = vpop.f32.mrb[0].mxu0
  %v894 = vadd.f32 %v545, %v893
  %v895 = vpop.f32.mrb[0].mxu0
  %896 = vmatprep.mubr.bf16.mxu0 %v688
  %897 = vmatmul.mubr.bf16.gmra.mrb[0].mxu0 %v687
  %v898 = vpop.f32.mrb[0].mxu0
  %v899 = vadd.f32 %v550, %v898
  %v900 = vpop.f32.mrb[0].mxu0
  %v901 = vpop.f32.mrb[0].mxu0
  %v902 = vadd.f32 %v553, %v901
  %v903 = vpop.f32.mrb[0].mxu0
  %904 = vmatprep.mubr.bf16.mxu0 %v691
  %905 = vmatmul.mubr.bf16.gmra.mrb[0].mxu0 %v690
  %v906 = vpop.f32.mrb[0].mxu0
  %v907 = vadd.f32 %v558, %v906
  %v908 = vpop.f32.mrb[0].mxu0
  %v909 = vpop.f32.mrb[0].mxu0
  %v910 = vadd.f32 %v561, %v909
  %v911 = vpop.f32.mrb[0].mxu0
  %912 = vmatprep.mubr.bf16.mxu0 %v694
  %913 = vmatmul.mubr.bf16.gmra.mrb[0].mxu0 %v693
  %v914 = vpop.f32.mrb[0].mxu0
  %v915 = vadd.f32 %v566, %v914
  %v916 = vpop.f32.mrb[0].mxu0
  %v917 = vpop.f32.mrb[0].mxu0
  %v918 = vadd.f32 %v569, %v917
  %v919 = vpop.f32.mrb[0].mxu0
  %920 = vmatprep.mubr.bf16.mxu0 %v697
  %921 = vmatmul.mubr.bf16.gmra.mrb[0].mxu0 %v696
  %v922 = vpop.f32.mrb[0].mxu0
  %v923 = vadd.f32 %v574, %v922
  %v924 = vpop.f32.mrb[0].mxu0
  %v925 = vpop.f32.mrb[0].mxu0
  %v926 = vadd.f32 %v577, %v925
  %v927 = vpop.f32.mrb[0].mxu0
  %928 = vmatprep.mubr.bf16.mxu0 %v700
  %929 = vmatmul.mubr.bf16.gmra.mrb[0].mxu0 %v699
  %v930 = vpop.f32.mrb[0].mxu0
  %v931 = vadd.f32 %v582, %v930
  %v932 = vpop.f32.mrb[0].mxu0
  %v933 = vpop.f32.mrb[0].mxu0
  %v934 = vadd.f32 %v585, %v933
  %v935 = vpop.f32.mrb[0].mxu0
  %936 = vmatprep.mubr.bf16.mxu0 %v703
  %937 = vmatmul.mubr.bf16.gmra.mrb[0].mxu0 %v702
  %v938 = vpop.f32.mrb[0].mxu0
  %v939 = vadd.f32 %v590, %v938
  %v940 = vpop.f32.mrb[0].mxu0
  %v941 = vpop.f32.mrb[0].mxu0
  %v942 = vadd.f32 %v593, %v941
  %v943 = vpop.f32.mrb[0].mxu0
  %944 = vmatprep.mubr.bf16.mxu0 %v706
  %945 = vmatmul.mubr.bf16.gmra.mrb[0].mxu0 %v705
  %v946 = vpop.f32.mrb[0].mxu0
  %v947 = vadd.f32 %v598, %v946
  %v948 = vpop.f32.mrb[0].mxu0
  %v949 = vpop.f32.mrb[0].mxu0
  %v950 = vadd.f32 %v601, %v949
  %v951 = vpop.f32.mrb[0].mxu0
  %952 = vdwg.mxu0
  %953 = vmatprep.subr.bf16.mxu0 0
  %954 = vmatpush1.bf16.msra.mxu0 %v812
  %955 = vmatprep.subr.bf16.mxu0 0
  %956 = vmatpush1.bf16.msra.mxu0 %v813
  %957 = vmatprep.subr.bf16.mxu0 0
  %958 = vmatpush1.bf16.msra.mxu0 0
  %959 = vmatprep.subr.bf16.mxu0 0
  %960 = vmatpush1.bf16.msra.mxu0 0
  %961 = vmatprep.subr.bf16.mxu0 0
  %962 = vmatpush1.bf16.msra.mxu0 0
  %963 = vmatprep.subr.bf16.mxu0 0
  %964 = vmatpush1.bf16.msra.mxu0 0
  %965 = vmatprep.subr.bf16.mxu0 0
  %966 = vmatpush1.bf16.msra.mxu0 0
  %967 = vmatprep.subr.bf16.mxu0 0
  %968 = vmatpush1.bf16.msra.mxu0 0
  %969 = vmatprep.subr.bf16.mxu0 0
  %970 = vmatpush1.bf16.msra.mxu0 0
  %971 = vmatprep.subr.bf16.mxu0 0
  %972 = vmatpush1.bf16.msra.mxu0 0
  %973 = vmatprep.subr.bf16.mxu0 0
  %974 = vmatpush1.bf16.msra.mxu0 0
  %975 = vmatprep.subr.bf16.mxu0 0
  %976 = vmatpush1.bf16.msra.mxu0 0
  %977 = vmatprep.subr.bf16.mxu0 0
  %978 = vmatpush1.bf16.msra.mxu0 0
  %979 = vmatprep.subr.bf16.mxu0 0
  %980 = vmatpush1.bf16.msra.mxu0 0
  %981 = vmatprep.subr.bf16.mxu0 0
  %982 = vmatpush1.bf16.msra.mxu0 0
  %983 = vmatprep.subr.bf16.mxu0 0
  %984 = vmatpush1.bf16.msra.mxu0 0
  %985 = vmatprep.mubr.bf16.mxu0 0
  %986 = vmatmul.mubr.bf16.gmra.mrb[0].mxu0 %v833
  %v987 = vpop.f32.mrb[0].mxu0
  %v988 = vadd.f32 %v891, %v987
  %v989 = vpop.f32.mrb[0].mxu0
  %v990 = vpop.f32.mrb[0].mxu0
  %v991 = vadd.f32 %v894, %v990
  %v992 = vpop.f32.mrb[0].mxu0
  %993 = vmatprep.mubr.bf16.mxu0 0
  %994 = vmatmul.mubr.bf16.gmra.mrb[0].mxu0 %v836
  %v995 = vpop.f32.mrb[0].mxu0
  %v996 = vadd.f32 %v899, %v995
  %v997 = vpop.f32.mrb[0].mxu0
  %v998 = vpop.f32.mrb[0].mxu0
  %v999 = vadd.f32 %v902, %v998
  %v1000 = vpop.f32.mrb[0].mxu0
  %1001 = vmatprep.mubr.bf16.mxu0 0
  %1002 = vmatmul.mubr.bf16.gmra.mrb[0].mxu0 %v839
  %v1003 = vpop.f32.mrb[0].mxu0
  %v1004 = vadd.f32 %v907, %v1003
  %v1005 = vpop.f32.mrb[0].mxu0
  %v1006 = vpop.f32.mrb[0].mxu0
  %v1007 = vadd.f32 %v910, %v1006
  %v1008 = vpop.f32.mrb[0].mxu0
  %1009 = vmatprep.mubr.bf16.mxu0 0
  %1010 = vmatmul.mubr.bf16.gmra.mrb[0].mxu0 %v842
  %v1011 = vpop.f32.mrb[0].mxu0
  %v1012 = vadd.f32 %v915, %v1011
  %v1013 = vpop.f32.mrb[0].mxu0
  %v1014 = vpop.f32.mrb[0].mxu0
  %v1015 = vadd.f32 %v918, %v1014
  %v1016 = vpop.f32.mrb[0].mxu0
  %1017 = vmatprep.mubr.bf16.mxu0 0
  %1018 = vmatmul.mubr.bf16.gmra.mrb[0].mxu0 %v845
  %v1019 = vpop.f32.mrb[0].mxu0
  %v1020 = vadd.f32 %v923, %v1019
  %v1021 = vpop.f32.mrb[0].mxu0
  %v1022 = vpop.f32.mrb[0].mxu0
  %v1023 = vadd.f32 %v926, %v1022
  %v1024 = vpop.f32.mrb[0].mxu0
  %1025 = vmatprep.mubr.bf16.mxu0 0
  %1026 = vmatmul.mubr.bf16.gmra.mrb[0].mxu0 %v848
  %v1027 = vpop.f32.mrb[0].mxu0
  %v1028 = vadd.f32 %v931, %v1027
  %v1029 = vpop.f32.mrb[0].mxu0
  %v1030 = vpop.f32.mrb[0].mxu0
  %v1031 = vadd.f32 %v934, %v1030
  %v1032 = vpop.f32.mrb[0].mxu0
  %1033 = vmatprep.mubr.bf16.mxu0 0
  %1034 = vmatmul.mubr.bf16.gmra.mrb[0].mxu0 %v851
  %v1035 = vpop.f32.mrb[0].mxu0
  %v1036 = vadd.f32 %v939, %v1035
  %v1037 = vpop.f32.mrb[0].mxu0
  %v1038 = vpop.f32.mrb[0].mxu0
  %v1039 = vadd.f32 %v942, %v1038
  %v1040 = vpop.f32.mrb[0].mxu0
  %1041 = vmatprep.mubr.bf16.mxu0 0
  %1042 = vmatmul.mubr.bf16.gmra.mrb[0].mxu0 %v854
  %v1043 = vpop.f32.mrb[0].mxu0
  %v1044 = vadd.f32 %v947, %v1043
  %v1045 = vpop.f32.mrb[0].mxu0
  %v1046 = vpop.f32.mrb[0].mxu0
  %v1047 = vadd.f32 %v950, %v1046
  %v1048 = vpop.f32.mrb[0].mxu0
  %1049 = vdwg.mxu0
  %v1050 = vld [vmem:[%s4] sm:$0x1]
  %v1052 = vlaneseq
  %v1053 = vshrl.u32 %v1052, 7
  %v1054 = vsub.s32 0, %v1053
  %v1055 = vrot.slane %v1050, %v1054
  %v1057 = vadd.f32 %v988, %v1055
  %v1058 = vadd.f32 %v991, %v1055
  %v1059 = vadd.f32 %v996, %v1055
  %v1060 = vadd.f32 %v999, %v1055
  %v1061 = vadd.f32 %v1004, %v1055
  %v1062 = vadd.f32 %v1007, %v1055
  %v1063 = vadd.f32 %v1012, %v1055
  %v1064 = vadd.f32 %v1015, %v1055
  %v1065 = vadd.f32 %v1020, %v1055
  %v1066 = vadd.f32 %v1023, %v1055
  %v1067 = vadd.f32 %v1028, %v1055
  %v1068 = vadd.f32 %v1031, %v1055
  %v1069 = vadd.f32 %v1036, %v1055
  %v1070 = vadd.f32 %v1039, %v1055
  %v1071 = vadd.f32 %v1044, %v1055
  %v1072 = vadd.f32 %v1047, %v1055
  %v1073 = vmax.f32 %v1057, 0.0
  %v1074 = vmax.f32 %v1058, 0.0
  %v1075 = vmax.f32 %v1059, 0.0
  %v1076 = vmax.f32 %v1060, 0.0
  %v1077 = vmax.f32 %v1061, 0.0
  %v1078 = vmax.f32 %v1062, 0.0
  %v1079 = vmax.f32 %v1063, 0.0
  %v1080 = vmax.f32 %v1064, 0.0
  %v1081 = vmax.f32 %v1065, 0.0
  %v1082 = vmax.f32 %v1066, 0.0
  %v1083 = vmax.f32 %v1067, 0.0
  %v1084 = vmax.f32 %v1068, 0.0
  %v1085 = vmax.f32 %v1069, 0.0
  %v1086 = vmax.f32 %v1070, 0.0
  %v1087 = vmax.f32 %v1071, 0.0
  %v1088 = vmax.f32 %v1072, 0.0
  %v1089 = vpack.c.bf16 %v1074, %v1073
  %v1090 = vpack.c.bf16 %v1076, %v1075
  %v1091 = vpack.c.bf16 %v1078, %v1077
  %v1092 = vpack.c.bf16 %v1080, %v1079
  %v1093 = vpack.c.bf16 %v1082, %v1081
  %v1094 = vpack.c.bf16 %v1084, %v1083
  %v1095 = vpack.c.bf16 %v1086, %v1085
  %v1096 = vpack.c.bf16 %v1088, %v1087
  %v1105 = vunpack.c.l.b16 %v1089
  %v1106 = vunpack.c.h.b16 %v1089
  %v1107 = vunpack.c.l.b16 %v1090
  %v1108 = vunpack.c.h.b16 %v1090
  %v1109 = vunpack.c.l.b16 %v1091
  %v1110 = vunpack.c.h.b16 %v1091
  %v1111 = vunpack.c.l.b16 %v1092
  %v1112 = vunpack.c.h.b16 %v1092
  %v1113 = vunpack.c.l.b16 %v1093
  %v1114 = vunpack.c.h.b16 %v1093
  %v1115 = vunpack.c.l.b16 %v1094
  %v1116 = vunpack.c.h.b16 %v1094
  %v1117 = vunpack.c.l.b16 %v1095
  %v1118 = vunpack.c.h.b16 %v1095
  %v1119 = vunpack.c.l.b16 %v1096
  %v1120 = vunpack.c.h.b16 %v1096
  %v1121 = vpack.c.b16 %v1105, %v1105
  %v1122 = vpack.c.b16 %v1106, %v1106
  %v1123 = vpack.c.b16 %v1107, %v1107
  %v1124 = vpack.c.b16 %v1108, %v1108
  %v1125 = vpack.c.b16 %v1109, %v1109
  %v1126 = vpack.c.b16 %v1110, %v1110
  %v1127 = vpack.c.b16 %v1111, %v1111
  %v1128 = vpack.c.b16 %v1112, %v1112
  %v1129 = vpack.c.b16 %v1113, %v1113
  %v1130 = vpack.c.b16 %v1114, %v1114
  %v1131 = vpack.c.b16 %v1115, %v1115
  %v1132 = vpack.c.b16 %v1116, %v1116
  %v1133 = vpack.c.b16 %v1117, %v1117
  %v1134 = vpack.c.b16 %v1118, %v1118
  %v1135 = vpack.c.b16 %v1119, %v1119
  %v1136 = vpack.c.b16 %v1120, %v1120
  %vm1153 = vcmask 257024
  %1154 = vst.msk [vmem:[%s5] sm:$0xf] %vm1153, %v1121
  %1155 = vst.msk [vmem:[%s5 + $0x4] sm:$0xf] %vm1153, %v1122
  %1156 = vst.msk [vmem:[%s5 + $0x8] sm:$0xf] %vm1153, %v1123
  %1157 = vst.msk [vmem:[%s5 + $0xc] sm:$0xf] %vm1153, %v1124
  %1158 = vst.msk [vmem:[%s5 + $0x10] sm:$0xf] %vm1153, %v1125
  %1159 = vst.msk [vmem:[%s5 + $0x14] sm:$0xf] %vm1153, %v1126
  %1160 = vst.msk [vmem:[%s5 + $0x18] sm:$0xf] %vm1153, %v1127
  %1161 = vst.msk [vmem:[%s5 + $0x1c] sm:$0xf] %vm1153, %v1128
  %1162 = vst.msk [vmem:[%s5 + $0x20] sm:$0xf] %vm1153, %v1129
  %1163 = vst.msk [vmem:[%s5 + $0x24] sm:$0xf] %vm1153, %v1130
  %1164 = vst.msk [vmem:[%s5 + $0x28] sm:$0xf] %vm1153, %v1131
  %1165 = vst.msk [vmem:[%s5 + $0x2c] sm:$0xf] %vm1153, %v1132
  %1166 = vst.msk [vmem:[%s5 + $0x30] sm:$0xf] %vm1153, %v1133
  %1167 = vst.msk [vmem:[%s5 + $0x34] sm:$0xf] %vm1153, %v1134
  %1168 = vst.msk [vmem:[%s5 + $0x38] sm:$0xf] %vm1153, %v1135
  %1169 = vst.msk [vmem:[%s5 + $0x3c] sm:$0xf] %vm1153, %v1136
  // Predicated region
  $region22: #{wrapped_model_forward.13} parent=0 // pred_check
    _
  $region23: #{wrapped_model_forward.13} parent=0 // pred_check_branch
    %1171 = sbr.rel (0) target = $region25
  $region24: #{wrapped_model_forward.13} parent=0 // pred_region
    _
  $region25: #{wrapped_model_forward.13} parent=0 // pred_fallthru
    _
  // Predicated region
  $region26: #{wrapped_model_forward.13} parent=0 // pred_check
    _
  $region27: #{wrapped_model_forward.13} parent=0 // pred_check_branch
    %1173 = sbr.rel (0) target = $region29
  $region28: #{wrapped_model_forward.13} parent=0 // pred_region
    _
  $region29: #{wrapped_model_forward.13} parent=0 // pred_fallthru
    _

// kernel: wrapped_model_forward.14
$region0: #{wrapped_model_forward.14}
  #allocation0 [shape = 'u32[]', space=smem, size = 0x4, offset = 0x4, fixed_abs, tag = 'smem constant byte address 0x4 - core index']
  #allocation1 [shape = 'u32[144,128]{1,0:T(1,128)}', space=vmem, size = 0x12000, scoped, tag = 'internal scratch']
  %s0 = inlined_call_operand.vmem [shape: bf16[4,128,128], index: 0, kind: input, shape index: {}]
  %s1 = inlined_call_operand.vmem [shape: bf16[4,128,16], index: 1, kind: input, shape index: {}]
  %s2 = inlined_call_operand.vmem [shape: f32[1,16], index: 2, kind: input, shape index: {}]
  %s3 = inlined_call_operand.vmem [shape: bf16[4,128,16], index: 3, kind: output, shape index: {}]
  %s4 = sld [smem:[#allocation0]]
  $region45: #{wrapped_model_forward.14} parent=0
    _
  %s6 = ssub.s32 1, %s4
  %s7 = scalar_select 0, %s6, %s4
  loop: start=0, step=1, limit=6
  $region2: #{wrapped_model_forward.14} parent=0 // loop_pre_header
    _
  $region3: #{wrapped_model_forward.14} parent=0 // loop_header
    %s9 = sphi 0, %s13
    %p10 = scmp.ge.s32.totalorder %s9, 6
    %s16 = sphi 0, %s28
    %s17 = sphi 0, %s24
    %s18 = sphi 0, %s16
    %s19 = sphi 0, %s17
    %s20 = sphi 0, %s18
    %s21 = sphi 0, %s19
    %s33 = sphi 0, %s35
    %s36 = sphi 0, %s33
    %s37 = sphi 0, %s36
    %s53 = sphi 0, %s37
    %s59 = sphi 0, %s61
    %s62 = sphi 0, %s59
    %s63 = sphi 0, %s62
    %s79 = sphi 0, %s63
    %s83 = sphi 0, %s83
    %s85 = sphi 0, %s83
    %s86 = sphi 0, %s85
    %s100 = sphi 0, %s86
    %s108 = sphi 0, %s110
    %s111 = sphi 0, %s108
    %s112 = sphi 0, %s111
    %s128 = sphi 0, %s112
  $region4: #{wrapped_model_forward.14} parent=0 // loop_header_branch
    %12 = sbr.rel (%p10) target = $region8
  $region5: #{wrapped_model_forward.14} parent=0 // loop_body
    %s14 = ssub.s32 %s9, 1
    %s15 = ssub.s32 %s9, 2
    %s22 = sadd.s32 1, %s17
    %p23 = scmp.ge.s32.totalorder %s22, 1
    %s24 = scalar_select %p23, 0, %s22
    %s25 = sadd.s32 1, %s16
    %s26 = scalar_select %p23, %s25, %s16
    %p27 = scmp.ge.s32.totalorder %s26, 4
    %s28 = scalar_select %p27, 0, %s26
    %s29 = ssub.s32 %s16, %s28
    %s30 = ssub.s32 %s17, %s24
    %s31 = sor.u32 %s29, %s30
    %p32 = scmp.eq.s32.totalorder %s31, 0
    %s34 = sadd.s32 %s33, 1
    %s35 = scalar_select %p32, %s33, %s34
    %p38 = pneg %p32
    %p39 = scmp.eq.s32.totalorder %s9, 3
    %p40 = por %p38, %p39
    %p41 = scmp.ne.s32.totalorder %s33, %s36
    %p42 = scmp.eq.s32.totalorder %s9, 0
    %p43 = por %p41, %p42
    %p44 = scmp.ne.s32.totalorder %s33, %s36
    %p45 = scmp.eq.s32.totalorder %s14, 3
    %p46 = por %p44, %p45
    %p47 = scmp.ne.s32.totalorder %s36, %s37
    %p48 = scmp.eq.s32.totalorder %s14, 0
    %p49 = por %p47, %p48
    %p50 = scmp.ne.s32.totalorder %s36, %s37
    %p51 = scmp.eq.s32.totalorder %s15, 3
    %p52 = por %p50, %p51
    %p54 = scmp.ne.s32.totalorder %s37, %s53
    %p55 = scmp.eq.s32.totalorder %s15, 0
    %p56 = por %p54, %p55
    %s57 = ssub.s32 %s16, %s28
    %p58 = scmp.eq.s32.totalorder %s57, 0
    %s60 = sadd.s32 %s59, 1
    %s61 = scalar_select %p58, %s59, %s60
    %p64 = pneg %p58
    %p65 = scmp.eq.s32.totalorder %s9, 3
    %p66 = por %p64, %p65
    %p67 = scmp.ne.s32.totalorder %s59, %s62
    %p68 = scmp.eq.s32.totalorder %s9, 0
    %p69 = por %p67, %p68
    %p70 = scmp.ne.s32.totalorder %s59, %s62
    %p71 = scmp.eq.s32.totalorder %s14, 3
    %p72 = por %p70, %p71
    %p73 = scmp.ne.s32.totalorder %s62, %s63
    %p74 = scmp.eq.s32.totalorder %s14, 0
    %p75 = por %p73, %p74
    %p76 = scmp.ne.s32.totalorder %s62, %s63
    %p77 = scmp.eq.s32.totalorder %s15, 3
    %p78 = por %p76, %p77
    %p80 = scmp.ne.s32.totalorder %s63, %s79
    %p81 = scmp.eq.s32.totalorder %s15, 0
    %p82 = por %p80, %p81
    %s84 = sadd.s32 %s83, 1
    %p87 = scmp.eq.s32.totalorder %s9, 3
    %p88 = scmp.ne.s32.totalorder %s83, %s85
    %p89 = scmp.eq.s32.totalorder %s9, 0
    %p90 = por %p88, %p89
    %p91 = scmp.ne.s32.totalorder %s83, %s85
    %p92 = scmp.eq.s32.totalorder %s14, 3
    %p93 = por %p91, %p92
    %p94 = scmp.ne.s32.totalorder %s85, %s86
    %p95 = scmp.eq.s32.totalorder %s14, 0
    %p96 = por %p94, %p95
    %p97 = scmp.ne.s32.totalorder %s85, %s86
    %p98 = scmp.eq.s32.totalorder %s15, 3
    %p99 = por %p97, %p98
    %p101 = scmp.ne.s32.totalorder %s86, %s100
    %p102 = scmp.eq.s32.totalorder %s15, 0
    %p103 = por %p101, %p102
    %s104 = ssub.s32 %s16, %s28
    %s105 = ssub.s32 %s17, %s24
    %s106 = sor.u32 %s104, %s105
    %p107 = scmp.eq.s32.totalorder %s106, 0
    %s109 = sadd.s32 %s108, 1
    %s110 = scalar_select %p107, %s108, %s109
    %p113 = pneg %p107
    %p114 = scmp.eq.s32.totalorder %s9, 3
    %p115 = por %p113, %p114
    %p116 = scmp.ne.s32.totalorder %s108, %s111
    %p117 = scmp.eq.s32.totalorder %s9, 0
    %p118 = por %p116, %p117
    %p119 = scmp.ne.s32.totalorder %s108, %s111
    %p120 = scmp.eq.s32.totalorder %s14, 3
    %p121 = por %p119, %p120
    %p122 = scmp.ne.s32.totalorder %s111, %s112
    %p123 = scmp.eq.s32.totalorder %s14, 0
    %p124 = por %p122, %p123
    %p125 = scmp.ne.s32.totalorder %s111, %s112
    %p126 = scmp.eq.s32.totalorder %s15, 3
    %p127 = por %p125, %p126
    %p129 = scmp.ne.s32.totalorder %s112, %s128
    %p130 = scmp.eq.s32.totalorder %s15, 0
    %p131 = por %p129, %p130
    %p132 = scmp.le.s32.totalorder 1, %s9
    %p133 = scmp.lt.s32.totalorder %s9, 5
    %p134 = pnand %p132, %p133
    %p135 = pneg %p134
    // Predicated region
    $region9: #{wrapped_model_forward.14} parent=5 // pred_check
      _
    $region10: #{wrapped_model_forward.14} parent=5 // pred_check_branch
      %137 = sbr.rel (%p134) target = $region12
    $region11: #{wrapped_model_forward.14} parent=5 // pred_region
      %s138 = ssub.s32 %s9, 1
      // Predicated region
      $region13: #{wrapped_model_forward.14} parent=11 // pred_check
        %p139 = pneg %p96
      $region14: #{wrapped_model_forward.14} parent=11 // pred_check_branch
        %141 = sbr.rel (%p139) target = $region16
      $region15: #{wrapped_model_forward.14} parent=11 // pred_region
        _
      $region16: #{wrapped_model_forward.14} parent=11 // pred_fallthru
        _
    $region12: #{wrapped_model_forward.14} parent=5 // pred_fallthru
      _
    %p142 = scmp.lt.s32.totalorder %s9, 4
    // Predicated region
    $region17: #{wrapped_model_forward.14} parent=5 // pred_check
      %p143 = pneg %p142
    $region18: #{wrapped_model_forward.14} parent=5 // pred_check_branch
      %145 = sbr.rel (%p143) target = $region20
    $region19: #{wrapped_model_forward.14} parent=5 // pred_region
      // Predicated region
      $region21: #{wrapped_model_forward.14} parent=19 // pred_check
        %p146 = pneg %p43
      $region22: #{wrapped_model_forward.14} parent=19 // pred_check_branch
        %148 = sbr.rel (%p146) target = $region24
      $region23: #{wrapped_model_forward.14} parent=19 // pred_region
        %s149 = smul.u32 16, %s17
        %p150 = scmp.lt.s32.totalorder %s16, 3
        %s151 = scalar_select %p150, %s16, 3
        %p152 = scmp.lt.s32.totalorder %s149, 15
        %s153 = scalar_select %p152, %s149, 15
        %s154 = smul.addr %s151, 16
        %s155 = sadd.s32 %s153, %s154
        %s156 = smul.addr %s155, 4
        %s157 = scalar_lea.vmem %s0, %s156
        %s158 = smul.u32 16, %s17
      $region24: #{wrapped_model_forward.14} parent=19 // pred_fallthru
        _
      // Predicated region
      $region25: #{wrapped_model_forward.14} parent=19 // pred_check
        %p159 = pneg %p69
      $region26: #{wrapped_model_forward.14} parent=19 // pred_check_branch
        %161 = sbr.rel (%p159) target = $region28
      $region27: #{wrapped_model_forward.14} parent=19 // pred_region
        %p162 = scmp.lt.s32.totalorder %s16, 3
        %s163 = scalar_select %p162, %s16, 3
        %s164 = smul.addr %s163, 16
        %s165 = smul.addr %s164, 4
        %s166 = scalar_lea.vmem %s1, %s165
      $region28: #{wrapped_model_forward.14} parent=19 // pred_fallthru
        _
    $region20: #{wrapped_model_forward.14} parent=5 // pred_fallthru
      _
    %p167 = scmp.le.s32.totalorder 1, %s9
    %p168 = scmp.lt.s32.totalorder %s9, 5
    %p169 = pnand %p167, %p168
    %p170 = pneg %p169
    // Predicated region
    $region29: #{wrapped_model_forward.14} parent=5 // pred_check
      _
    $region30: #{wrapped_model_forward.14} parent=5 // pred_check_branch
      %172 = sbr.rel (%p169) target = $region32
    $region31: #{wrapped_model_forward.14} parent=5 // pred_region
      %s173 = ssub.s32 %s9, 1
      %s174 = smul.u32 16, %s19
      %p175 = scmp.lt.s32.totalorder %s18, 3
      %s176 = scalar_select %p175, %s18, 3
      %p177 = scmp.lt.s32.totalorder %s174, 15
      %s178 = scalar_select %p177, %s174, 15
      %s179 = smul.addr %s176, 16
      %s180 = sadd.s32 %s178, %s179
      %s181 = smul.addr %s180, 4
      %s182 = scalar_lea.vmem %s0, %s181
      %p183 = pneg %p49
      %p184 = pneg %p46
      %p185 = scmp.lt.s32.totalorder %s18, 3
      %s186 = scalar_select %p185, %s18, 3
      %s187 = smul.addr %s186, 16
      %s188 = smul.addr %s187, 4
      %s189 = scalar_lea.vmem %s1, %s188
      %p190 = pneg %p75
      %p191 = pneg %p72
      %p192 = pneg %p96
      %p193 = pneg %p93
      %p194 = pneg %p124
      %p195 = pneg %p121
      %s196 = smul.u32 16, %s19
      %p197 = scmp.lt.s32.totalorder %s18, 3
      %s198 = scalar_select %p197, %s18, 3
      %p199 = scmp.lt.s32.totalorder %s196, 15
      %s200 = scalar_select %p199, %s196, 15
      %s201 = smul.addr %s198, 16
      %s202 = sadd.s32 %s200, %s201
      %s203 = smul.addr %s202, 4
      %s204 = scalar_lea.vmem %s3, %s203
      %s205 = smul.u32 16, %s19
      %p206 = scmp.lt.s32.totalorder %s18, 3
      %s207 = scalar_select %p206, %s18, 3
      %p208 = scmp.lt.s32.totalorder %s205, 15
      %s209 = scalar_select %p208, %s205, 15
      %s210 = smul.addr %s207, 16
      %s211 = sadd.s32 %s209, %s210
      %s212 = smul.addr %s211, 4
      %s213 = scalar_lea.vmem %s0, %s212
      %s214 = smul.u32 16, %s19
      %p215 = scmp.lt.s32.totalorder %s18, 3
      %s216 = scalar_select %p215, %s18, 3
      %s217 = smul.addr %s216, 16
      %s218 = smul.addr %s217, 4
      %s219 = scalar_lea.vmem %s1, %s218
      %s220 = smul.u32 16, %s19
      %p221 = scmp.lt.s32.totalorder %s18, 3
      %s222 = scalar_select %p221, %s18, 3
      %p223 = scmp.lt.s32.totalorder %s220, 15
      %s224 = scalar_select %p223, %s220, 15
      %s225 = smul.addr %s222, 16
      %s226 = sadd.s32 %s224, %s225
      %s227 = smul.addr %s226, 4
      %s228 = scalar_lea.vmem %s3, %s227
      %s229 = smul.u32 16, %s19
      %v231 = vld [vmem:[%s213] sm:$0xf]
      %v232 = vld [vmem:[%s213 + $0x4] sm:$0xf]
      %v233 = vld [vmem:[%s213 + $0x8] sm:$0xf]
      %v234 = vld [vmem:[%s213 + $0xc] sm:$0xf]
      %v235 = vld [vmem:[%s213 + $0x10] sm:$0xf]
      %v236 = vld [vmem:[%s213 + $0x14] sm:$0xf]
      %v237 = vld [vmem:[%s213 + $0x18] sm:$0xf]
      %v238 = vld [vmem:[%s213 + $0x1c] sm:$0xf]
      %v239 = vld [vmem:[%s213 + $0x20] sm:$0xf]
      %v240 = vld [vmem:[%s213 + $0x24] sm:$0xf]
      %v241 = vld [vmem:[%s213 + $0x28] sm:$0xf]
      %v242 = vld [vmem:[%s213 + $0x2c] sm:$0xf]
      %v243 = vld [vmem:[%s213 + $0x30] sm:$0xf]
      %v244 = vld [vmem:[%s213 + $0x34] sm:$0xf]
      %v245 = vld [vmem:[%s213 + $0x38] sm:$0xf]
      %v246 = vld [vmem:[%s213 + $0x3c] sm:$0xf]
      %v247 = vld [vmem:[%s219] sm:$0xf]
      %v248 = vld [vmem:[%s219 + $0x4] sm:$0xf]
      %v249 = vld [vmem:[%s219 + $0x8] sm:$0xf]
      %v250 = vld [vmem:[%s219 + $0xc] sm:$0xf]
      %v251 = vld [vmem:[%s219 + $0x10] sm:$0xf]
      %v252 = vld [vmem:[%s219 + $0x14] sm:$0xf]
      %v253 = vld [vmem:[%s219 + $0x18] sm:$0xf]
      %v254 = vld [vmem:[%s219 + $0x1c] sm:$0xf]
      %v255 = vld [vmem:[%s219 + $0x20] sm:$0xf]
      %v256 = vld [vmem:[%s219 + $0x24] sm:$0xf]
      %v257 = vld [vmem:[%s219 + $0x28] sm:$0xf]
      %v258 = vld [vmem:[%s219 + $0x2c] sm:$0xf]
      %v259 = vld [vmem:[%s219 + $0x30] sm:$0xf]
      %v260 = vld [vmem:[%s219 + $0x34] sm:$0xf]
      %v261 = vld [vmem:[%s219 + $0x38] sm:$0xf]
      %v262 = vld [vmem:[%s219 + $0x3c] sm:$0xf]
      %v263 = vld [vmem:[%s2] sm:$0x1]
      %v265 = vlaneseq
      %v266 = vshrl.u32 %v265, 7
      %v267 = vsub.s32 0, %v266
      %v268 = vrot.slane %v263, %v267
      %v286 = vunpack.c.l.b16 %v231
      %v287 = vunpack.c.l.b16 %v232
      %v288 = vunpack.c.l.b16 %v233
      %v289 = vunpack.c.l.b16 %v234
      %v290 = vunpack.c.l.b16 %v235
      %v291 = vunpack.c.l.b16 %v236
      %v292 = vunpack.c.l.b16 %v237
      %v293 = vunpack.c.l.b16 %v238
      %v294 = vunpack.c.l.b16 %v239
      %v295 = vunpack.c.l.b16 %v240
      %v296 = vunpack.c.l.b16 %v241
      %v297 = vunpack.c.l.b16 %v242
      %v298 = vunpack.c.l.b16 %v243
      %v299 = vunpack.c.l.b16 %v244
      %v300 = vunpack.c.l.b16 %v245
      %v301 = vunpack.c.l.b16 %v246
      %v302 = vpack.c.b16 %v287, %v286
      %v303 = vpack.c.b16 %v289, %v288
      %v304 = vpack.c.b16 %v291, %v290
      %v305 = vpack.c.b16 %v293, %v292
      %v306 = vpack.c.b16 %v295, %v294
      %v307 = vpack.c.b16 %v297, %v296
      %v308 = vpack.c.b16 %v299, %v298
      %v309 = vpack.c.b16 %v301, %v300
      %v334 = vunpack.c.l.b16 %v247
      %v335 = vunpack.c.l.b16 %v248
      %v336 = vunpack.c.l.b16 %v249
      %v337 = vunpack.c.l.b16 %v250
      %v338 = vunpack.c.l.b16 %v251
      %v339 = vunpack.c.l.b16 %v252
      %v340 = vunpack.c.l.b16 %v253
      %v341 = vunpack.c.l.b16 %v254
      %v342 = vunpack.c.l.b16 %v255
      %v343 = vunpack.c.l.b16 %v256
      %v344 = vunpack.c.l.b16 %v257
      %v345 = vunpack.c.l.b16 %v258
      %v346 = vunpack.c.l.b16 %v259
      %v347 = vunpack.c.l.b16 %v260
      %v348 = vunpack.c.l.b16 %v261
      %v349 = vunpack.c.l.b16 %v262
      %v350 = vpack.c.b16 %v335, %v334
      %v351 = vpack.c.b16 %v337, %v336
      %v352 = vpack.c.b16 %v339, %v338
      %v353 = vpack.c.b16 %v341, %v340
      %v354 = vpack.c.b16 %v343, %v342
      %v355 = vpack.c.b16 %v345, %v344
      %v356 = vpack.c.b16 %v347, %v346
      %v357 = vpack.c.b16 %v349, %v348
      %366 = vmatprep.subr.bf16.mxu0 0
      %367 = vmatpush1.bf16.msra.mxu0 %v350
      %368 = vmatprep.subr.bf16.mxu0 0
      %369 = vmatpush1.bf16.msra.mxu0 %v351
      %370 = vmatprep.subr.bf16.mxu0 0
      %371 = vmatpush1.bf16.msra.mxu0 %v352
      %372 = vmatprep.subr.bf16.mxu0 0
      %373 = vmatpush1.bf16.msra.mxu0 %v353
      %374 = vmatprep.subr.bf16.mxu0 0
      %375 = vmatpush1.bf16.msra.mxu0 %v354
      %376 = vmatprep.subr.bf16.mxu0 0
      %377 = vmatpush1.bf16.msra.mxu0 %v355
      %378 = vmatprep.subr.bf16.mxu0 0
      %379 = vmatpush1.bf16.msra.mxu0 %v356
      %380 = vmatprep.subr.bf16.mxu0 0
      %381 = vmatpush1.bf16.msra.mxu0 %v357
      %382 = vmatprep.subr.bf16.mxu0 0
      %383 = vmatpush1.bf16.msra.mxu0 0
      %384 = vmatprep.subr.bf16.mxu0 0
      %385 = vmatpush1.bf16.msra.mxu0 0
      %386 = vmatprep.subr.bf16.mxu0 0
      %387 = vmatpush1.bf16.msra.mxu0 0
      %388 = vmatprep.subr.bf16.mxu0 0
      %389 = vmatpush1.bf16.msra.mxu0 0
      %390 = vmatprep.subr.bf16.mxu0 0
      %391 = vmatpush1.bf16.msra.mxu0 0
      %392 = vmatprep.subr.bf16.mxu0 0
      %393 = vmatpush1.bf16.msra.mxu0 0
      %394 = vmatprep.subr.bf16.mxu0 0
      %395 = vmatpush1.bf16.msra.mxu0 0
      %396 = vmatprep.subr.bf16.mxu0 0
      %397 = vmatpush1.bf16.msra.mxu0 0
      %398 = vmatprep.mubr.bf16.mxu0 0
      %399 = vmatmul.mubr.bf16.gmra.mrb[0].mxu0 %v302
      %v400 = vpop.f32.mrb[0].mxu0
      %v401 = vadd.f32 %v268, %v400
      %v402 = vpop.f32.mrb[0].mxu0
      %v403 = vpop.f32.mrb[0].mxu0
      %v404 = vadd.f32 %v268, %v403
      %v405 = vpop.f32.mrb[0].mxu0
      %406 = vmatprep.mubr.bf16.mxu0 0
      %407 = vmatmul.mubr.bf16.gmra.mrb[0].mxu0 %v303
      %v408 = vpop.f32.mrb[0].mxu0
      %v409 = vadd.f32 %v268, %v408
      %v410 = vpop.f32.mrb[0].mxu0
      %v411 = vpop.f32.mrb[0].mxu0
      %v412 = vadd.f32 %v268, %v411
      %v413 = vpop.f32.mrb[0].mxu0
      %414 = vmatprep.mubr.bf16.mxu0 0
      %415 = vmatmul.mubr.bf16.gmra.mrb[0].mxu0 %v304
      %v416 = vpop.f32.mrb[0].mxu0
      %v417 = vadd.f32 %v268, %v416
      %v418 = vpop.f32.mrb[0].mxu0
      %v419 = vpop.f32.mrb[0].mxu0
      %v420 = vadd.f32 %v268, %v419
      %v421 = vpop.f32.mrb[0].mxu0
      %422 = vmatprep.mubr.bf16.mxu0 0
      %423 = vmatmul.mubr.bf16.gmra.mrb[0].mxu0 %v305
      %v424 = vpop.f32.mrb[0].mxu0
      %v425 = vadd.f32 %v268, %v424
      %v426 = vpop.f32.mrb[0].mxu0
      %v427 = vpop.f32.mrb[0].mxu0
      %v428 = vadd.f32 %v268, %v427
      %v429 = vpop.f32.mrb[0].mxu0
      %430 = vmatprep.mubr.bf16.mxu0 0
      %431 = vmatmul.mubr.bf16.gmra.mrb[0].mxu0 %v306
      %v432 = vpop.f32.mrb[0].mxu0
      %v433 = vadd.f32 %v268, %v432
      %v434 = vpop.f32.mrb[0].mxu0
      %v435 = vpop.f32.mrb[0].mxu0
      %v436 = vadd.f32 %v268, %v435
      %v437 = vpop.f32.mrb[0].mxu0
      %438 = vmatprep.mubr.bf16.mxu0 0
      %439 = vmatmul.mubr.bf16.gmra.mrb[0].mxu0 %v307
      %v440 = vpop.f32.mrb[0].mxu0
      %v441 = vadd.f32 %v268, %v440
      %v442 = vpop.f32.mrb[0].mxu0
      %v443 = vpop.f32.mrb[0].mxu0
      %v444 = vadd.f32 %v268, %v443
      %v445 = vpop.f32.mrb[0].mxu0
      %446 = vmatprep.mubr.bf16.mxu0 0
      %447 = vmatmul.mubr.bf16.gmra.mrb[0].mxu0 %v308
      %v448 = vpop.f32.mrb[0].mxu0
      %v449 = vadd.f32 %v268, %v448
      %v450 = vpop.f32.mrb[0].mxu0
      %v451 = vpop.f32.mrb[0].mxu0
      %v452 = vadd.f32 %v268, %v451
      %v453 = vpop.f32.mrb[0].mxu0
      %454 = vmatprep.mubr.bf16.mxu0 0
      %455 = vmatmul.mubr.bf16.gmra.mrb[0].mxu0 %v309
      %v456 = vpop.f32.mrb[0].mxu0
      %v457 = vadd.f32 %v268, %v456
      %v458 = vpop.f32.mrb[0].mxu0
      %v459 = vpop.f32.mrb[0].mxu0
      %v460 = vadd.f32 %v268, %v459
      %v461 = vpop.f32.mrb[0].mxu0
      %462 = vdwg.mxu0
      %v463 = vmax.f32 %v401, 0.0
      %v464 = vmax.f32 %v404, 0.0
      %v465 = vmax.f32 %v409, 0.0
      %v466 = vmax.f32 %v412, 0.0
      %v467 = vmax.f32 %v417, 0.0
      %v468 = vmax.f32 %v420, 0.0
      %v469 = vmax.f32 %v425, 0.0
      %v470 = vmax.f32 %v428, 0.0
      %v471 = vmax.f32 %v433, 0.0
      %v472 = vmax.f32 %v436, 0.0
      %v473 = vmax.f32 %v441, 0.0
      %v474 = vmax.f32 %v444, 0.0
      %v475 = vmax.f32 %v449, 0.0
      %v476 = vmax.f32 %v452, 0.0
      %v477 = vmax.f32 %v457, 0.0
      %v478 = vmax.f32 %v460, 0.0
      %v479 = vpack.c.bf16 %v464, %v463
      %v480 = vpack.c.bf16 %v466, %v465
      %v481 = vpack.c.bf16 %v468, %v467
      %v482 = vpack.c.bf16 %v470, %v469
      %v483 = vpack.c.bf16 %v472, %v471
      %v484 = vpack.c.bf16 %v474, %v473
      %v485 = vpack.c.bf16 %v476, %v475
      %v486 = vpack.c.bf16 %v478, %v477
      %v495 = vunpack.c.l.b16 %v479
      %v496 = vunpack.c.h.b16 %v479
      %v497 = vunpack.c.l.b16 %v480
      %v498 = vunpack.c.h.b16 %v480
      %v499 = vunpack.c.l.b16 %v481
      %v500 = vunpack.c.h.b16 %v481
      %v501 = vunpack.c.l.b16 %v482
      %v502 = vunpack.c.h.b16 %v482
      %v503 = vunpack.c.l.b16 %v483
      %v504 = vunpack.c.h.b16 %v483
      %v505 = vunpack.c.l.b16 %v484
      %v506 = vunpack.c.h.b16 %v484
      %v507 = vunpack.c.l.b16 %v485
      %v508 = vunpack.c.h.b16 %v485
      %v509 = vunpack.c.l.b16 %v486
      %v510 = vunpack.c.h.b16 %v486
      %v511 = vpack.c.b16 %v495, %v495
      %v512 = vpack.c.b16 %v496, %v496
      %v513 = vpack.c.b16 %v497, %v497
      %v514 = vpack.c.b16 %v498, %v498
      %v515 = vpack.c.b16 %v499, %v499
      %v516 = vpack.c.b16 %v500, %v500
      %v517 = vpack.c.b16 %v501, %v501
      %v518 = vpack.c.b16 %v502, %v502
      %v519 = vpack.c.b16 %v503, %v503
      %v520 = vpack.c.b16 %v504, %v504
      %v521 = vpack.c.b16 %v505, %v505
      %v522 = vpack.c.b16 %v506, %v506
      %v523 = vpack.c.b16 %v507, %v507
      %v524 = vpack.c.b16 %v508, %v508
      %v525 = vpack.c.b16 %v509, %v509
      %v526 = vpack.c.b16 %v510, %v510
      %vm543 = vcmask 125952
      %544 = vst.msk [vmem:[%s228] sm:$0xf] %vm543, %v511
      %545 = vst.msk [vmem:[%s228 + $0x4] sm:$0xf] %vm543, %v512
      %546 = vst.msk [vmem:[%s228 + $0x8] sm:$0xf] %vm543, %v513
      %547 = vst.msk [vmem:[%s228 + $0xc] sm:$0xf] %vm543, %v514
      %548 = vst.msk [vmem:[%s228 + $0x10] sm:$0xf] %vm543, %v515
      %549 = vst.msk [vmem:[%s228 + $0x14] sm:$0xf] %vm543, %v516
      %550 = vst.msk [vmem:[%s228 + $0x18] sm:$0xf] %vm543, %v517
      %551 = vst.msk [vmem:[%s228 + $0x1c] sm:$0xf] %vm543, %v518
      %552 = vst.msk [vmem:[%s228 + $0x20] sm:$0xf] %vm543, %v519
      %553 = vst.msk [vmem:[%s228 + $0x24] sm:$0xf] %vm543, %v520
      %554 = vst.msk [vmem:[%s228 + $0x28] sm:$0xf] %vm543, %v521
      %555 = vst.msk [vmem:[%s228 + $0x2c] sm:$0xf] %vm543, %v522
      %556 = vst.msk [vmem:[%s228 + $0x30] sm:$0xf] %vm543, %v523
      %557 = vst.msk [vmem:[%s228 + $0x34] sm:$0xf] %vm543, %v524
      %558 = vst.msk [vmem:[%s228 + $0x38] sm:$0xf] %vm543, %v525
      %559 = vst.msk [vmem:[%s228 + $0x3c] sm:$0xf] %vm543, %v526
      %s560 = smul.u32 16, %s19
      %p561 = scmp.lt.s32.totalorder %s18, 3
      %s562 = scalar_select %p561, %s18, 3
      %p563 = scmp.lt.s32.totalorder %s560, 15
      %s564 = scalar_select %p563, %s560, 15
      %s565 = smul.addr %s562, 16
      %s566 = sadd.s32 %s564, %s565
      %s567 = smul.addr %s566, 4
      %s568 = scalar_lea.vmem %s3, %s567
      // Predicated region
      $region33: #{wrapped_model_forward.14} parent=31 // pred_check
        %p569 = pneg %p121
      $region34: #{wrapped_model_forward.14} parent=31 // pred_check_branch
        %571 = sbr.rel (%p569) target = $region36
      $region35: #{wrapped_model_forward.14} parent=31 // pred_region
        %s572 = smul.u32 16, %s19
      $region36: #{wrapped_model_forward.14} parent=31 // pred_fallthru
        _
    $region32: #{wrapped_model_forward.14} parent=5 // pred_fallthru
      _
    %p573 = scmp.le.s32.totalorder 2, %s9
    // Predicated region
    $region37: #{wrapped_model_forward.14} parent=5 // pred_check
      %p574 = pneg %p573
    $region38: #{wrapped_model_forward.14} parent=5 // pred_check_branch
      %576 = sbr.rel (%p574) target = $region40
    $region39: #{wrapped_model_forward.14} parent=5 // pred_region
      %s577 = ssub.s32 %s9, 2
      // Predicated region
      $region41: #{wrapped_model_forward.14} parent=39 // pred_check
        %p578 = pneg %p127
      $region42: #{wrapped_model_forward.14} parent=39 // pred_check_branch
        %580 = sbr.rel (%p578) target = $region44
      $region43: #{wrapped_model_forward.14} parent=39 // pred_region
        %s581 = smul.u32 16, %s21
        %p582 = scmp.lt.s32.totalorder %s20, 3
        %s583 = scalar_select %p582, %s20, 3
        %p584 = scmp.lt.s32.totalorder %s581, 15
        %s585 = scalar_select %p584, %s581, 15
        %s586 = smul.addr %s583, 16
        %s587 = sadd.s32 %s585, %s586
        %s588 = smul.addr %s587, 4
        %s589 = scalar_lea.vmem %s3, %s588
      $region44: #{wrapped_model_forward.14} parent=39 // pred_fallthru
        _
    $region40: #{wrapped_model_forward.14} parent=5 // pred_fallthru
      _
  $region6: #{wrapped_model_forward.14} parent=0 // loop_footer
    %s13 = sadd.s32 1, %s9
  $region7: #{wrapped_model_forward.14} parent=0 // loop_footer_branch
    %8 = sbr.rel target = $region3
  $region8: #{wrapped_model_forward.14} parent=0 // loop_exit
    _

// kernel: wrapped_model_forward.15
$region0: #{wrapped_model_forward.15}
  #allocation0 [shape = 'u32[]', space=smem, size = 0x4, offset = 0x4, fixed_abs, tag = 'smem constant byte address 0x4 - core index']
  #allocation1 [shape = 'u32[144,128]{1,0:T(1,128)}', space=vmem, size = 0x12000, scoped, tag = 'internal scratch']
  %s0 = inlined_call_operand.vmem [shape: bf16[512,144], index: 0, kind: input, shape index: {}]
  %s1 = inlined_call_operand.vmem [shape: bf16[512,144], index: 1, kind: input, shape index: {}]
  %s2 = inlined_call_operand.vmem [shape: bf16[144,16], index: 2, kind: input, shape index: {}]
  %s3 = inlined_call_operand.vmem [shape: bf16[144,16], index: 3, kind: input, shape index: {}]
  %s4 = inlined_call_operand.vmem [shape: f32[1,16], index: 4, kind: input, shape index: {}]
  %s5 = inlined_call_operand.vmem [shape: bf16[512,16], index: 5, kind: output, shape index: {}]
  %s6 = sld [smem:[#allocation0]]
  $region53: #{wrapped_model_forward.15} parent=0
    _
  %s8 = ssub.s32 1, %s6
  %s9 = scalar_select 0, %s8, %s6
  loop: start=0, step=1, limit=4
  $region2: #{wrapped_model_forward.15} parent=0 // loop_pre_header
    _
  $region3: #{wrapped_model_forward.15} parent=0 // loop_header
    %s11 = sphi 0, %s15
    %p12 = scmp.ge.s32.totalorder %s11, 4
    %s21 = sphi 0, %s23
    %s24 = sphi 0, %s21
    %s25 = sphi 0, %s24
    %s41 = sphi 0, %s25
    %s47 = sphi 0, %s49
    %s50 = sphi 0, %s47
    %s51 = sphi 0, %s50
    %s67 = sphi 0, %s51
    %s71 = sphi 0, %s71
    %s73 = sphi 0, %s71
    %s74 = sphi 0, %s73
    %s88 = sphi 0, %s74
    %s92 = sphi 0, %s92
    %s94 = sphi 0, %s92
    %s95 = sphi 0, %s94
    %s109 = sphi 0, %s95
    %s113 = sphi 0, %s113
    %s115 = sphi 0, %s113
    %s116 = sphi 0, %s115
    %s130 = sphi 0, %s116
    %s136 = sphi 0, %s138
    %s139 = sphi 0, %s136
    %s140 = sphi 0, %s139
    %s156 = sphi 0, %s140
  $region4: #{wrapped_model_forward.15} parent=0 // loop_header_branch
    %14 = sbr.rel (%p12) target = $region8
  $region5: #{wrapped_model_forward.15} parent=0 // loop_body
    %s16 = ssub.s32 %s11, 1
    %s17 = ssub.s32 %s11, 2
    %s18 = sadd.s32 %s11, 1
    %s19 = ssub.s32 %s11, %s18
    %p20 = scmp.eq.s32.totalorder %s19, 0
    %s22 = sadd.s32 %s21, 1
    %s23 = scalar_select %p20, %s21, %s22
    %p26 = pneg %p20
    %p27 = scmp.eq.s32.totalorder %s11, 1
    %p28 = por %p26, %p27
    %p29 = scmp.ne.s32.totalorder %s21, %s24
    %p30 = scmp.eq.s32.totalorder %s11, 0
    %p31 = por %p29, %p30
    %p32 = scmp.ne.s32.totalorder %s21, %s24
    %p33 = scmp.eq.s32.totalorder %s16, 1
    %p34 = por %p32, %p33
    %p35 = scmp.ne.s32.totalorder %s24, %s25
    %p36 = scmp.eq.s32.totalorder %s16, 0
    %p37 = por %p35, %p36
    %p38 = scmp.ne.s32.totalorder %s24, %s25
    %p39 = scmp.eq.s32.totalorder %s17, 1
    %p40 = por %p38, %p39
    %p42 = scmp.ne.s32.totalorder %s25, %s41
    %p43 = scmp.eq.s32.totalorder %s17, 0
    %p44 = por %p42, %p43
    %s45 = ssub.s32 %s11, %s18
    %p46 = scmp.eq.s32.totalorder %s45, 0
    %s48 = sadd.s32 %s47, 1
    %s49 = scalar_select %p46, %s47, %s48
    %p52 = pneg %p46
    %p53 = scmp.eq.s32.totalorder %s11, 1
    %p54 = por %p52, %p53
    %p55 = scmp.ne.s32.totalorder %s47, %s50
    %p56 = scmp.eq.s32.totalorder %s11, 0
    %p57 = por %p55, %p56
    %p58 = scmp.ne.s32.totalorder %s47, %s50
    %p59 = scmp.eq.s32.totalorder %s16, 1
    %p60 = por %p58, %p59
    %p61 = scmp.ne.s32.totalorder %s50, %s51
    %p62 = scmp.eq.s32.totalorder %s16, 0
    %p63 = por %p61, %p62
    %p64 = scmp.ne.s32.totalorder %s50, %s51
    %p65 = scmp.eq.s32.totalorder %s17, 1
    %p66 = por %p64, %p65
    %p68 = scmp.ne.s32.totalorder %s51, %s67
    %p69 = scmp.eq.s32.totalorder %s17, 0
    %p70 = por %p68, %p69
    %s72 = sadd.s32 %s71, 1
    %p75 = scmp.eq.s32.totalorder %s11, 1
    %p76 = scmp.ne.s32.totalorder %s71, %s73
    %p77 = scmp.eq.s32.totalorder %s11, 0
    %p78 = por %p76, %p77
    %p79 = scmp.ne.s32.totalorder %s71, %s73
    %p80 = scmp.eq.s32.totalorder %s16, 1
    %p81 = por %p79, %p80
    %p82 = scmp.ne.s32.totalorder %s73, %s74
    %p83 = scmp.eq.s32.totalorder %s16, 0
    %p84 = por %p82, %p83
    %p85 = scmp.ne.s32.totalorder %s73, %s74
    %p86 = scmp.eq.s32.totalorder %s17, 1
    %p87 = por %p85, %p86
    %p89 = scmp.ne.s32.totalorder %s74, %s88
    %p90 = scmp.eq.s32.totalorder %s17, 0
    %p91 = por %p89, %p90
    %s93 = sadd.s32 %s92, 1
    %p96 = scmp.eq.s32.totalorder %s11, 1
    %p97 = scmp.ne.s32.totalorder %s92, %s94
    %p98 = scmp.eq.s32.totalorder %s11, 0
    %p99 = por %p97, %p98
    %p100 = scmp.ne.s32.totalorder %s92, %s94
    %p101 = scmp.eq.s32.totalorder %s16, 1
    %p102 = por %p100, %p101
    %p103 = scmp.ne.s32.totalorder %s94, %s95
    %p104 = scmp.eq.s32.totalorder %s16, 0
    %p105 = por %p103, %p104
    %p106 = scmp.ne.s32.totalorder %s94, %s95
    %p107 = scmp.eq.s32.totalorder %s17, 1
    %p108 = por %p106, %p107
    %p110 = scmp.ne.s32.totalorder %s95, %s109
    %p111 = scmp.eq.s32.totalorder %s17, 0
    %p112 = por %p110, %p111
    %s114 = sadd.s32 %s113, 1
    %p117 = scmp.eq.s32.totalorder %s11, 1
    %p118 = scmp.ne.s32.totalorder %s113, %s115
    %p119 = scmp.eq.s32.totalorder %s11, 0
    %p120 = por %p118, %p119
    %p121 = scmp.ne.s32.totalorder %s113, %s115
    %p122 = scmp.eq.s32.totalorder %s16, 1
    %p123 = por %p121, %p122
    %p124 = scmp.ne.s32.totalorder %s115, %s116
    %p125 = scmp.eq.s32.totalorder %s16, 0
    %p126 = por %p124, %p125
    %p127 = scmp.ne.s32.totalorder %s115, %s116
    %p128 = scmp.eq.s32.totalorder %s17, 1
    %p129 = por %p127, %p128
    %p131 = scmp.ne.s32.totalorder %s116, %s130
    %p132 = scmp.eq.s32.totalorder %s17, 0
    %p133 = por %p131, %p132
    %s134 = ssub.s32 %s11, %s18
    %p135 = scmp.eq.s32.totalorder %s134, 0
    %s137 = sadd.s32 %s136, 1
    %s138 = scalar_select %p135, %s136, %s137
    %p141 = pneg %p135
    %p142 = scmp.eq.s32.totalorder %s11, 1
    %p143 = por %p141, %p142
    %p144 = scmp.ne.s32.totalorder %s136, %s139
    %p145 = scmp.eq.s32.totalorder %s11, 0
    %p146 = por %p144, %p145
    %p147 = scmp.ne.s32.totalorder %s136, %s139
    %p148 = scmp.eq.s32.totalorder %s16, 1
    %p149 = por %p147, %p148
    %p150 = scmp.ne.s32.totalorder %s139, %s140
    %p151 = scmp.eq.s32.totalorder %s16, 0
    %p152 = por %p150, %p151
    %p153 = scmp.ne.s32.totalorder %s139, %s140
    %p154 = scmp.eq.s32.totalorder %s17, 1
    %p155 = por %p153, %p154
    %p157 = scmp.ne.s32.totalorder %s140, %s156
    %p158 = scmp.eq.s32.totalorder %s17, 0
    %p159 = por %p157, %p158
    %p160 = scmp.le.s32.totalorder 1, %s11
    %p161 = scmp.lt.s32.totalorder %s11, 3
    %p162 = pnand %p160, %p161
    %p163 = pneg %p162
    // Predicated region
    $region9: #{wrapped_model_forward.15} parent=5 // pred_check
      _
    $region10: #{wrapped_model_forward.15} parent=5 // pred_check_branch
      %165 = sbr.rel (%p162) target = $region12
    $region11: #{wrapped_model_forward.15} parent=5 // pred_region
      %s166 = ssub.s32 %s11, 1
      // Predicated region
      $region13: #{wrapped_model_forward.15} parent=11 // pred_check
        %p167 = pneg %p84
      $region14: #{wrapped_model_forward.15} parent=11 // pred_check_branch
        %169 = sbr.rel (%p167) target = $region16
      $region15: #{wrapped_model_forward.15} parent=11 // pred_region
        _
      $region16: #{wrapped_model_forward.15} parent=11 // pred_fallthru
        _
      // Predicated region
      $region17: #{wrapped_model_forward.15} parent=11 // pred_check
        %p170 = pneg %p105
      $region18: #{wrapped_model_forward.15} parent=11 // pred_check_branch
        %172 = sbr.rel (%p170) target = $region20
      $region19: #{wrapped_model_forward.15} parent=11 // pred_region
        _
      $region20: #{wrapped_model_forward.15} parent=11 // pred_fallthru
        _
      // Predicated region
      $region21: #{wrapped_model_forward.15} parent=11 // pred_check
        %p173 = pneg %p126
      $region22: #{wrapped_model_forward.15} parent=11 // pred_check_branch
        %175 = sbr.rel (%p173) target = $region24
      $region23: #{wrapped_model_forward.15} parent=11 // pred_region
        _
      $region24: #{wrapped_model_forward.15} parent=11 // pred_fallthru
        _
    $region12: #{wrapped_model_forward.15} parent=5 // pred_fallthru
      _
    %p176 = scmp.lt.s32.totalorder %s11, 2
    // Predicated region
    $region25: #{wrapped_model_forward.15} parent=5 // pred_check
      %p177 = pneg %p176
    $region26: #{wrapped_model_forward.15} parent=5 // pred_check_branch
      %179 = sbr.rel (%p177) target = $region28
    $region27: #{wrapped_model_forward.15} parent=5 // pred_region
      // Predicated region
      $region29: #{wrapped_model_forward.15} parent=27 // pred_check
        %p180 = pneg %p31
      $region30: #{wrapped_model_forward.15} parent=27 // pred_check_branch
        %182 = sbr.rel (%p180) target = $region32
      $region31: #{wrapped_model_forward.15} parent=27 // pred_region
        %s183 = smul.u32 32, %s11
        %p184 = scmp.lt.s32.totalorder %s183, 63
        %s185 = scalar_select %p184, %s183, 63
        %s186 = smul.addr %s185, 2
        %s187 = smul.addr %s186, 4
        %s188 = scalar_lea.vmem %s0, %s187
        %s189 = smul.u32 32, %s11
      $region32: #{wrapped_model_forward.15} parent=27 // pred_fallthru
        _
      // Predicated region
      $region33: #{wrapped_model_forward.15} parent=27 // pred_check
        %p190 = pneg %p57
      $region34: #{wrapped_model_forward.15} parent=27 // pred_check_branch
        %192 = sbr.rel (%p190) target = $region36
      $region35: #{wrapped_model_forward.15} parent=27 // pred_region
        %s193 = smul.u32 32, %s11
        %p194 = scmp.lt.s32.totalorder %s193, 63
        %s195 = scalar_select %p194, %s193, 63
        %s196 = smul.addr %s195, 2
        %s197 = smul.addr %s196, 4
        %s198 = scalar_lea.vmem %s1, %s197
        %s199 = smul.u32 32, %s11
      $region36: #{wrapped_model_forward.15} parent=27 // pred_fallthru
        _
    $region28: #{wrapped_model_forward.15} parent=5 // pred_fallthru
      _
    %p200 = scmp.le.s32.totalorder 1, %s11
    %p201 = scmp.lt.s32.totalorder %s11, 3
    %p202 = pnand %p200, %p201
    %p203 = pneg %p202
    // Predicated region
    $region37: #{wrapped_model_forward.15} parent=5 // pred_check
      _
    $region38: #{wrapped_model_forward.15} parent=5 // pred_check_branch
      %205 = sbr.rel (%p202) target = $region40
    $region39: #{wrapped_model_forward.15} parent=5 // pred_region
      %s206 = ssub.s32 %s11, 1
      %s207 = smul.u32 32, %s16
      %p208 = scmp.lt.s32.totalorder %s207, 63
      %s209 = scalar_select %p208, %s207, 63
      %s210 = smul.addr %s209, 2
      %s211 = smul.addr %s210, 4
      %s212 = scalar_lea.vmem %s0, %s211
      %p213 = pneg %p37
      %p214 = pneg %p34
      %s215 = smul.u32 32, %s16
      %p216 = scmp.lt.s32.totalorder %s215, 63
      %s217 = scalar_select %p216, %s215, 63
      %s218 = smul.addr %s217, 2
      %s219 = smul.addr %s218, 4
      %s220 = scalar_lea.vmem %s1, %s219
      %p221 = pneg %p63
      %p222 = pneg %p60
      %p223 = pneg %p84
      %p224 = pneg %p81
      %p225 = pneg %p105
      %p226 = pneg %p102
      %p227 = pneg %p126
      %p228 = pneg %p123
      %p229 = pneg %p152
      %p230 = pneg %p149
      %s231 = smul.u32 32, %s16
      %p232 = scmp.lt.s32.totalorder %s231, 63
      %s233 = scalar_select %p232, %s231, 63
      %s234 = smul.addr %s233, 4
      %s235 = scalar_lea.vmem %s5, %s234
      %s236 = smul.u32 32, %s16
      %p237 = scmp.lt.s32.totalorder %s236, 63
      %s238 = scalar_select %p237, %s236, 63
      %s239 = smul.addr %s238, 2
      %s240 = smul.addr %s239, 4
      %s241 = scalar_lea.vmem %s0, %s240
      %s242 = smul.u32 32, %s16
      %s243 = smul.u32 32, %s16
      %p244 = scmp.lt.s32.totalorder %s243, 63
      %s245 = scalar_select %p244, %s243, 63
      %s246 = smul.addr %s245, 2
      %s247 = smul.addr %s246, 4
      %s248 = scalar_lea.vmem %s1, %s247
      %s249 = smul.u32 32, %s16
      %s250 = smul.u32 32, %s16
      %p251 = scmp.lt.s32.totalorder %s250, 63
      %s252 = scalar_select %p251, %s250, 63
      %s253 = smul.addr %s252, 4
      %s254 = scalar_lea.vmem %s5, %s253
      %s255 = smul.u32 32, %s16
      %v257 = vld [vmem:[%s241] sm:$0xff]
      %v258 = vld [vmem:[%s241 + $0x8] sm:$0xff]
      %v259 = vld [vmem:[%s241 + $0x10] sm:$0xff]
      %v260 = vld [vmem:[%s241 + $0x18] sm:$0xff]
      %v261 = vld [vmem:[%s241 + $0x20] sm:$0xff]
      %v262 = vld [vmem:[%s241 + $0x28] sm:$0xff]
      %v263 = vld [vmem:[%s241 + $0x30] sm:$0xff]
      %v264 = vld [vmem:[%s241 + $0x38] sm:$0xff]
      %v265 = vld [vmem:[%s241 + $0x40] sm:$0xff]
      %v266 = vld [vmem:[%s241 + $0x48] sm:$0xff]
      %v267 = vld [vmem:[%s241 + $0x50] sm:$0xff]
      %v268 = vld [vmem:[%s241 + $0x58] sm:$0xff]
      %v269 = vld [vmem:[%s241 + $0x60] sm:$0xff]
      %v270 = vld [vmem:[%s241 + $0x68] sm:$0xff]
      %v271 = vld [vmem:[%s241 + $0x70] sm:$0xff]
      %v272 = vld [vmem:[%s241 + $0x78] sm:$0xff]
      %v273 = vld [vmem:[%s241 + $0x80] sm:$0xff]
      %v274 = vld [vmem:[%s241 + $0x88] sm:$0xff]
      %v275 = vld [vmem:[%s241 + $0x90] sm:$0xff]
      %v276 = vld [vmem:[%s241 + $0x98] sm:$0xff]
      %v277 = vld [vmem:[%s241 + $0xa0] sm:$0xff]
      %v278 = vld [vmem:[%s241 + $0xa8] sm:$0xff]
      %v279 = vld [vmem:[%s241 + $0xb0] sm:$0xff]
      %v280 = vld [vmem:[%s241 + $0xb8] sm:$0xff]
      %v281 = vld [vmem:[%s241 + $0xc0] sm:$0xff]
      %v282 = vld [vmem:[%s241 + $0xc8] sm:$0xff]
      %v283 = vld [vmem:[%s241 + $0xd0] sm:$0xff]
      %v284 = vld [vmem:[%s241 + $0xd8] sm:$0xff]
      %v285 = vld [vmem:[%s241 + $0xe0] sm:$0xff]
      %v286 = vld [vmem:[%s241 + $0xe8] sm:$0xff]
      %v287 = vld [vmem:[%s241 + $0xf0] sm:$0xff]
      %v288 = vld [vmem:[%s241 + $0xf8] sm:$0xff]
      %v289 = vld [vmem:[%s2] sm:$0xf]
      %v290 = vld [vmem:[%s2 + $0x4] sm:$0xf]
      %v291 = vld [vmem:[%s2 + $0x8] sm:$0xf]
      %v292 = vld [vmem:[%s2 + $0xc] sm:$0xf]
      %v293 = vld [vmem:[%s2 + $0x10] sm:$0xf]
      %v294 = vld [vmem:[%s2 + $0x14] sm:$0xf]
      %v295 = vld [vmem:[%s2 + $0x18] sm:$0xf]
      %v296 = vld [vmem:[%s2 + $0x1c] sm:$0xf]
      %v297 = vld [vmem:[%s2 + $0x20] sm:$0xf]
      %v298 = vld [vmem:[%s2 + $0x24] sm:$0xf]
      %v299 = vld [vmem:[%s2 + $0x28] sm:$0xf]
      %v300 = vld [vmem:[%s2 + $0x2c] sm:$0xf]
      %v301 = vld [vmem:[%s2 + $0x30] sm:$0xf]
      %v302 = vld [vmem:[%s2 + $0x34] sm:$0xf]
      %v303 = vld [vmem:[%s2 + $0x38] sm:$0xf]
      %v304 = vld [vmem:[%s2 + $0x3c] sm:$0xf]
      %v305 = vld [vmem:[%s2 + $0x40] sm:$0xf]
      %v306 = vld [vmem:[%s2 + $0x44] sm:$0xf]
      %v307 = vld [vmem:[%s248] sm:$0xff]
      %v308 = vld [vmem:[%s248 + $0x8] sm:$0xff]
      %v309 = vld [vmem:[%s248 + $0x10] sm:$0xff]
      %v310 = vld [vmem:[%s248 + $0x18] sm:$0xff]
      %v311 = vld [vmem:[%s248 + $0x20] sm:$0xff]
      %v312 = vld [vmem:[%s248 + $0x28] sm:$0xff]
      %v313 = vld [vmem:[%s248 + $0x30] sm:$0xff]
      %v314 = vld [vmem:[%s248 + $0x38] sm:$0xff]
      %v315 = vld [vmem:[%s248 + $0x40] sm:$0xff]
      %v316 = vld [vmem:[%s248 + $0x48] sm:$0xff]
      %v317 = vld [vmem:[%s248 + $0x50] sm:$0xff]
      %v318 = vld [vmem:[%s248 + $0x58] sm:$0xff]
      %v319 = vld [vmem:[%s248 + $0x60] sm:$0xff]
      %v320 = vld [vmem:[%s248 + $0x68] sm:$0xff]
      %v321 = vld [vmem:[%s248 + $0x70] sm:$0xff]
      %v322 = vld [vmem:[%s248 + $0x78] sm:$0xff]
      %v323 = vld [vmem:[%s248 + $0x80] sm:$0xff]
      %v324 = vld [vmem:[%s248 + $0x88] sm:$0xff]
      %v325 = vld [vmem:[%s248 + $0x90] sm:$0xff]
      %v326 = vld [vmem:[%s248 + $0x98] sm:$0xff]
      %v327 = vld [vmem:[%s248 + $0xa0] sm:$0xff]
      %v328 = vld [vmem:[%s248 + $0xa8] sm:$0xff]
      %v329 = vld [vmem:[%s248 + $0xb0] sm:$0xff]
      %v330 = vld [vmem:[%s248 + $0xb8] sm:$0xff]
      %v331 = vld [vmem:[%s248 + $0xc0] sm:$0xff]
      %v332 = vld [vmem:[%s248 + $0xc8] sm:$0xff]
      %v333 = vld [vmem:[%s248 + $0xd0] sm:$0xff]
      %v334 = vld [vmem:[%s248 + $0xd8] sm:$0xff]
      %v335 = vld [vmem:[%s248 + $0xe0] sm:$0xff]
      %v336 = vld [vmem:[%s248 + $0xe8] sm:$0xff]
      %v337 = vld [vmem:[%s248 + $0xf0] sm:$0xff]
      %v338 = vld [vmem:[%s248 + $0xf8] sm:$0xff]
      %v339 = vld [vmem:[%s3] sm:$0xf]
      %v340 = vld [vmem:[%s3 + $0x4] sm:$0xf]
      %v341 = vld [vmem:[%s3 + $0x8] sm:$0xf]
      %v342 = vld [vmem:[%s3 + $0xc] sm:$0xf]
      %v343 = vld [vmem:[%s3 + $0x10] sm:$0xf]
      %v344 = vld [vmem:[%s3 + $0x14] sm:$0xf]
      %v345 = vld [vmem:[%s3 + $0x18] sm:$0xf]
      %v346 = vld [vmem:[%s3 + $0x1c] sm:$0xf]
      %v347 = vld [vmem:[%s3 + $0x20] sm:$0xf]
      %v348 = vld [vmem:[%s3 + $0x24] sm:$0xf]
      %v349 = vld [vmem:[%s3 + $0x28] sm:$0xf]
      %v350 = vld [vmem:[%s3 + $0x2c] sm:$0xf]
      %v351 = vld [vmem:[%s3 + $0x30] sm:$0xf]
      %v352 = vld [vmem:[%s3 + $0x34] sm:$0xf]
      %v353 = vld [vmem:[%s3 + $0x38] sm:$0xf]
      %v354 = vld [vmem:[%s3 + $0x3c] sm:$0xf]
      %v355 = vld [vmem:[%s3 + $0x40] sm:$0xf]
      %v356 = vld [vmem:[%s3 + $0x44] sm:$0xf]
      %v389 = vunpack.c.l.b16 %v307
      %v390 = vunpack.c.h.b16 %v307
      %v391 = vunpack.c.l.b16 %v308
      %v392 = vunpack.c.h.b16 %v308
      %v393 = vunpack.c.l.b16 %v309
      %v394 = vunpack.c.h.b16 %v309
      %v395 = vunpack.c.l.b16 %v310
      %v396 = vunpack.c.h.b16 %v310
      %v397 = vunpack.c.l.b16 %v311
      %v398 = vunpack.c.h.b16 %v311
      %v399 = vunpack.c.l.b16 %v312
      %v400 = vunpack.c.h.b16 %v312
      %v401 = vunpack.c.l.b16 %v313
      %v402 = vunpack.c.h.b16 %v313
      %v403 = vunpack.c.l.b16 %v314
      %v404 = vunpack.c.h.b16 %v314
      %v405 = vunpack.c.l.b16 %v315
      %v406 = vunpack.c.h.b16 %v315
      %v407 = vunpack.c.l.b16 %v316
      %v408 = vunpack.c.h.b16 %v316
      %v409 = vunpack.c.l.b16 %v317
      %v410 = vunpack.c.h.b16 %v317
      %v411 = vunpack.c.l.b16 %v318
      %v412 = vunpack.c.h.b16 %v318
      %v413 = vunpack.c.l.b16 %v319
      %v414 = vunpack.c.h.b16 %v319
      %v415 = vunpack.c.l.b16 %v320
      %v416 = vunpack.c.h.b16 %v320
      %v417 = vunpack.c.l.b16 %v321
      %v418 = vunpack.c.h.b16 %v321
      %v419 = vunpack.c.l.b16 %v322
      %v420 = vunpack.c.h.b16 %v322
      %v421 = vunpack.c.l.b16 %v323
      %v422 = vunpack.c.h.b16 %v323
      %v423 = vunpack.c.l.b16 %v324
      %v424 = vunpack.c.h.b16 %v324
      %v425 = vunpack.c.l.b16 %v325
      %v426 = vunpack.c.h.b16 %v325
      %v427 = vunpack.c.l.b16 %v326
      %v428 = vunpack.c.h.b16 %v326
      %v429 = vunpack.c.l.b16 %v327
      %v430 = vunpack.c.h.b16 %v327
      %v431 = vunpack.c.l.b16 %v328
      %v432 = vunpack.c.h.b16 %v328
      %v433 = vunpack.c.l.b16 %v329
      %v434 = vunpack.c.h.b16 %v329
      %v435 = vunpack.c.l.b16 %v330
      %v436 = vunpack.c.h.b16 %v330
      %v437 = vunpack.c.l.b16 %v331
      %v438 = vunpack.c.h.b16 %v331
      %v439 = vunpack.c.l.b16 %v332
      %v440 = vunpack.c.h.b16 %v332
      %v441 = vunpack.c.l.b16 %v333
      %v442 = vunpack.c.h.b16 %v333
      %v443 = vunpack.c.l.b16 %v334
      %v444 = vunpack.c.h.b16 %v334
      %v445 = vunpack.c.l.b16 %v335
      %v446 = vunpack.c.h.b16 %v335
      %v447 = vunpack.c.l.b16 %v336
      %v448 = vunpack.c.h.b16 %v336
      %v449 = vunpack.c.l.b16 %v337
      %v450 = vunpack.c.h.b16 %v337
      %v451 = vunpack.c.l.b16 %v338
      %v452 = vunpack.c.h.b16 %v338
      %v453 = vpack.c.b16 %v391, %v389
      %v454 = vpack.c.b16 %v392, %v390
      %v455 = vpack.c.b16 %v395, %v393
      %v456 = vpack.c.b16 %v396, %v394
      %v457 = vpack.c.b16 %v399, %v397
      %v458 = vpack.c.b16 %v400, %v398
      %v459 = vpack.c.b16 %v403, %v401
      %v460 = vpack.c.b16 %v404, %v402
      %v461 = vpack.c.b16 %v407, %v405
      %v462 = vpack.c.b16 %v408, %v406
      %v463 = vpack.c.b16 %v411, %v409
      %v464 = vpack.c.b16 %v412, %v410
      %v465 = vpack.c.b16 %v415, %v413
      %v466 = vpack.c.b16 %v416, %v414
      %v467 = vpack.c.b16 %v419, %v417
      %v468 = vpack.c.b16 %v420, %v418
      %v469 = vpack.c.b16 %v423, %v421
      %v470 = vpack.c.b16 %v424, %v422
      %v471 = vpack.c.b16 %v427, %v425
      %v472 = vpack.c.b16 %v428, %v426
      %v473 = vpack.c.b16 %v431, %v429
      %v474 = vpack.c.b16 %v432, %v430
      %v475 = vpack.c.b16 %v435, %v433
      %v476 = vpack.c.b16 %v436, %v434
      %v477 = vpack.c.b16 %v439, %v437
      %v478 = vpack.c.b16 %v440, %v438
      %v479 = vpack.c.b16 %v443, %v441
      %v480 = vpack.c.b16 %v444, %v442
      %v481 = vpack.c.b16 %v447, %v445
      %v482 = vpack.c.b16 %v448, %v446
      %v483 = vpack.c.b16 %v451, %v449
      %v484 = vpack.c.b16 %v452, %v450
      %v519 = vunpack.c.l.b16 %v339
      %v520 = vunpack.c.l.b16 %v340
      %v521 = vunpack.c.l.b16 %v341
      %v522 = vunpack.c.l.b16 %v342
      %v523 = vunpack.c.l.b16 %v343
      %v524 = vunpack.c.l.b16 %v344
      %v525 = vunpack.c.l.b16 %v345
      %v526 = vunpack.c.l.b16 %v346
      %v527 = vunpack.c.l.b16 %v347
      %v528 = vunpack.c.l.b16 %v348
      %v529 = vunpack.c.l.b16 %v349
      %v530 = vunpack.c.l.b16 %v350
      %v531 = vunpack.c.l.b16 %v351
      %v532 = vunpack.c.l.b16 %v352
      %v533 = vunpack.c.l.b16 %v353
      %v534 = vunpack.c.l.b16 %v354
      %v535 = vunpack.c.l.b16 %v355
      %v536 = vunpack.c.l.b16 %v356
      %v537 = vpack.c.b16 %v520, %v519
      %v538 = vpack.c.b16 %v522, %v521
      %v539 = vpack.c.b16 %v524, %v523
      %v540 = vpack.c.b16 %v526, %v525
      %v541 = vpack.c.b16 %v528, %v527
      %v542 = vpack.c.b16 %v530, %v529
      %v543 = vpack.c.b16 %v532, %v531
      %v544 = vpack.c.b16 %v534, %v533
      %v545 = vpack.c.b16 %v536, %v535
      %vm555 = vcmask 130048
      %v557 = vsel %vm555, %v454, 0
      %v560 = vsel %vm555, %v456, 0
      %v563 = vsel %vm555, %v458, 0
      %v566 = vsel %vm555, %v460, 0
      %v569 = vsel %vm555, %v462, 0
      %v572 = vsel %vm555, %v464, 0
      %v575 = vsel %vm555, %v466, 0
      %v578 = vsel %vm555, %v468, 0
      %v581 = vsel %vm555, %v470, 0
      %v584 = vsel %vm555, %v472, 0
      %v587 = vsel %vm555, %v474, 0
      %v590 = vsel %vm555, %v476, 0
      %v593 = vsel %vm555, %v478, 0
      %v596 = vsel %vm555, %v480, 0
      %v599 = vsel %vm555, %v482, 0
      %v602 = vsel %vm555, %v484, 0
      %604 = vmatprep.subr.bf16.mxu0 0
      %605 = vmatpush1.bf16.msra.mxu0 %v537
      %606 = vmatprep.subr.bf16.mxu0 0
      %607 = vmatpush1.bf16.msra.mxu0 %v538
      %608 = vmatprep.subr.bf16.mxu0 0
      %609 = vmatpush1.bf16.msra.mxu0 %v539
      %610 = vmatprep.subr.bf16.mxu0 0
      %611 = vmatpush1.bf16.msra.mxu0 %v540
      %612 = vmatprep.subr.bf16.mxu0 0
      %613 = vmatpush1.bf16.msra.mxu0 %v541
      %614 = vmatprep.subr.bf16.mxu0 0
      %615 = vmatpush1.bf16.msra.mxu0 %v542
      %616 = vmatprep.subr.bf16.mxu0 0
      %617 = vmatpush1.bf16.msra.mxu0 %v543
      %618 = vmatprep.subr.bf16.mxu0 0
      %619 = vmatpush1.bf16.msra.mxu0 %v544
      %620 = vmatprep.subr.bf16.mxu0 0
      %621 = vmatpush1.bf16.msra.mxu0 %v545
      %622 = vmatprep.subr.bf16.mxu0 0
      %623 = vmatpush1.bf16.msra.mxu0 0
      %624 = vmatprep.subr.bf16.mxu0 0
      %625 = vmatpush1.bf16.msra.mxu0 0
      %626 = vmatprep.subr.bf16.mxu0 0
      %627 = vmatpush1.bf16.msra.mxu0 0
      %628 = vmatprep.subr.bf16.mxu0 0
      %629 = vmatpush1.bf16.msra.mxu0 0
      %630 = vmatprep.subr.bf16.mxu0 0
      %631 = vmatpush1.bf16.msra.mxu0 0
      %632 = vmatprep.subr.bf16.mxu0 0
      %633 = vmatpush1.bf16.msra.mxu0 0
      %634 = vmatprep.subr.bf16.mxu0 0
      %635 = vmatpush1.bf16.msra.mxu0 0
      %636 = vmatprep.mubr.bf16.mxu0 %v557
      %637 = vmatmul.mubr.bf16.gmra.mrb[0].mxu0 %v453
      %v638 = vpop.f32.mrb[0].mxu0
      %v639 = vadd.f32 0.0, %v638
      %v640 = vpop.f32.mrb[0].mxu0
      %v641 = vpop.f32.mrb[0].mxu0
      %v642 = vadd.f32 0.0, %v641
      %v643 = vpop.f32.mrb[0].mxu0
      %644 = vmatprep.mubr.bf16.mxu0 %v560
      %645 = vmatmul.mubr.bf16.gmra.mrb[0].mxu0 %v455
      %v646 = vpop.f32.mrb[0].mxu0
      %v647 = vadd.f32 0.0, %v646
      %v648 = vpop.f32.mrb[0].mxu0
      %v649 = vpop.f32.mrb[0].mxu0
      %v650 = vadd.f32 0.0, %v649
      %v651 = vpop.f32.mrb[0].mxu0
      %652 = vmatprep.mubr.bf16.mxu0 %v563
      %653 = vmatmul.mubr.bf16.gmra.mrb[0].mxu0 %v457
      %v654 = vpop.f32.mrb[0].mxu0
      %v655 = vadd.f32 0.0, %v654
      %v656 = vpop.f32.mrb[0].mxu0
      %v657 = vpop.f32.mrb[0].mxu0
      %v658 = vadd.f32 0.0, %v657
      %v659 = vpop.f32.mrb[0].mxu0
      %660 = vmatprep.mubr.bf16.mxu0 %v566
      %661 = vmatmul.mubr.bf16.gmra.mrb[0].mxu0 %v459
      %v662 = vpop.f32.mrb[0].mxu0
      %v663 = vadd.f32 0.0, %v662
      %v664 = vpop.f32.mrb[0].mxu0
      %v665 = vpop.f32.mrb[0].mxu0
      %v666 = vadd.f32 0.0, %v665
      %v667 = vpop.f32.mrb[0].mxu0
      %668 = vmatprep.mubr.bf16.mxu0 %v569
      %669 = vmatmul.mubr.bf16.gmra.mrb[0].mxu0 %v461
      %v670 = vpop.f32.mrb[0].mxu0
      %v671 = vadd.f32 0.0, %v670
      %v672 = vpop.f32.mrb[0].mxu0
      %v673 = vpop.f32.mrb[0].mxu0
      %v674 = vadd.f32 0.0, %v673
      %v675 = vpop.f32.mrb[0].mxu0
      %676 = vmatprep.mubr.bf16.mxu0 %v572
      %677 = vmatmul.mubr.bf16.gmra.mrb[0].mxu0 %v463
      %v678 = vpop.f32.mrb[0].mxu0
      %v679 = vadd.f32 0.0, %v678
      %v680 = vpop.f32.mrb[0].mxu0
      %v681 = vpop.f32.mrb[0].mxu0
      %v682 = vadd.f32 0.0, %v681
      %v683 = vpop.f32.mrb[0].mxu0
      %684 = vmatprep.mubr.bf16.mxu0 %v575
      %685 = vmatmul.mubr.bf16.gmra.mrb[0].mxu0 %v465
      %v686 = vpop.f32.mrb[0].mxu0
      %v687 = vadd.f32 0.0, %v686
      %v688 = vpop.f32.mrb[0].mxu0
      %v689 = vpop.f32.mrb[0].mxu0
      %v690 = vadd.f32 0.0, %v689
      %v691 = vpop.f32.mrb[0].mxu0
      %692 = vmatprep.mubr.bf16.mxu0 %v578
      %693 = vmatmul.mubr.bf16.gmra.mrb[0].mxu0 %v467
      %v694 = vpop.f32.mrb[0].mxu0
      %v695 = vadd.f32 0.0, %v694
      %v696 = vpop.f32.mrb[0].mxu0
      %v697 = vpop.f32.mrb[0].mxu0
      %v698 = vadd.f32 0.0, %v697
      %v699 = vpop.f32.mrb[0].mxu0
      %700 = vmatprep.mubr.bf16.mxu0 %v581
      %701 = vmatmul.mubr.bf16.gmra.mrb[0].mxu0 %v469
      %v702 = vpop.f32.mrb[0].mxu0
      %v703 = vadd.f32 0.0, %v702
      %v704 = vpop.f32.mrb[0].mxu0
      %v705 = vpop.f32.mrb[0].mxu0
      %v706 = vadd.f32 0.0, %v705
      %v707 = vpop.f32.mrb[0].mxu0
      %708 = vmatprep.mubr.bf16.mxu0 %v584
      %709 = vmatmul.mubr.bf16.gmra.mrb[0].mxu0 %v471
      %v710 = vpop.f32.mrb[0].mxu0
      %v711 = vadd.f32 0.0, %v710
      %v712 = vpop.f32.mrb[0].mxu0
      %v713 = vpop.f32.mrb[0].mxu0
      %v714 = vadd.f32 0.0, %v713
      %v715 = vpop.f32.mrb[0].mxu0
      %716 = vmatprep.mubr.bf16.mxu0 %v587
      %717 = vmatmul.mubr.bf16.gmra.mrb[0].mxu0 %v473
      %v718 = vpop.f32.mrb[0].mxu0
      %v719 = vadd.f32 0.0, %v718
      %v720 = vpop.f32.mrb[0].mxu0
      %v721 = vpop.f32.mrb[0].mxu0
      %v722 = vadd.f32 0.0, %v721
      %v723 = vpop.f32.mrb[0].mxu0
      %724 = vmatprep.mubr.bf16.mxu0 %v590
      %725 = vmatmul.mubr.bf16.gmra.mrb[0].mxu0 %v475
      %v726 = vpop.f32.mrb[0].mxu0
      %v727 = vadd.f32 0.0, %v726
      %v728 = vpop.f32.mrb[0].mxu0
      %v729 = vpop.f32.mrb[0].mxu0
      %v730 = vadd.f32 0.0, %v729
      %v731 = vpop.f32.mrb[0].mxu0
      %732 = vmatprep.mubr.bf16.mxu0 %v593
      %733 = vmatmul.mubr.bf16.gmra.mrb[0].mxu0 %v477
      %v734 = vpop.f32.mrb[0].mxu0
      %v735 = vadd.f32 0.0, %v734
      %v736 = vpop.f32.mrb[0].mxu0
      %v737 = vpop.f32.mrb[0].mxu0
      %v738 = vadd.f32 0.0, %v737
      %v739 = vpop.f32.mrb[0].mxu0
      %740 = vmatprep.mubr.bf16.mxu0 %v596
      %741 = vmatmul.mubr.bf16.gmra.mrb[0].mxu0 %v479
      %v742 = vpop.f32.mrb[0].mxu0
      %v743 = vadd.f32 0.0, %v742
      %v744 = vpop.f32.mrb[0].mxu0
      %v745 = vpop.f32.mrb[0].mxu0
      %v746 = vadd.f32 0.0, %v745
      %v747 = vpop.f32.mrb[0].mxu0
      %748 = vmatprep.mubr.bf16.mxu0 %v599
      %749 = vmatmul.mubr.bf16.gmra.mrb[0].mxu0 %v481
      %v750 = vpop.f32.mrb[0].mxu0
      %v751 = vadd.f32 0.0, %v750
      %v752 = vpop.f32.mrb[0].mxu0
      %v753 = vpop.f32.mrb[0].mxu0
      %v754 = vadd.f32 0.0, %v753
      %v755 = vpop.f32.mrb[0].mxu0
      %756 = vmatprep.mubr.bf16.mxu0 %v602
      %757 = vmatmul.mubr.bf16.gmra.mrb[0].mxu0 %v483
      %v758 = vpop.f32.mrb[0].mxu0
      %v759 = vadd.f32 0.0, %v758
      %v760 = vpop.f32.mrb[0].mxu0
      %v761 = vpop.f32.mrb[0].mxu0
      %v762 = vadd.f32 0.0, %v761
      %v763 = vpop.f32.mrb[0].mxu0
      %764 = vdwg.mxu0
      %v797 = vunpack.c.l.b16 %v257
      %v798 = vunpack.c.h.b16 %v257
      %v799 = vunpack.c.l.b16 %v258
      %v800 = vunpack.c.h.b16 %v258
      %v801 = vunpack.c.l.b16 %v259
      %v802 = vunpack.c.h.b16 %v259
      %v803 = vunpack.c.l.b16 %v260
      %v804 = vunpack.c.h.b16 %v260
      %v805 = vunpack.c.l.b16 %v261
      %v806 = vunpack.c.h.b16 %v261
      %v807 = vunpack.c.l.b16 %v262
      %v808 = vunpack.c.h.b16 %v262
      %v809 = vunpack.c.l.b16 %v263
      %v810 = vunpack.c.h.b16 %v263
      %v811 = vunpack.c.l.b16 %v264
      %v812 = vunpack.c.h.b16 %v264
      %v813 = vunpack.c.l.b16 %v265
      %v814 = vunpack.c.h.b16 %v265
      %v815 = vunpack.c.l.b16 %v266
      %v816 = vunpack.c.h.b16 %v266
      %v817 = vunpack.c.l.b16 %v267
      %v818 = vunpack.c.h.b16 %v267
      %v819 = vunpack.c.l.b16 %v268
      %v820 = vunpack.c.h.b16 %v268
      %v821 = vunpack.c.l.b16 %v269
      %v822 = vunpack.c.h.b16 %v269
      %v823 = vunpack.c.l.b16 %v270
      %v824 = vunpack.c.h.b16 %v270
      %v825 = vunpack.c.l.b16 %v271
      %v826 = vunpack.c.h.b16 %v271
      %v827 = vunpack.c.l.b16 %v272
      %v828 = vunpack.c.h.b16 %v272
      %v829 = vunpack.c.l.b16 %v273
      %v830 = vunpack.c.h.b16 %v273
      %v831 = vunpack.c.l.b16 %v274
      %v832 = vunpack.c.h.b16 %v274
      %v833 = vunpack.c.l.b16 %v275
      %v834 = vunpack.c.h.b16 %v275
      %v835 = vunpack.c.l.b16 %v276
      %v836 = vunpack.c.h.b16 %v276
      %v837 = vunpack.c.l.b16 %v277
      %v838 = vunpack.c.h.b16 %v277
      %v839 = vunpack.c.l.b16 %v278
      %v840 = vunpack.c.h.b16 %v278
      %v841 = vunpack.c.l.b16 %v279
      %v842 = vunpack.c.h.b16 %v279
      %v843 = vunpack.c.l.b16 %v280
      %v844 = vunpack.c.h.b16 %v280
      %v845 = vunpack.c.l.b16 %v281
      %v846 = vunpack.c.h.b16 %v281
      %v847 = vunpack.c.l.b16 %v282
      %v848 = vunpack.c.h.b16 %v282
      %v849 = vunpack.c.l.b16 %v283
      %v850 = vunpack.c.h.b16 %v283
      %v851 = vunpack.c.l.b16 %v284
      %v852 = vunpack.c.h.b16 %v284
      %v853 = vunpack.c.l.b16 %v285
      %v854 = vunpack.c.h.b16 %v285
      %v855 = vunpack.c.l.b16 %v286
      %v856 = vunpack.c.h.b16 %v286
      %v857 = vunpack.c.l.b16 %v287
      %v858 = vunpack.c.h.b16 %v287
      %v859 = vunpack.c.l.b16 %v288
      %v860 = vunpack.c.h.b16 %v288
      %v861 = vpack.c.b16 %v799, %v797
      %v862 = vpack.c.b16 %v800, %v798
      %v863 = vpack.c.b16 %v803, %v801
      %v864 = vpack.c.b16 %v804, %v802
      %v865 = vpack.c.b16 %v807, %v805
      %v866 = vpack.c.b16 %v808, %v806
      %v867 = vpack.c.b16 %v811, %v809
      %v868 = vpack.c.b16 %v812, %v810
      %v869 = vpack.c.b16 %v815, %v813
      %v870 = vpack.c.b16 %v816, %v814
      %v871 = vpack.c.b16 %v819, %v817
      %v872 = vpack.c.b16 %v820, %v818
      %v873 = vpack.c.b16 %v823, %v821
      %v874 = vpack.c.b16 %v824, %v822
      %v875 = vpack.c.b16 %v827, %v825
      %v876 = vpack.c.b16 %v828, %v826
      %v877 = vpack.c.b16 %v831, %v829
      %v878 = vpack.c.b16 %v832, %v830
      %v879 = vpack.c.b16 %v835, %v833
      %v880 = vpack.c.b16 %v836, %v834
      %v881 = vpack.c.b16 %v839, %v837
      %v882 = vpack.c.b16 %v840, %v838
      %v883 = vpack.c.b16 %v843, %v841
      %v884 = vpack.c.b16 %v844, %v842
      %v885 = vpack.c.b16 %v847, %v845
      %v886 = vpack.c.b16 %v848, %v846
      %v887 = vpack.c.b16 %v851, %v849
      %v888 = vpack.c.b16 %v852, %v850
      %v889 = vpack.c.b16 %v855, %v853
      %v890 = vpack.c.b16 %v856, %v854
      %v891 = vpack.c.b16 %v859, %v857
      %v892 = vpack.c.b16 %v860, %v858
      %v927 = vunpack.c.l.b16 %v289
      %v928 = vunpack.c.l.b16 %v290
      %v929 = vunpack.c.l.b16 %v291
      %v930 = vunpack.c.l.b16 %v292
      %v931 = vunpack.c.l.b16 %v293
      %v932 = vunpack.c.l.b16 %v294
      %v933 = vunpack.c.l.b16 %v295
      %v934 = vunpack.c.l.b16 %v296
      %v935 = vunpack.c.l.b16 %v297
      %v936 = vunpack.c.l.b16 %v298
      %v937 = vunpack.c.l.b16 %v299
      %v938 = vunpack.c.l.b16 %v300
      %v939 = vunpack.c.l.b16 %v301
      %v940 = vunpack.c.l.b16 %v302
      %v941 = vunpack.c.l.b16 %v303
      %v942 = vunpack.c.l.b16 %v304
      %v943 = vunpack.c.l.b16 %v305
      %v944 = vunpack.c.l.b16 %v306
      %v945 = vpack.c.b16 %v928, %v927
      %v946 = vpack.c.b16 %v930, %v929
      %v947 = vpack.c.b16 %v932, %v931
      %v948 = vpack.c.b16 %v934, %v933
      %v949 = vpack.c.b16 %v936, %v935
      %v950 = vpack.c.b16 %v938, %v937
      %v951 = vpack.c.b16 %v940, %v939
      %v952 = vpack.c.b16 %v942, %v941
      %v953 = vpack.c.b16 %v944, %v943
      %v964 = vsel %vm555, %v862, 0
      %v967 = vsel %vm555, %v864, 0
      %v970 = vsel %vm555, %v866, 0
      %v973 = vsel %vm555, %v868, 0
      %v976 = vsel %vm555, %v870, 0
      %v979 = vsel %vm555, %v872, 0
      %v982 = vsel %vm555, %v874, 0
      %v985 = vsel %vm555, %v876, 0
      %v988 = vsel %vm555, %v878, 0
      %v991 = vsel %vm555, %v880, 0
      %v994 = vsel %vm555, %v882, 0
      %v997 = vsel %vm555, %v884, 0
      %v1000 = vsel %vm555, %v886, 0
      %v1003 = vsel %vm555, %v888, 0
      %v1006 = vsel %vm555, %v890, 0
      %v1009 = vsel %vm555, %v892, 0
      %1011 = vmatprep.subr.bf16.mxu0 0
      %1012 = vmatpush1.bf16.msra.mxu0 %v945
      %1013 = vmatprep.subr.bf16.mxu0 0
      %1014 = vmatpush1.bf16.msra.mxu0 %v946
      %1015 = vmatprep.subr.bf16.mxu0 0
      %1016 = vmatpush1.bf16.msra.mxu0 %v947
      %1017 = vmatprep.subr.bf16.mxu0 0
      %1018 = vmatpush1.bf16.msra.mxu0 %v948
      %1019 = vmatprep.subr.bf16.mxu0 0
      %1020 = vmatpush1.bf16.msra.mxu0 %v949
      %1021 = vmatprep.subr.bf16.mxu0 0
      %1022 = vmatpush1.bf16.msra.mxu0 %v950
      %1023 = vmatprep.subr.bf16.mxu0 0
      %1024 = vmatpush1.bf16.msra.mxu0 %v951
      %1025 = vmatprep.subr.bf16.mxu0 0
      %1026 = vmatpush1.bf16.msra.mxu0 %v952
      %1027 = vmatprep.subr.bf16.mxu0 0
      %1028 = vmatpush1.bf16.msra.mxu0 %v953
      %1029 = vmatprep.subr.bf16.mxu0 0
      %1030 = vmatpush1.bf16.msra.mxu0 0
      %1031 = vmatprep.subr.bf16.mxu0 0
      %1032 = vmatpush1.bf16.msra.mxu0 0
      %1033 = vmatprep.subr.bf16.mxu0 0
      %1034 = vmatpush1.bf16.msra.mxu0 0
      %1035 = vmatprep.subr.bf16.mxu0 0
      %1036 = vmatpush1.bf16.msra.mxu0 0
      %1037 = vmatprep.subr.bf16.mxu0 0
      %1038 = vmatpush1.bf16.msra.mxu0 0
      %1039 = vmatprep.subr.bf16.mxu0 0
      %1040 = vmatpush1.bf16.msra.mxu0 0
      %1041 = vmatprep.subr.bf16.mxu0 0
      %1042 = vmatpush1.bf16.msra.mxu0 0
      %1043 = vmatprep.mubr.bf16.mxu0 %v964
      %1044 = vmatmul.mubr.bf16.gmra.mrb[0].mxu0 %v861
      %v1045 = vpop.f32.mrb[0].mxu0
      %v1046 = vadd.f32 %v639, %v1045
      %v1047 = vpop.f32.mrb[0].mxu0
      %v1048 = vpop.f32.mrb[0].mxu0
      %v1049 = vadd.f32 %v642, %v1048
      %v1050 = vpop.f32.mrb[0].mxu0
      %1051 = vmatprep.mubr.bf16.mxu0 %v967
      %1052 = vmatmul.mubr.bf16.gmra.mrb[0].mxu0 %v863
      %v1053 = vpop.f32.mrb[0].mxu0
      %v1054 = vadd.f32 %v647, %v1053
      %v1055 = vpop.f32.mrb[0].mxu0
      %v1056 = vpop.f32.mrb[0].mxu0
      %v1057 = vadd.f32 %v650, %v1056
      %v1058 = vpop.f32.mrb[0].mxu0
      %1059 = vmatprep.mubr.bf16.mxu0 %v970
      %1060 = vmatmul.mubr.bf16.gmra.mrb[0].mxu0 %v865
      %v1061 = vpop.f32.mrb[0].mxu0
      %v1062 = vadd.f32 %v655, %v1061
      %v1063 = vpop.f32.mrb[0].mxu0
      %v1064 = vpop.f32.mrb[0].mxu0
      %v1065 = vadd.f32 %v658, %v1064
      %v1066 = vpop.f32.mrb[0].mxu0
      %1067 = vmatprep.mubr.bf16.mxu0 %v973
      %1068 = vmatmul.mubr.bf16.gmra.mrb[0].mxu0 %v867
      %v1069 = vpop.f32.mrb[0].mxu0
      %v1070 = vadd.f32 %v663, %v1069
      %v1071 = vpop.f32.mrb[0].mxu0
      %v1072 = vpop.f32.mrb[0].mxu0
      %v1073 = vadd.f32 %v666, %v1072
      %v1074 = vpop.f32.mrb[0].mxu0
      %1075 = vmatprep.mubr.bf16.mxu0 %v976
      %1076 = vmatmul.mubr.bf16.gmra.mrb[0].mxu0 %v869
      %v1077 = vpop.f32.mrb[0].mxu0
      %v1078 = vadd.f32 %v671, %v1077
      %v1079 = vpop.f32.mrb[0].mxu0
      %v1080 = vpop.f32.mrb[0].mxu0
      %v1081 = vadd.f32 %v674, %v1080
      %v1082 = vpop.f32.mrb[0].mxu0
      %1083 = vmatprep.mubr.bf16.mxu0 %v979
      %1084 = vmatmul.mubr.bf16.gmra.mrb[0].mxu0 %v871
      %v1085 = vpop.f32.mrb[0].mxu0
      %v1086 = vadd.f32 %v679, %v1085
      %v1087 = vpop.f32.mrb[0].mxu0
      %v1088 = vpop.f32.mrb[0].mxu0
      %v1089 = vadd.f32 %v682, %v1088
      %v1090 = vpop.f32.mrb[0].mxu0
      %1091 = vmatprep.mubr.bf16.mxu0 %v982
      %1092 = vmatmul.mubr.bf16.gmra.mrb[0].mxu0 %v873
      %v1093 = vpop.f32.mrb[0].mxu0
      %v1094 = vadd.f32 %v687, %v1093
      %v1095 = vpop.f32.mrb[0].mxu0
      %v1096 = vpop.f32.mrb[0].mxu0
      %v1097 = vadd.f32 %v690, %v1096
      %v1098 = vpop.f32.mrb[0].mxu0
      %1099 = vmatprep.mubr.bf16.mxu0 %v985
      %1100 = vmatmul.mubr.bf16.gmra.mrb[0].mxu0 %v875
      %v1101 = vpop.f32.mrb[0].mxu0
      %v1102 = vadd.f32 %v695, %v1101
      %v1103 = vpop.f32.mrb[0].mxu0
      %v1104 = vpop.f32.mrb[0].mxu0
      %v1105 = vadd.f32 %v698, %v1104
      %v1106 = vpop.f32.mrb[0].mxu0
      %1107 = vmatprep.mubr.bf16.mxu0 %v988
      %1108 = vmatmul.mubr.bf16.gmra.mrb[0].mxu0 %v877
      %v1109 = vpop.f32.mrb[0].mxu0
      %v1110 = vadd.f32 %v703, %v1109
      %v1111 = vpop.f32.mrb[0].mxu0
      %v1112 = vpop.f32.mrb[0].mxu0
      %v1113 = vadd.f32 %v706, %v1112
      %v1114 = vpop.f32.mrb[0].mxu0
      %1115 = vmatprep.mubr.bf16.mxu0 %v991
      %1116 = vmatmul.mubr.bf16.gmra.mrb[0].mxu0 %v879
      %v1117 = vpop.f32.mrb[0].mxu0
      %v1118 = vadd.f32 %v711, %v1117
      %v1119 = vpop.f32.mrb[0].mxu0
      %v1120 = vpop.f32.mrb[0].mxu0
      %v1121 = vadd.f32 %v714, %v1120
      %v1122 = vpop.f32.mrb[0].mxu0
      %1123 = vmatprep.mubr.bf16.mxu0 %v994
      %1124 = vmatmul.mubr.bf16.gmra.mrb[0].mxu0 %v881
      %v1125 = vpop.f32.mrb[0].mxu0
      %v1126 = vadd.f32 %v719, %v1125
      %v1127 = vpop.f32.mrb[0].mxu0
      %v1128 = vpop.f32.mrb[0].mxu0
      %v1129 = vadd.f32 %v722, %v1128
      %v1130 = vpop.f32.mrb[0].mxu0
      %1131 = vmatprep.mubr.bf16.mxu0 %v997
      %1132 = vmatmul.mubr.bf16.gmra.mrb[0].mxu0 %v883
      %v1133 = vpop.f32.mrb[0].mxu0
      %v1134 = vadd.f32 %v727, %v1133
      %v1135 = vpop.f32.mrb[0].mxu0
      %v1136 = vpop.f32.mrb[0].mxu0
      %v1137 = vadd.f32 %v730, %v1136
      %v1138 = vpop.f32.mrb[0].mxu0
      %1139 = vmatprep.mubr.bf16.mxu0 %v1000
      %1140 = vmatmul.mubr.bf16.gmra.mrb[0].mxu0 %v885
      %v1141 = vpop.f32.mrb[0].mxu0
      %v1142 = vadd.f32 %v735, %v1141
      %v1143 = vpop.f32.mrb[0].mxu0
      %v1144 = vpop.f32.mrb[0].mxu0
      %v1145 = vadd.f32 %v738, %v1144
      %v1146 = vpop.f32.mrb[0].mxu0
      %1147 = vmatprep.mubr.bf16.mxu0 %v1003
      %1148 = vmatmul.mubr.bf16.gmra.mrb[0].mxu0 %v887
      %v1149 = vpop.f32.mrb[0].mxu0
      %v1150 = vadd.f32 %v743, %v1149
      %v1151 = vpop.f32.mrb[0].mxu0
      %v1152 = vpop.f32.mrb[0].mxu0
      %v1153 = vadd.f32 %v746, %v1152
      %v1154 = vpop.f32.mrb[0].mxu0
      %1155 = vmatprep.mubr.bf16.mxu0 %v1006
      %1156 = vmatmul.mubr.bf16.gmra.mrb[0].mxu0 %v889
      %v1157 = vpop.f32.mrb[0].mxu0
      %v1158 = vadd.f32 %v751, %v1157
      %v1159 = vpop.f32.mrb[0].mxu0
      %v1160 = vpop.f32.mrb[0].mxu0
      %v1161 = vadd.f32 %v754, %v1160
      %v1162 = vpop.f32.mrb[0].mxu0
      %1163 = vmatprep.mubr.bf16.mxu0 %v1009
      %1164 = vmatmul.mubr.bf16.gmra.mrb[0].mxu0 %v891
      %v1165 = vpop.f32.mrb[0].mxu0
      %v1166 = vadd.f32 %v759, %v1165
      %v1167 = vpop.f32.mrb[0].mxu0
      %v1168 = vpop.f32.mrb[0].mxu0
      %v1169 = vadd.f32 %v762, %v1168
      %v1170 = vpop.f32.mrb[0].mxu0
      %1171 = vdwg.mxu0
      %v1172 = vld [vmem:[%s4] sm:$0x1]
      %v1174 = vlaneseq
      %v1175 = vshrl.u32 %v1174, 7
      %v1176 = vsub.s32 0, %v1175
      %v1177 = vrot.slane %v1172, %v1176
      %v1179 = vadd.f32 %v1046, %v1177
      %v1180 = vadd.f32 %v1049, %v1177
      %v1181 = vadd.f32 %v1054, %v1177
      %v1182 = vadd.f32 %v1057, %v1177
      %v1183 = vadd.f32 %v1062, %v1177
      %v1184 = vadd.f32 %v1065, %v1177
      %v1185 = vadd.f32 %v1070, %v1177
      %v1186 = vadd.f32 %v1073, %v1177
      %v1187 = vadd.f32 %v1078, %v1177
      %v1188 = vadd.f32 %v1081, %v1177
      %v1189 = vadd.f32 %v1086, %v1177
      %v1190 = vadd.f32 %v1089, %v1177
      %v1191 = vadd.f32 %v1094, %v1177
      %v1192 = vadd.f32 %v1097, %v1177
      %v1193 = vadd.f32 %v1102, %v1177
      %v1194 = vadd.f32 %v1105, %v1177
      %v1195 = vadd.f32 %v1110, %v1177
      %v1196 = vadd.f32 %v1113, %v1177
      %v1197 = vadd.f32 %v1118, %v1177
      %v1198 = vadd.f32 %v1121, %v1177
      %v1199 = vadd.f32 %v1126, %v1177
      %v1200 = vadd.f32 %v1129, %v1177
      %v1201 = vadd.f32 %v1134, %v1177
      %v1202 = vadd.f32 %v1137, %v1177
      %v1203 = vadd.f32 %v1142, %v1177
      %v1204 = vadd.f32 %v1145, %v1177
      %v1205 = vadd.f32 %v1150, %v1177
      %v1206 = vadd.f32 %v1153, %v1177
      %v1207 = vadd.f32 %v1158, %v1177
      %v1208 = vadd.f32 %v1161, %v1177
      %v1209 = vadd.f32 %v1166, %v1177
      %v1210 = vadd.f32 %v1169, %v1177
      %v1211 = vmax.f32 %v1179, 0.0
      %v1212 = vmax.f32 %v1180, 0.0
      %v1213 = vmax.f32 %v1181, 0.0
      %v1214 = vmax.f32 %v1182, 0.0
      %v1215 = vmax.f32 %v1183, 0.0
      %v1216 = vmax.f32 %v1184, 0.0
      %v1217 = vmax.f32 %v1185, 0.0
      %v1218 = vmax.f32 %v1186, 0.0
      %v1219 = vmax.f32 %v1187, 0.0
      %v1220 = vmax.f32 %v1188, 0.0
      %v1221 = vmax.f32 %v1189, 0.0
      %v1222 = vmax.f32 %v1190, 0.0
      %v1223 = vmax.f32 %v1191, 0.0
      %v1224 = vmax.f32 %v1192, 0.0
      %v1225 = vmax.f32 %v1193, 0.0
      %v1226 = vmax.f32 %v1194, 0.0
      %v1227 = vmax.f32 %v1195, 0.0
      %v1228 = vmax.f32 %v1196, 0.0
      %v1229 = vmax.f32 %v1197, 0.0
      %v1230 = vmax.f32 %v1198, 0.0
      %v1231 = vmax.f32 %v1199, 0.0
      %v1232 = vmax.f32 %v1200, 0.0
      %v1233 = vmax.f32 %v1201, 0.0
      %v1234 = vmax.f32 %v1202, 0.0
      %v1235 = vmax.f32 %v1203, 0.0
      %v1236 = vmax.f32 %v1204, 0.0
      %v1237 = vmax.f32 %v1205, 0.0
      %v1238 = vmax.f32 %v1206, 0.0
      %v1239 = vmax.f32 %v1207, 0.0
      %v1240 = vmax.f32 %v1208, 0.0
      %v1241 = vmax.f32 %v1209, 0.0
      %v1242 = vmax.f32 %v1210, 0.0
      %v1243 = vpack.c.bf16 %v1212, %v1211
      %v1244 = vpack.c.bf16 %v1214, %v1213
      %v1245 = vpack.c.bf16 %v1216, %v1215
      %v1246 = vpack.c.bf16 %v1218, %v1217
      %v1247 = vpack.c.bf16 %v1220, %v1219
      %v1248 = vpack.c.bf16 %v1222, %v1221
      %v1249 = vpack.c.bf16 %v1224, %v1223
      %v1250 = vpack.c.bf16 %v1226, %v1225
      %v1251 = vpack.c.bf16 %v1228, %v1227
      %v1252 = vpack.c.bf16 %v1230, %v1229
      %v1253 = vpack.c.bf16 %v1232, %v1231
      %v1254 = vpack.c.bf16 %v1234, %v1233
      %v1255 = vpack.c.bf16 %v1236, %v1235
      %v1256 = vpack.c.bf16 %v1238, %v1237
      %v1257 = vpack.c.bf16 %v1240, %v1239
      %v1258 = vpack.c.bf16 %v1242, %v1241
      %v1275 = vunpack.c.l.b16 %v1243
      %v1276 = vunpack.c.h.b16 %v1243
      %v1277 = vunpack.c.l.b16 %v1244
      %v1278 = vunpack.c.h.b16 %v1244
      %v1279 = vunpack.c.l.b16 %v1245
      %v1280 = vunpack.c.h.b16 %v1245
      %v1281 = vunpack.c.l.b16 %v1246
      %v1282 = vunpack.c.h.b16 %v1246
      %v1283 = vunpack.c.l.b16 %v1247
      %v1284 = vunpack.c.h.b16 %v1247
      %v1285 = vunpack.c.l.b16 %v1248
      %v1286 = vunpack.c.h.b16 %v1248
      %v1287 = vunpack.c.l.b16 %v1249
      %v1288 = vunpack.c.h.b16 %v1249
      %v1289 = vunpack.c.l.b16 %v1250
      %v1290 = vunpack.c.h.b16 %v1250
      %v1291 = vunpack.c.l.b16 %v1251
      %v1292 = vunpack.c.h.b16 %v1251
      %v1293 = vunpack.c.l.b16 %v1252
      %v1294 = vunpack.c.h.b16 %v1252
      %v1295 = vunpack.c.l.b16 %v1253
      %v1296 = vunpack.c.h.b16 %v1253
      %v1297 = vunpack.c.l.b16 %v1254
      %v1298 = vunpack.c.h.b16 %v1254
      %v1299 = vunpack.c.l.b16 %v1255
      %v1300 = vunpack.c.h.b16 %v1255
      %v1301 = vunpack.c.l.b16 %v1256
      %v1302 = vunpack.c.h.b16 %v1256
      %v1303 = vunpack.c.l.b16 %v1257
      %v1304 = vunpack.c.h.b16 %v1257
      %v1305 = vunpack.c.l.b16 %v1258
      %v1306 = vunpack.c.h.b16 %v1258
      %v1307 = vpack.c.b16 %v1275, %v1275
      %v1308 = vpack.c.b16 %v1276, %v1276
      %v1309 = vpack.c.b16 %v1277, %v1277
      %v1310 = vpack.c.b16 %v1278, %v1278
      %v1311 = vpack.c.b16 %v1279, %v1279
      %v1312 = vpack.c.b16 %v1280, %v1280
      %v1313 = vpack.c.b16 %v1281, %v1281
      %v1314 = vpack.c.b16 %v1282, %v1282
      %v1315 = vpack.c.b16 %v1283, %v1283
      %v1316 = vpack.c.b16 %v1284, %v1284
      %v1317 = vpack.c.b16 %v1285, %v1285
      %v1318 = vpack.c.b16 %v1286, %v1286
      %v1319 = vpack.c.b16 %v1287, %v1287
      %v1320 = vpack.c.b16 %v1288, %v1288
      %v1321 = vpack.c.b16 %v1289, %v1289
      %v1322 = vpack.c.b16 %v1290, %v1290
      %v1323 = vpack.c.b16 %v1291, %v1291
      %v1324 = vpack.c.b16 %v1292, %v1292
      %v1325 = vpack.c.b16 %v1293, %v1293
      %v1326 = vpack.c.b16 %v1294, %v1294
      %v1327 = vpack.c.b16 %v1295, %v1295
      %v1328 = vpack.c.b16 %v1296, %v1296
      %v1329 = vpack.c.b16 %v1297, %v1297
      %v1330 = vpack.c.b16 %v1298, %v1298
      %v1331 = vpack.c.b16 %v1299, %v1299
      %v1332 = vpack.c.b16 %v1300, %v1300
      %v1333 = vpack.c.b16 %v1301, %v1301
      %v1334 = vpack.c.b16 %v1302, %v1302
      %v1335 = vpack.c.b16 %v1303, %v1303
      %v1336 = vpack.c.b16 %v1304, %v1304
      %v1337 = vpack.c.b16 %v1305, %v1305
      %v1338 = vpack.c.b16 %v1306, %v1306
      %vm1371 = vcmask 125952
      %1372 = vst.msk [vmem:[%s254] sm:$0xf] %vm1371, %v1307
      %1373 = vst.msk [vmem:[%s254 + $0x4] sm:$0xf] %vm1371, %v1308
      %1374 = vst.msk [vmem:[%s254 + $0x8] sm:$0xf] %vm1371, %v1309
      %1375 = vst.msk [vmem:[%s254 + $0xc] sm:$0xf] %vm1371, %v1310
      %1376 = vst.msk [vmem:[%s254 + $0x10] sm:$0xf] %vm1371, %v1311
      %1377 = vst.msk [vmem:[%s254 + $0x14] sm:$0xf] %vm1371, %v1312
      %1378 = vst.msk [vmem:[%s254 + $0x18] sm:$0xf] %vm1371, %v1313
      %1379 = vst.msk [vmem:[%s254 + $0x1c] sm:$0xf] %vm1371, %v1314
      %1380 = vst.msk [vmem:[%s254 + $0x20] sm:$0xf] %vm1371, %v1315
      %1381 = vst.msk [vmem:[%s254 + $0x24] sm:$0xf] %vm1371, %v1316
      %1382 = vst.msk [vmem:[%s254 + $0x28] sm:$0xf] %vm1371, %v1317
      %1383 = vst.msk [vmem:[%s254 + $0x2c] sm:$0xf] %vm1371, %v1318
      %1384 = vst.msk [vmem:[%s254 + $0x30] sm:$0xf] %vm1371, %v1319
      %1385 = vst.msk [vmem:[%s254 + $0x34] sm:$0xf] %vm1371, %v1320
      %1386 = vst.msk [vmem:[%s254 + $0x38] sm:$0xf] %vm1371, %v1321
      %1387 = vst.msk [vmem:[%s254 + $0x3c] sm:$0xf] %vm1371, %v1322
      %1388 = vst.msk [vmem:[%s254 + $0x40] sm:$0xf] %vm1371, %v1323
      %1389 = vst.msk [vmem:[%s254 + $0x44] sm:$0xf] %vm1371, %v1324
      %1390 = vst.msk [vmem:[%s254 + $0x48] sm:$0xf] %vm1371, %v1325
      %1391 = vst.msk [vmem:[%s254 + $0x4c] sm:$0xf] %vm1371, %v1326
      %1392 = vst.msk [vmem:[%s254 + $0x50] sm:$0xf] %vm1371, %v1327
      %1393 = vst.msk [vmem:[%s254 + $0x54] sm:$0xf] %vm1371, %v1328
      %1394 = vst.msk [vmem:[%s254 + $0x58] sm:$0xf] %vm1371, %v1329
      %1395 = vst.msk [vmem:[%s254 + $0x5c] sm:$0xf] %vm1371, %v1330
      %1396 = vst.msk [vmem:[%s254 + $0x60] sm:$0xf] %vm1371, %v1331
      %1397 = vst.msk [vmem:[%s254 + $0x64] sm:$0xf] %vm1371, %v1332
      %1398 = vst.msk [vmem:[%s254 + $0x68] sm:$0xf] %vm1371, %v1333
      %1399 = vst.msk [vmem:[%s254 + $0x6c] sm:$0xf] %vm1371, %v1334
      %1400 = vst.msk [vmem:[%s254 + $0x70] sm:$0xf] %vm1371, %v1335
      %1401 = vst.msk [vmem:[%s254 + $0x74] sm:$0xf] %vm1371, %v1336
      %1402 = vst.msk [vmem:[%s254 + $0x78] sm:$0xf] %vm1371, %v1337
      %1403 = vst.msk [vmem:[%s254 + $0x7c] sm:$0xf] %vm1371, %v1338
      %s1404 = smul.u32 32, %s16
      %p1405 = scmp.lt.s32.totalorder %s1404, 63
      %s1406 = scalar_select %p1405, %s1404, 63
      %s1407 = smul.addr %s1406, 4
      %s1408 = scalar_lea.vmem %s5, %s1407
      // Predicated region
      $region41: #{wrapped_model_forward.15} parent=39 // pred_check
        %p1409 = pneg %p149
      $region42: #{wrapped_model_forward.15} parent=39 // pred_check_branch
        %1411 = sbr.rel (%p1409) target = $region44
      $region43: #{wrapped_model_forward.15} parent=39 // pred_region
        %s1412 = smul.u32 32, %s16
      $region44: #{wrapped_model_forward.15} parent=39 // pred_fallthru
        _
    $region40: #{wrapped_model_forward.15} parent=5 // pred_fallthru
      _
    %p1413 = scmp.le.s32.totalorder 2, %s11
    // Predicated region
    $region45: #{wrapped_model_forward.15} parent=5 // pred_check
      %p1414 = pneg %p1413
    $region46: #{wrapped_model_forward.15} parent=5 // pred_check_branch
      %1416 = sbr.rel (%p1414) target = $region48
    $region47: #{wrapped_model_forward.15} parent=5 // pred_region
      %s1417 = ssub.s32 %s11, 2
      // Predicated region
      $region49: #{wrapped_model_forward.15} parent=47 // pred_check
        %p1418 = pneg %p155
      $region50: #{wrapped_model_forward.15} parent=47 // pred_check_branch
        %1420 = sbr.rel (%p1418) target = $region52
      $region51: #{wrapped_model_forward.15} parent=47 // pred_region
        %s1421 = smul.u32 32, %s17
        %p1422 = scmp.lt.s32.totalorder %s1421, 63
        %s1423 = scalar_select %p1422, %s1421, 63
        %s1424 = smul.addr %s1423, 4
        %s1425 = scalar_lea.vmem %s5, %s1424
      $region52: #{wrapped_model_forward.15} parent=47 // pred_fallthru
        _
    $region48: #{wrapped_model_forward.15} parent=5 // pred_fallthru
      _
  $region6: #{wrapped_model_forward.15} parent=0 // loop_footer
    %s15 = sadd.s32 1, %s11
  $region7: #{wrapped_model_forward.15} parent=0 // loop_footer_branch
    %10 = sbr.rel target = $region3
  $region8: #{wrapped_model_forward.15} parent=0 // loop_exit
    _

</llo_original>
